<compile_context>
chip_gen: v5e
topology: v5e:2x2
jax: 0.10.0
libtpu: 0.0.40
codegen_flags: <defaults>
</compile_context>

<pallas_src>
import functools
import math

import numpy as np

import jax
import jax.numpy as jnp
from jax.experimental import pallas as pl
from jax.experimental.pallas import tpu as pltpu

_RGB_W = (0.2989, 0.587, 0.114)   # torchvision rgb_to_grayscale coefficients
OUT_LANES = 16                    # fused fc2 lanes: actor logits [0:A], critic value [8]
VALUE_LANE = 8


def _to_gray(x):
    """NHWC float image -> (N, H, W) grayscale (torchvision coefficients)."""
    return _RGB_W[0] * x[..., 0] + _RGB_W[1] * x[..., 1] + _RGB_W[2] * x[..., 2]


# ------------------------------ fused kernel --------------------------------

def _fused_forward_kernel(p_ref, w1_ref, b1_ref, w2_ref, b2_ref,
                          fw1_ref, fb1_ref, fw2_ref, fb2_ref, out_ref, *, nb):
    """Fused actor+critic CNN forward for one batch tile of `nb` samples.

    Layouts (fused channel c' = net*6 + c, oc' = net*12 + oc; net 0=actor, 1=critic):
      p_ref  : (1, 64*nb, 735) bf16 conv1 patches.
               row  = d*16nb + p*8nb + u*nb + n   (pool1 phase d=(dh,dw),
               conv1 out pos oh = 4u+2p+dh, ow = 2pw+dw);  lane = pw*49 + kh*7+kw.
      w1_ref : (735, 180)  bf16, pw-block-diagonal conv1 weights -> lanes (pw, c').
      w2_ref : (4, 2, 180, 144) bf16 banded conv2 weights [kh, ew, (pw,c'), (qw,oc')].
      fw1_ref: (6, 144, 432) bf16 fc1 weights (NCHW flatten folded in), indexed by qh.
      fw2_ref: (432, 16) bf16; output lanes [0:A] actor logits, [8] critic value.
      out_ref: (1, nb, 16) f32.
    """
    r = 16 * nb

    # ---- conv1: all 4 pool1 phases in ONE dot, then phase-max + bias + ReLU ----
    z = jnp.dot(p_ref[0], w1_ref[...], preferred_element_type=jnp.float32)  # (64nb,180)
    m = jnp.maximum(jnp.maximum(z[0:r], z[r:2 * r]),
                    jnp.maximum(z[2 * r:3 * r], z[3 * r:4 * r]))
    a = jnp.maximum(m + b1_ref[...], 0.0)        # (16nb,180): rows (p,u,n), lanes (pw,c')
    a = a.astype(jnp.bfloat16)
    # rows [15nb,16nb) = padded pool1 row ph=15: computed but never read below.

    # ---- conv2: banded matmuls on 5 parity slices, pool2-phase max, ReLU -------
    # slice o = eh+kh selects pool1 rows ph = 2*qh + o for qh in [0,6)
    s = [a[(o % 2) * 8 * nb + (o // 2) * nb:
           (o % 2) * 8 * nb + (o // 2) * nb + 6 * nb, :] for o in range(5)]
    h2m = None
    for eh in range(2):
        for ew in range(2):
            acc = jnp.dot(s[eh], w2_ref[0, ew], preferred_element_type=jnp.float32)
            for kh in range(1, 4):
                acc = acc + jnp.dot(s[eh + kh], w2_ref[kh, ew],
                                    preferred_element_type=jnp.float32)
            h2m = acc if h2m is None else jnp.maximum(h2m, acc)
    h2 = jnp.maximum(h2m + b2_ref[...], 0.0)     # (6nb,144): rows (qh,n), lanes (qw,oc')
    h2 = h2.astype(jnp.bfloat16)

    # ---- fc1 + ReLU (NCHW flatten folded into the per-qh weight layout) --------
    acc = jnp.dot(h2[0:nb], fw1_ref[0], preferred_element_type=jnp.float32)
    for qh in range(1, 6):
        acc = acc + jnp.dot(h2[qh * nb:(qh + 1) * nb], fw1_ref[qh],
                            preferred_element_type=jnp.float32)
    h3 = jnp.maximum(acc + fb1_ref[...], 0.0)    # (nb,432): [0:216] actor, [216:432] critic
    # TODO(synk): nn.Dropout(0.2) is identity at inference; no mask applied.

    # ---- fc2 (actor logits in lanes [0:A], critic value in lane 8) -------------
    out_ref[0] = (jnp.dot(h3.astype(jnp.bfloat16), fw2_ref[...],
                          preferred_element_type=jnp.float32) + fb2_ref[...])


# ------------------------------- glue (JAX) ---------------------------------

def _conv1_pool_patches(x, bt):
    """Grayscale im2col for conv1 (k=7, s=3) in the fused-kernel row/lane layout.

    x: (N, 96, 96, 3) f32  ->  (T, 64*bt, 735) bf16,  T = ceil(N / bt).
    """
    # TODO(synk): the im2col itself could be moved in-kernel (DMA gray rows and
    # build patches with static slices) if this XLA prologue ever dominates.
    n = x.shape[0]
    t = -(-n // bt)
    if t * bt != n:
        x = jnp.pad(x, ((0, t * bt - n), (0, 0), (0, 0), (0, 0)))
    g = _to_gray(x)                                            # (T*bt, 96, 96)
    cols = [g[:, kh:kh + 88:3, kw:kw + 88:3]                   # (T*bt, 30, 30)
            for kh in range(7) for kw in range(7)]
    pt = jnp.stack(cols, axis=-1)                              # (T*bt, 30, 30, 49)
    pt = jnp.pad(pt, ((0, 0), (0, 2), (0, 0), (0, 0)))         # oh: 30 -> 32
    # oh = 4u + 2p + dh ; ow = 2pw + dw
    pt = pt.reshape(t, bt, 8, 2, 2, 15, 2, 49)                 # (t,n,u,p,dh,pw,dw,k)
    pt = pt.transpose(0, 4, 6, 3, 2, 1, 5, 7)                  # (t,dh,dw,p,u,n,pw,k)
    return pt.reshape(t, 64 * bt, 15 * 49).astype(jnp.bfloat16)


def actor_critic_forward(x, params, len_action_space, batch_tile=None):
    """x: (N, 96, 96, 3) NHWC f32 -> (logits (N, A), value (N, 1))."""
    nb = x.shape[0]
    bt = nb if batch_tile is None else batch_tile
    t = -(-nb // bt)
    p = _conv1_pool_patches(x, bt)                             # (t, 64*bt, 735) bf16

    kernel = functools.partial(_fused_forward_kernel, nb=bt)
    flops = 2 * t * bt * (64 * 735 * 180 + 16 * 6 * 180 * 144
                          + 6 * 144 * 432 + 432 * OUT_LANES)
    # Weights have a constant block index (fetched once on a sequential grid);
    # patches are streamed once per batch tile.
    bytes_accessed = (int(p.size) * 2
                      + sum(int(v.size) * v.dtype.itemsize for v in params.values())
                      + t * bt * OUT_LANES * 4)

    out = pl.pallas_call(
        kernel,
        out_shape=jax.ShapeDtypeStruct((t, bt, OUT_LANES), jnp.float32),
        grid=(t,),                               # batch tiles; "parallel" for v7x's 2 TCs
        in_specs=[
            pl.BlockSpec((1, 64 * bt, 735), lambda i: (i, 0, 0)),    # patches (per tile)
            pl.BlockSpec((735, 180), lambda i: (0, 0)),              # conv1 w (pw block-diag)
            pl.BlockSpec((1, 180), lambda i: (0, 0)),                # conv1 b (tiled)
            pl.BlockSpec((4, 2, 180, 144), lambda i: (0, 0, 0, 0)),  # conv2 banded w
            pl.BlockSpec((1, 144), lambda i: (0, 0)),                # conv2 b (tiled)
            pl.BlockSpec((6, 144, 432), lambda i: (0, 0, 0)),        # fc1 w (permuted)
            pl.BlockSpec((1, 432), lambda i: (0, 0)),                # fc1 b
            pl.BlockSpec((432, OUT_LANES), lambda i: (0, 0)),        # fc2 w (fused, padded)
            pl.BlockSpec((1, OUT_LANES), lambda i: (0, 0)),          # fc2 b
        ],
        out_specs=pl.BlockSpec((1, bt, OUT_LANES), lambda i: (i, 0, 0)),
        compiler_params=pltpu.CompilerParams(
            dimension_semantics=("parallel",)),
        cost_estimate=pl.CostEstimate(flops=flops, transcendentals=0,
                                      bytes_accessed=bytes_accessed),
    )(p, params["w1"], params["b1"], params["w2b"], params["b2"],
      params["fw1"], params["fb1"], params["fw2"], params["fb2"])

    out = out.reshape(t * bt, OUT_LANES)[:nb]
    return out[:, :len_action_space], out[:, VALUE_LANE:VALUE_LANE + 1]


# --------------------------- parameter preparation --------------------------

def _init_raw_params(key, out_dim):
    """Deterministic PyTorch-style uniform(-1/sqrt(fan_in), +) init (numpy)."""
    ks = jax.random.split(key, 8)

    def u(k, shape, fan_in):
        bound = 1.0 / math.sqrt(fan_in)
        return np.asarray(jax.random.uniform(k, shape, jnp.float32, -bound, bound))

    return dict(
        conv1_w=u(ks[0], (6, 1, 7, 7), 49), conv1_b=u(ks[1], (6,), 49),
        conv2_w=u(ks[2], (12, 6, 4, 4), 96), conv2_b=u(ks[3], (12,), 96),
        fc1_w=u(ks[4], (216, 432), 432), fc1_b=u(ks[5], (216,), 432),
        fc2_w=u(ks[6], (out_dim, 216), 216), fc2_b=u(ks[7], (out_dim,), 216))


def _prep_fused_params(actor, critic, len_action_space):
    """Rearrange PyTorch-layout actor+critic params into the fused kernel layouts."""
    assert len_action_space <= VALUE_LANE
    nets = (actor, critic)

    # conv1: pw-block-diagonal (735, 180); both the patch lanes and the output
    # lanes are (pw, c'), so the conv1 result lands directly in conv2's layout.
    w1s = np.concatenate([p["conv1_w"][:, 0].reshape(6, 49).T for p in nets], axis=1)
    w1 = np.zeros((735, 180), np.float32)
    for pw in range(15):
        w1[pw * 49:(pw + 1) * 49, pw * 12:(pw + 1) * 12] = w1s
    b1 = np.tile(np.concatenate([p["conv1_b"] for p in nets]), 15).reshape(1, 180)

    # conv2 banded weights (4, 2, 180, 144):
    #   [kh, ew, pw*12 + net*6 + c, qw*24 + net*12 + oc] = conv2_w[oc, c, kh, kw]
    #   with pw = 2*qw + ew + kw (zero elsewhere / across networks).
    w2b = np.zeros((4, 2, 180, 144), np.float32)
    for net, p in enumerate(nets):
        cw = p["conv2_w"]
        for kh in range(4):
            for ew in range(2):
                for qw in range(6):
                    for kw in range(4):
                        pw = 2 * qw + ew + kw                  # <= 14 < 15
                        w2b[kh, ew,
                            pw * 12 + net * 6: pw * 12 + net * 6 + 6,
                            qw * 24 + net * 12: qw * 24 + net * 12 + 12] = \
                            cw[:, :, kh, kw].T
    b2 = np.tile(np.concatenate([p["conv2_b"] for p in nets]), 6).reshape(1, 144)

    # fc1 with the NCHW flatten folded in: (6, 144, 432)
    #   [qh, qw*24 + net*12 + oc, net*216 + j] = fc1_w[j, oc*36 + qh*6 + qw]
    fw1 = np.zeros((6, 144, 432), np.float32)
    for net, p in enumerate(nets):
        blk = p["fc1_w"].T.reshape(12, 6, 6, 216).transpose(1, 2, 0, 3)  # (qh,qw,oc,j)
        for qw in range(6):
            fw1[:, qw * 24 + net * 12: qw * 24 + net * 12 + 12,
                net * 216:(net + 1) * 216] = blk[:, qw]
    fb1 = np.concatenate([p["fc1_b"] for p in nets]).reshape(1, 432)

    # fc2: actor logits -> lanes [0:A], critic value -> lane VALUE_LANE.
    fw2 = np.zeros((432, OUT_LANES), np.float32)
    fw2[0:216, :len_action_space] = actor["fc2_w"].T
    fw2[216:432, VALUE_LANE:VALUE_LANE + 1] = critic["fc2_w"].T
    fb2 = np.zeros((1, OUT_LANES), np.float32)
    fb2[0, :len_action_space] = actor["fc2_b"]
    fb2[0, VALUE_LANE] = critic["fc2_b"][0]

    bf = jnp.bfloat16
    return dict(w1=jnp.asarray(w1, bf), b1=jnp.asarray(b1),
                w2b=jnp.asarray(w2b, bf), b2=jnp.asarray(b2),
                fw1=jnp.asarray(fw1, bf), fb1=jnp.asarray(fb1),
                fw2=jnp.asarray(fw2, bf), fb2=jnp.asarray(fb2))


# ------------------------------ pure-JAX reference --------------------------

def _reference_net(x, p):
    """Pure-JAX f32 reference of one CNN network (x is NHWC)."""
    g = _to_gray(x)[:, None, :, :]                              # NCHW, 1 channel
    y = jax.lax.conv(g, jnp.asarray(p["conv1_w"]), (3, 3), "VALID")
    y = jax.nn.relu(y + jnp.asarray(p["conv1_b"])[None, :, None, None])
    y = jax.lax.reduce_window(y, -jnp.inf, jax.lax.max,
                              (1, 1, 2, 2), (1, 1, 2, 2), "VALID")
    y = jax.lax.conv(y, jnp.asarray(p["conv2_w"]), (1, 1), "VALID")
    y = jax.nn.relu(y + jnp.asarray(p["conv2_b"])[None, :, None, None])
    y = jax.lax.reduce_window(y, -jnp.inf, jax.lax.max,
                              (1, 1, 2, 2), (1, 1, 2, 2), "VALID")
    y = y.reshape(y.shape[0], -1)                               # NCHW flatten
    y = jax.nn.relu(y @ jnp.asarray(p["fc1_w"]).T + jnp.asarray(p["fc1_b"]))
    return y @ jnp.asarray(p["fc2_w"]).T + jnp.asarray(p["fc2_b"])


# ----------------------------------- main -----------------------------------

if __name__ == "__main__":
    LEN_ACTION_SPACE = 5
    BATCH = 2

    key = jax.random.PRNGKey(0)
    k_in, k_actor, k_critic = jax.random.split(key, 3)

    # NHWC input (the PyTorch module permutes NHWC->NCHW itself)
    x = jax.random.uniform(k_in, (BATCH, 96, 96, 3), jnp.float32)
    raw_actor = _init_raw_params(k_actor, LEN_ACTION_SPACE)
    raw_critic = _init_raw_params(k_critic, 1)
    params = _prep_fused_params(raw_actor, raw_critic, LEN_ACTION_SPACE)

    fwd = jax.jit(lambda inp: actor_critic_forward(inp, params, LEN_ACTION_SPACE))
    logits, value = fwd(x)
    jax.block_until_ready((logits, value))

    assert logits.shape == (BATCH, LEN_ACTION_SPACE), logits.shape
    assert value.shape == (BATCH, 1), value.shape
    assert logits.dtype == jnp.float32 and value.dtype == jnp.float32
    assert bool(jnp.isfinite(logits).all()) and bool(jnp.isfinite(value).all())

    # Correctness vs. f32 pure-JAX reference (kernel uses bf16 data -> loose tol).
    ref_logits = _reference_net(x, raw_actor)
    ref_value = _reference_net(x, raw_critic)
    np.testing.assert_allclose(np.asarray(logits), np.asarray(ref_logits),
                               rtol=2e-2, atol=2e-2)
    np.testing.assert_allclose(np.asarray(value), np.asarray(ref_value),
                               rtol=2e-2, atol=2e-2)

    print("KERNEL_OK")
</pallas_src>

<mosaic_0001>
module attributes {stable_mosaic.version = 11 : i64} {
  func.func @_fused_forward_kernel(%arg0: i32, %arg1: memref<1x128x735xbf16, #tpu.memory_space<vmem>>, %arg2: memref<735x180xbf16, #tpu.memory_space<vmem>>, %arg3: memref<1x180xf32, #tpu.memory_space<vmem>>, %arg4: memref<4x2x180x144xbf16, #tpu.memory_space<vmem>>, %arg5: memref<1x144xf32, #tpu.memory_space<vmem>>, %arg6: memref<6x144x432xbf16, #tpu.memory_space<vmem>>, %arg7: memref<1x432xf32, #tpu.memory_space<vmem>>, %arg8: memref<432x16xbf16, #tpu.memory_space<vmem>>, %arg9: memref<1x16xf32, #tpu.memory_space<vmem>>, %arg10: memref<1x2x16xf32, #tpu.memory_space<vmem>>) attributes {dimension_semantics = [#tpu.dimension_semantics<parallel>], iteration_bounds = array<i64: 1>, scalar_prefetch = 0 : i64, scratch_operands = 0 : i64, tpu.core_type = #tpu.core_type<tc>, window_params = [{transform_indices = @transform_0, window_bounds = array<i64: 1, 128, 735>}, {pipeline_mode = #tpu.pipeline_mode<synchronous>, transform_indices = @transform_1, window_bounds = array<i64: 735, 180>}, {pipeline_mode = #tpu.pipeline_mode<synchronous>, transform_indices = @transform_2, window_bounds = array<i64: 1, 180>}, {pipeline_mode = #tpu.pipeline_mode<synchronous>, transform_indices = @transform_3, window_bounds = array<i64: 4, 2, 180, 144>}, {pipeline_mode = #tpu.pipeline_mode<synchronous>, transform_indices = @transform_4, window_bounds = array<i64: 1, 144>}, {pipeline_mode = #tpu.pipeline_mode<synchronous>, transform_indices = @transform_5, window_bounds = array<i64: 6, 144, 432>}, {pipeline_mode = #tpu.pipeline_mode<synchronous>, transform_indices = @transform_6, window_bounds = array<i64: 1, 432>}, {pipeline_mode = #tpu.pipeline_mode<synchronous>, transform_indices = @transform_7, window_bounds = array<i64: 432, 16>}, {pipeline_mode = #tpu.pipeline_mode<synchronous>, transform_indices = @transform_8, window_bounds = array<i64: 1, 16>}, {transform_indices = @transform_9, window_bounds = array<i64: 1, 2, 16>}]} {
    %c0 = arith.constant 0 : index
    %c0_0 = arith.constant 0 : index
    %c0_1 = arith.constant 0 : index
    %0 = vector.load %arg1[%c0, %c0_0, %c0_1] : memref<1x128x735xbf16, #tpu.memory_space<vmem>>, vector<1x128x735xbf16>
    %1 = vector.shape_cast %0 : vector<1x128x735xbf16> to vector<128x735xbf16>
    %c0_2 = arith.constant 0 : index
    %c0_3 = arith.constant 0 : index
    %2 = vector.load %arg2[%c0_2, %c0_3] : memref<735x180xbf16, #tpu.memory_space<vmem>>, vector<735x180xbf16>
    %cst = arith.constant dense<0.000000e+00> : vector<128x180xf32>
    %3 = tpu.matmul %1, %2, %cst {dimension_numbers = #tpu.dot_dimension_numbers<[1], [0], [0], [1], [0, 0, 1, 1], [], []>} : vector<128x735xbf16>, vector<735x180xbf16>, vector<128x180xf32> -> vector<128x180xf32>
    %4 = vector.extract_strided_slice %3 {offsets = [0, 0], sizes = [32, 180], strides = [1, 1]} : vector<128x180xf32> to vector<32x180xf32>
    %5 = vector.extract_strided_slice %3 {offsets = [32, 0], sizes = [32, 180], strides = [1, 1]} : vector<128x180xf32> to vector<32x180xf32>
    %6 = arith.maximumf %4, %5 : vector<32x180xf32>
    %7 = vector.extract_strided_slice %3 {offsets = [64, 0], sizes = [32, 180], strides = [1, 1]} : vector<128x180xf32> to vector<32x180xf32>
    %8 = vector.extract_strided_slice %3 {offsets = [96, 0], sizes = [32, 180], strides = [1, 1]} : vector<128x180xf32> to vector<32x180xf32>
    %9 = arith.maximumf %7, %8 : vector<32x180xf32>
    %10 = arith.maximumf %6, %9 : vector<32x180xf32>
    %c0_4 = arith.constant 0 : index
    %c0_5 = arith.constant 0 : index
    %11 = vector.load %arg3[%c0_4, %c0_5] : memref<1x180xf32, #tpu.memory_space<vmem>>, vector<1x180xf32>
    %12 = vector.broadcast %11 : vector<1x180xf32> to vector<32x180xf32>
    %13 = arith.addf %10, %12 : vector<32x180xf32>
    %cst_6 = arith.constant 0.000000e+00 : f32
    %14 = vector.broadcast %cst_6 : f32 to vector<32x180xf32>
    %15 = arith.maximumf %13, %14 : vector<32x180xf32>
    %16 = arith.truncf %15 : vector<32x180xf32> to vector<32x180xbf16>
    %17 = vector.extract_strided_slice %16 {offsets = [0, 0], sizes = [12, 180], strides = [1, 1]} : vector<32x180xbf16> to vector<12x180xbf16>
    %18 = vector.extract_strided_slice %16 {offsets = [16, 0], sizes = [12, 180], strides = [1, 1]} : vector<32x180xbf16> to vector<12x180xbf16>
    %19 = vector.extract_strided_slice %16 {offsets = [2, 0], sizes = [12, 180], strides = [1, 1]} : vector<32x180xbf16> to vector<12x180xbf16>
    %20 = vector.extract_strided_slice %16 {offsets = [18, 0], sizes = [12, 180], strides = [1, 1]} : vector<32x180xbf16> to vector<12x180xbf16>
    %21 = vector.extract_strided_slice %16 {offsets = [4, 0], sizes = [12, 180], strides = [1, 1]} : vector<32x180xbf16> to vector<12x180xbf16>
    %c0_7 = arith.constant 0 : index
    %c0_8 = arith.constant 0 : index
    %c0_9 = arith.constant 0 : index
    %c0_10 = arith.constant 0 : index
    %22 = vector.load %arg4[%c0_7, %c0_8, %c0_9, %c0_10] : memref<4x2x180x144xbf16, #tpu.memory_space<vmem>>, vector<1x1x180x144xbf16>
    %23 = vector.shape_cast %22 : vector<1x1x180x144xbf16> to vector<180x144xbf16>
    %cst_11 = arith.constant dense<0.000000e+00> : vector<12x144xf32>
    %24 = tpu.matmul %17, %23, %cst_11 {dimension_numbers = #tpu.dot_dimension_numbers<[1], [0], [0], [1], [0, 0, 1, 1], [], []>} : vector<12x180xbf16>, vector<180x144xbf16>, vector<12x144xf32> -> vector<12x144xf32>
    %c1 = arith.constant 1 : index
    %c0_12 = arith.constant 0 : index
    %c0_13 = arith.constant 0 : index
    %c0_14 = arith.constant 0 : index
    %25 = vector.load %arg4[%c1, %c0_12, %c0_13, %c0_14] : memref<4x2x180x144xbf16, #tpu.memory_space<vmem>>, vector<1x1x180x144xbf16>
    %26 = vector.shape_cast %25 : vector<1x1x180x144xbf16> to vector<180x144xbf16>
    %cst_15 = arith.constant dense<0.000000e+00> : vector<12x144xf32>
    %27 = tpu.matmul %18, %26, %cst_15 {dimension_numbers = #tpu.dot_dimension_numbers<[1], [0], [0], [1], [0, 0, 1, 1], [], []>} : vector<12x180xbf16>, vector<180x144xbf16>, vector<12x144xf32> -> vector<12x144xf32>
    %28 = arith.addf %24, %27 : vector<12x144xf32>
    %c2 = arith.constant 2 : index
    %c0_16 = arith.constant 0 : index
    %c0_17 = arith.constant 0 : index
    %c0_18 = arith.constant 0 : index
    %29 = vector.load %arg4[%c2, %c0_16, %c0_17, %c0_18] : memref<4x2x180x144xbf16, #tpu.memory_space<vmem>>, vector<1x1x180x144xbf16>
    %30 = vector.shape_cast %29 : vector<1x1x180x144xbf16> to vector<180x144xbf16>
    %cst_19 = arith.constant dense<0.000000e+00> : vector<12x144xf32>
    %31 = tpu.matmul %19, %30, %cst_19 {dimension_numbers = #tpu.dot_dimension_numbers<[1], [0], [0], [1], [0, 0, 1, 1], [], []>} : vector<12x180xbf16>, vector<180x144xbf16>, vector<12x144xf32> -> vector<12x144xf32>
    %32 = arith.addf %28, %31 : vector<12x144xf32>
    %c3 = arith.constant 3 : index
    %c0_20 = arith.constant 0 : index
    %c0_21 = arith.constant 0 : index
    %c0_22 = arith.constant 0 : index
    %33 = vector.load %arg4[%c3, %c0_20, %c0_21, %c0_22] : memref<4x2x180x144xbf16, #tpu.memory_space<vmem>>, vector<1x1x180x144xbf16>
    %34 = vector.shape_cast %33 : vector<1x1x180x144xbf16> to vector<180x144xbf16>
    %cst_23 = arith.constant dense<0.000000e+00> : vector<12x144xf32>
    %35 = tpu.matmul %20, %34, %cst_23 {dimension_numbers = #tpu.dot_dimension_numbers<[1], [0], [0], [1], [0, 0, 1, 1], [], []>} : vector<12x180xbf16>, vector<180x144xbf16>, vector<12x144xf32> -> vector<12x144xf32>
    %36 = arith.addf %32, %35 : vector<12x144xf32>
    %c0_24 = arith.constant 0 : index
    %c1_25 = arith.constant 1 : index
    %c0_26 = arith.constant 0 : index
    %c0_27 = arith.constant 0 : index
    %37 = vector.load %arg4[%c0_24, %c1_25, %c0_26, %c0_27] : memref<4x2x180x144xbf16, #tpu.memory_space<vmem>>, vector<1x1x180x144xbf16>
    %38 = vector.shape_cast %37 : vector<1x1x180x144xbf16> to vector<180x144xbf16>
    %cst_28 = arith.constant dense<0.000000e+00> : vector<12x144xf32>
    %39 = tpu.matmul %17, %38, %cst_28 {dimension_numbers = #tpu.dot_dimension_numbers<[1], [0], [0], [1], [0, 0, 1, 1], [], []>} : vector<12x180xbf16>, vector<180x144xbf16>, vector<12x144xf32> -> vector<12x144xf32>
    %c1_29 = arith.constant 1 : index
    %c1_30 = arith.constant 1 : index
    %c0_31 = arith.constant 0 : index
    %c0_32 = arith.constant 0 : index
    %40 = vector.load %arg4[%c1_29, %c1_30, %c0_31, %c0_32] : memref<4x2x180x144xbf16, #tpu.memory_space<vmem>>, vector<1x1x180x144xbf16>
    %41 = vector.shape_cast %40 : vector<1x1x180x144xbf16> to vector<180x144xbf16>
    %cst_33 = arith.constant dense<0.000000e+00> : vector<12x144xf32>
    %42 = tpu.matmul %18, %41, %cst_33 {dimension_numbers = #tpu.dot_dimension_numbers<[1], [0], [0], [1], [0, 0, 1, 1], [], []>} : vector<12x180xbf16>, vector<180x144xbf16>, vector<12x144xf32> -> vector<12x144xf32>
    %43 = arith.addf %39, %42 : vector<12x144xf32>
    %c2_34 = arith.constant 2 : index
    %c1_35 = arith.constant 1 : index
    %c0_36 = arith.constant 0 : index
    %c0_37 = arith.constant 0 : index
    %44 = vector.load %arg4[%c2_34, %c1_35, %c0_36, %c0_37] : memref<4x2x180x144xbf16, #tpu.memory_space<vmem>>, vector<1x1x180x144xbf16>
    %45 = vector.shape_cast %44 : vector<1x1x180x144xbf16> to vector<180x144xbf16>
    %cst_38 = arith.constant dense<0.000000e+00> : vector<12x144xf32>
    %46 = tpu.matmul %19, %45, %cst_38 {dimension_numbers = #tpu.dot_dimension_numbers<[1], [0], [0], [1], [0, 0, 1, 1], [], []>} : vector<12x180xbf16>, vector<180x144xbf16>, vector<12x144xf32> -> vector<12x144xf32>
    %47 = arith.addf %43, %46 : vector<12x144xf32>
    %c3_39 = arith.constant 3 : index
    %c1_40 = arith.constant 1 : index
    %c0_41 = arith.constant 0 : index
    %c0_42 = arith.constant 0 : index
    %48 = vector.load %arg4[%c3_39, %c1_40, %c0_41, %c0_42] : memref<4x2x180x144xbf16, #tpu.memory_space<vmem>>, vector<1x1x180x144xbf16>
    %49 = vector.shape_cast %48 : vector<1x1x180x144xbf16> to vector<180x144xbf16>
    %cst_43 = arith.constant dense<0.000000e+00> : vector<12x144xf32>
    %50 = tpu.matmul %20, %49, %cst_43 {dimension_numbers = #tpu.dot_dimension_numbers<[1], [0], [0], [1], [0, 0, 1, 1], [], []>} : vector<12x180xbf16>, vector<180x144xbf16>, vector<12x144xf32> -> vector<12x144xf32>
    %51 = arith.addf %47, %50 : vector<12x144xf32>
    %52 = arith.maximumf %36, %51 : vector<12x144xf32>
    %c0_44 = arith.constant 0 : index
    %c0_45 = arith.constant 0 : index
    %c0_46 = arith.constant 0 : index
    %c0_47 = arith.constant 0 : index
    %53 = vector.load %arg4[%c0_44, %c0_45, %c0_46, %c0_47] : memref<4x2x180x144xbf16, #tpu.memory_space<vmem>>, vector<1x1x180x144xbf16>
    %54 = vector.shape_cast %53 : vector<1x1x180x144xbf16> to vector<180x144xbf16>
    %cst_48 = arith.constant dense<0.000000e+00> : vector<12x144xf32>
    %55 = tpu.matmul %18, %54, %cst_48 {dimension_numbers = #tpu.dot_dimension_numbers<[1], [0], [0], [1], [0, 0, 1, 1], [], []>} : vector<12x180xbf16>, vector<180x144xbf16>, vector<12x144xf32> -> vector<12x144xf32>
    %c1_49 = arith.constant 1 : index
    %c0_50 = arith.constant 0 : index
    %c0_51 = arith.constant 0 : index
    %c0_52 = arith.constant 0 : index
    %56 = vector.load %arg4[%c1_49, %c0_50, %c0_51, %c0_52] : memref<4x2x180x144xbf16, #tpu.memory_space<vmem>>, vector<1x1x180x144xbf16>
    %57 = vector.shape_cast %56 : vector<1x1x180x144xbf16> to vector<180x144xbf16>
    %cst_53 = arith.constant dense<0.000000e+00> : vector<12x144xf32>
    %58 = tpu.matmul %19, %57, %cst_53 {dimension_numbers = #tpu.dot_dimension_numbers<[1], [0], [0], [1], [0, 0, 1, 1], [], []>} : vector<12x180xbf16>, vector<180x144xbf16>, vector<12x144xf32> -> vector<12x144xf32>
    %59 = arith.addf %55, %58 : vector<12x144xf32>
    %c2_54 = arith.constant 2 : index
    %c0_55 = arith.constant 0 : index
    %c0_56 = arith.constant 0 : index
    %c0_57 = arith.constant 0 : index
    %60 = vector.load %arg4[%c2_54, %c0_55, %c0_56, %c0_57] : memref<4x2x180x144xbf16, #tpu.memory_space<vmem>>, vector<1x1x180x144xbf16>
    %61 = vector.shape_cast %60 : vector<1x1x180x144xbf16> to vector<180x144xbf16>
    %cst_58 = arith.constant dense<0.000000e+00> : vector<12x144xf32>
    %62 = tpu.matmul %20, %61, %cst_58 {dimension_numbers = #tpu.dot_dimension_numbers<[1], [0], [0], [1], [0, 0, 1, 1], [], []>} : vector<12x180xbf16>, vector<180x144xbf16>, vector<12x144xf32> -> vector<12x144xf32>
    %63 = arith.addf %59, %62 : vector<12x144xf32>
    %c3_59 = arith.constant 3 : index
    %c0_60 = arith.constant 0 : index
    %c0_61 = arith.constant 0 : index
    %c0_62 = arith.constant 0 : index
    %64 = vector.load %arg4[%c3_59, %c0_60, %c0_61, %c0_62] : memref<4x2x180x144xbf16, #tpu.memory_space<vmem>>, vector<1x1x180x144xbf16>
    %65 = vector.shape_cast %64 : vector<1x1x180x144xbf16> to vector<180x144xbf16>
    %cst_63 = arith.constant dense<0.000000e+00> : vector<12x144xf32>
    %66 = tpu.matmul %21, %65, %cst_63 {dimension_numbers = #tpu.dot_dimension_numbers<[1], [0], [0], [1], [0, 0, 1, 1], [], []>} : vector<12x180xbf16>, vector<180x144xbf16>, vector<12x144xf32> -> vector<12x144xf32>
    %67 = arith.addf %63, %66 : vector<12x144xf32>
    %68 = arith.maximumf %52, %67 : vector<12x144xf32>
    %c0_64 = arith.constant 0 : index
    %c1_65 = arith.constant 1 : index
    %c0_66 = arith.constant 0 : index
    %c0_67 = arith.constant 0 : index
    %69 = vector.load %arg4[%c0_64, %c1_65, %c0_66, %c0_67] : memref<4x2x180x144xbf16, #tpu.memory_space<vmem>>, vector<1x1x180x144xbf16>
    %70 = vector.shape_cast %69 : vector<1x1x180x144xbf16> to vector<180x144xbf16>
    %cst_68 = arith.constant dense<0.000000e+00> : vector<12x144xf32>
    %71 = tpu.matmul %18, %70, %cst_68 {dimension_numbers = #tpu.dot_dimension_numbers<[1], [0], [0], [1], [0, 0, 1, 1], [], []>} : vector<12x180xbf16>, vector<180x144xbf16>, vector<12x144xf32> -> vector<12x144xf32>
    %c1_69 = arith.constant 1 : index
    %c1_70 = arith.constant 1 : index
    %c0_71 = arith.constant 0 : index
    %c0_72 = arith.constant 0 : index
    %72 = vector.load %arg4[%c1_69, %c1_70, %c0_71, %c0_72] : memref<4x2x180x144xbf16, #tpu.memory_space<vmem>>, vector<1x1x180x144xbf16>
    %73 = vector.shape_cast %72 : vector<1x1x180x144xbf16> to vector<180x144xbf16>
    %cst_73 = arith.constant dense<0.000000e+00> : vector<12x144xf32>
    %74 = tpu.matmul %19, %73, %cst_73 {dimension_numbers = #tpu.dot_dimension_numbers<[1], [0], [0], [1], [0, 0, 1, 1], [], []>} : vector<12x180xbf16>, vector<180x144xbf16>, vector<12x144xf32> -> vector<12x144xf32>
    %75 = arith.addf %71, %74 : vector<12x144xf32>
    %c2_74 = arith.constant 2 : index
    %c1_75 = arith.constant 1 : index
    %c0_76 = arith.constant 0 : index
    %c0_77 = arith.constant 0 : index
    %76 = vector.load %arg4[%c2_74, %c1_75, %c0_76, %c0_77] : memref<4x2x180x144xbf16, #tpu.memory_space<vmem>>, vector<1x1x180x144xbf16>
    %77 = vector.shape_cast %76 : vector<1x1x180x144xbf16> to vector<180x144xbf16>
    %cst_78 = arith.constant dense<0.000000e+00> : vector<12x144xf32>
    %78 = tpu.matmul %20, %77, %cst_78 {dimension_numbers = #tpu.dot_dimension_numbers<[1], [0], [0], [1], [0, 0, 1, 1], [], []>} : vector<12x180xbf16>, vector<180x144xbf16>, vector<12x144xf32> -> vector<12x144xf32>
    %79 = arith.addf %75, %78 : vector<12x144xf32>
    %c3_79 = arith.constant 3 : index
    %c1_80 = arith.constant 1 : index
    %c0_81 = arith.constant 0 : index
    %c0_82 = arith.constant 0 : index
    %80 = vector.load %arg4[%c3_79, %c1_80, %c0_81, %c0_82] : memref<4x2x180x144xbf16, #tpu.memory_space<vmem>>, vector<1x1x180x144xbf16>
    %81 = vector.shape_cast %80 : vector<1x1x180x144xbf16> to vector<180x144xbf16>
    %cst_83 = arith.constant dense<0.000000e+00> : vector<12x144xf32>
    %82 = tpu.matmul %21, %81, %cst_83 {dimension_numbers = #tpu.dot_dimension_numbers<[1], [0], [0], [1], [0, 0, 1, 1], [], []>} : vector<12x180xbf16>, vector<180x144xbf16>, vector<12x144xf32> -> vector<12x144xf32>
    %83 = arith.addf %79, %82 : vector<12x144xf32>
    %84 = arith.maximumf %68, %83 : vector<12x144xf32>
    %c0_84 = arith.constant 0 : index
    %c0_85 = arith.constant 0 : index
    %85 = vector.load %arg5[%c0_84, %c0_85] : memref<1x144xf32, #tpu.memory_space<vmem>>, vector<1x144xf32>
    %86 = vector.broadcast %85 : vector<1x144xf32> to vector<12x144xf32>
    %87 = arith.addf %84, %86 : vector<12x144xf32>
    %cst_86 = arith.constant 0.000000e+00 : f32
    %88 = vector.broadcast %cst_86 : f32 to vector<12x144xf32>
    %89 = arith.maximumf %87, %88 : vector<12x144xf32>
    %90 = arith.truncf %89 : vector<12x144xf32> to vector<12x144xbf16>
    %91 = vector.extract_strided_slice %90 {offsets = [0, 0], sizes = [2, 144], strides = [1, 1]} : vector<12x144xbf16> to vector<2x144xbf16>
    %c0_87 = arith.constant 0 : index
    %c0_88 = arith.constant 0 : index
    %c0_89 = arith.constant 0 : index
    %92 = vector.load %arg6[%c0_87, %c0_88, %c0_89] : memref<6x144x432xbf16, #tpu.memory_space<vmem>>, vector<1x144x432xbf16>
    %93 = vector.shape_cast %92 : vector<1x144x432xbf16> to vector<144x432xbf16>
    %cst_90 = arith.constant dense<0.000000e+00> : vector<2x432xf32>
    %94 = tpu.matmul %91, %93, %cst_90 {dimension_numbers = #tpu.dot_dimension_numbers<[1], [0], [0], [1], [0, 0, 1, 1], [], []>} : vector<2x144xbf16>, vector<144x432xbf16>, vector<2x432xf32> -> vector<2x432xf32>
    %95 = vector.extract_strided_slice %90 {offsets = [2, 0], sizes = [2, 144], strides = [1, 1]} : vector<12x144xbf16> to vector<2x144xbf16>
    %c1_91 = arith.constant 1 : index
    %c0_92 = arith.constant 0 : index
    %c0_93 = arith.constant 0 : index
    %96 = vector.load %arg6[%c1_91, %c0_92, %c0_93] : memref<6x144x432xbf16, #tpu.memory_space<vmem>>, vector<1x144x432xbf16>
    %97 = vector.shape_cast %96 : vector<1x144x432xbf16> to vector<144x432xbf16>
    %cst_94 = arith.constant dense<0.000000e+00> : vector<2x432xf32>
    %98 = tpu.matmul %95, %97, %cst_94 {dimension_numbers = #tpu.dot_dimension_numbers<[1], [0], [0], [1], [0, 0, 1, 1], [], []>} : vector<2x144xbf16>, vector<144x432xbf16>, vector<2x432xf32> -> vector<2x432xf32>
    %99 = arith.addf %94, %98 : vector<2x432xf32>
    %100 = vector.extract_strided_slice %90 {offsets = [4, 0], sizes = [2, 144], strides = [1, 1]} : vector<12x144xbf16> to vector<2x144xbf16>
    %c2_95 = arith.constant 2 : index
    %c0_96 = arith.constant 0 : index
    %c0_97 = arith.constant 0 : index
    %101 = vector.load %arg6[%c2_95, %c0_96, %c0_97] : memref<6x144x432xbf16, #tpu.memory_space<vmem>>, vector<1x144x432xbf16>
    %102 = vector.shape_cast %101 : vector<1x144x432xbf16> to vector<144x432xbf16>
    %cst_98 = arith.constant dense<0.000000e+00> : vector<2x432xf32>
    %103 = tpu.matmul %100, %102, %cst_98 {dimension_numbers = #tpu.dot_dimension_numbers<[1], [0], [0], [1], [0, 0, 1, 1], [], []>} : vector<2x144xbf16>, vector<144x432xbf16>, vector<2x432xf32> -> vector<2x432xf32>
    %104 = arith.addf %99, %103 : vector<2x432xf32>
    %105 = vector.extract_strided_slice %90 {offsets = [6, 0], sizes = [2, 144], strides = [1, 1]} : vector<12x144xbf16> to vector<2x144xbf16>
    %c3_99 = arith.constant 3 : index
    %c0_100 = arith.constant 0 : index
    %c0_101 = arith.constant 0 : index
    %106 = vector.load %arg6[%c3_99, %c0_100, %c0_101] : memref<6x144x432xbf16, #tpu.memory_space<vmem>>, vector<1x144x432xbf16>
    %107 = vector.shape_cast %106 : vector<1x144x432xbf16> to vector<144x432xbf16>
    %cst_102 = arith.constant dense<0.000000e+00> : vector<2x432xf32>
    %108 = tpu.matmul %105, %107, %cst_102 {dimension_numbers = #tpu.dot_dimension_numbers<[1], [0], [0], [1], [0, 0, 1, 1], [], []>} : vector<2x144xbf16>, vector<144x432xbf16>, vector<2x432xf32> -> vector<2x432xf32>
    %109 = arith.addf %104, %108 : vector<2x432xf32>
    %110 = vector.extract_strided_slice %90 {offsets = [8, 0], sizes = [2, 144], strides = [1, 1]} : vector<12x144xbf16> to vector<2x144xbf16>
    %c4 = arith.constant 4 : index
    %c0_103 = arith.constant 0 : index
    %c0_104 = arith.constant 0 : index
    %111 = vector.load %arg6[%c4, %c0_103, %c0_104] : memref<6x144x432xbf16, #tpu.memory_space<vmem>>, vector<1x144x432xbf16>
    %112 = vector.shape_cast %111 : vector<1x144x432xbf16> to vector<144x432xbf16>
    %cst_105 = arith.constant dense<0.000000e+00> : vector<2x432xf32>
    %113 = tpu.matmul %110, %112, %cst_105 {dimension_numbers = #tpu.dot_dimension_numbers<[1], [0], [0], [1], [0, 0, 1, 1], [], []>} : vector<2x144xbf16>, vector<144x432xbf16>, vector<2x432xf32> -> vector<2x432xf32>
    %114 = arith.addf %109, %113 : vector<2x432xf32>
    %115 = vector.extract_strided_slice %90 {offsets = [10, 0], sizes = [2, 144], strides = [1, 1]} : vector<12x144xbf16> to vector<2x144xbf16>
    %c5 = arith.constant 5 : index
    %c0_106 = arith.constant 0 : index
    %c0_107 = arith.constant 0 : index
    %116 = vector.load %arg6[%c5, %c0_106, %c0_107] : memref<6x144x432xbf16, #tpu.memory_space<vmem>>, vector<1x144x432xbf16>
    %117 = vector.shape_cast %116 : vector<1x144x432xbf16> to vector<144x432xbf16>
    %cst_108 = arith.constant dense<0.000000e+00> : vector<2x432xf32>
    %118 = tpu.matmul %115, %117, %cst_108 {dimension_numbers = #tpu.dot_dimension_numbers<[1], [0], [0], [1], [0, 0, 1, 1], [], []>} : vector<2x144xbf16>, vector<144x432xbf16>, vector<2x432xf32> -> vector<2x432xf32>
    %119 = arith.addf %114, %118 : vector<2x432xf32>
    %c0_109 = arith.constant 0 : index
    %c0_110 = arith.constant 0 : index
    %120 = vector.load %arg7[%c0_109, %c0_110] : memref<1x432xf32, #tpu.memory_space<vmem>>, vector<1x432xf32>
    %121 = vector.broadcast %120 : vector<1x432xf32> to vector<2x432xf32>
    %122 = arith.addf %119, %121 : vector<2x432xf32>
    %cst_111 = arith.constant 0.000000e+00 : f32
    %123 = vector.broadcast %cst_111 : f32 to vector<2x432xf32>
    %124 = arith.maximumf %122, %123 : vector<2x432xf32>
    %125 = arith.truncf %124 : vector<2x432xf32> to vector<2x432xbf16>
    %c0_112 = arith.constant 0 : index
    %c0_113 = arith.constant 0 : index
    %126 = vector.load %arg8[%c0_112, %c0_113] : memref<432x16xbf16, #tpu.memory_space<vmem>>, vector<432x16xbf16>
    %cst_114 = arith.constant dense<0.000000e+00> : vector<2x16xf32>
    %127 = tpu.matmul %125, %126, %cst_114 {dimension_numbers = #tpu.dot_dimension_numbers<[1], [0], [0], [1], [0, 0, 1, 1], [], []>} : vector<2x432xbf16>, vector<432x16xbf16>, vector<2x16xf32> -> vector<2x16xf32>
    %c0_115 = arith.constant 0 : index
    %c0_116 = arith.constant 0 : index
    %128 = vector.load %arg9[%c0_115, %c0_116] : memref<1x16xf32, #tpu.memory_space<vmem>>, vector<1x16xf32>
    %129 = vector.broadcast %128 : vector<1x16xf32> to vector<2x16xf32>
    %130 = arith.addf %127, %129 : vector<2x16xf32>
    %c0_117 = arith.constant 0 : index
    %c0_118 = arith.constant 0 : index
    %c0_119 = arith.constant 0 : index
    %131 = vector.load %arg10[%c0_117, %c0_118, %c0_119] : memref<1x2x16xf32, #tpu.memory_space<vmem>>, vector<1x2x16xf32>
    %132 = vector.shape_cast %131 : vector<1x2x16xf32> to vector<2x16xf32>
    %133 = vector.shape_cast %130 : vector<2x16xf32> to vector<1x2x16xf32>
    tpu.vector_store %arg10[%c0_117, %c0_118, %c0_119], %133 {strides = array<i32>} : memref<1x2x16xf32, #tpu.memory_space<vmem>>, vector<1x2x16xf32>,
    return
  }
  func.func @transform_0(%arg0: i32) -> (i32, i32, i32) {
    %c0_i32 = arith.constant 0 : i32
    %c0_i32_0 = arith.constant 0 : i32
    %c0_i32_1 = arith.constant 0 : i32
    return %arg0, %c0_i32, %c0_i32_0 : i32, i32, i32
  }
  func.func @transform_1(%arg0: i32) -> (i32, i32) {
    %c0_i32 = arith.constant 0 : i32
    %c0_i32_0 = arith.constant 0 : i32
    %c0_i32_1 = arith.constant 0 : i32
    return %c0_i32, %c0_i32_0 : i32, i32
  }
  func.func @transform_2(%arg0: i32) -> (i32, i32) {
    %c0_i32 = arith.constant 0 : i32
    %c0_i32_0 = arith.constant 0 : i32
    %c0_i32_1 = arith.constant 0 : i32
    return %c0_i32, %c0_i32_0 : i32, i32
  }
  func.func @transform_3(%arg0: i32) -> (i32, i32, i32, i32) {
    %c0_i32 = arith.constant 0 : i32
    %c0_i32_0 = arith.constant 0 : i32
    %c0_i32_1 = arith.constant 0 : i32
    %c0_i32_2 = arith.constant 0 : i32
    %c0_i32_3 = arith.constant 0 : i32
    return %c0_i32, %c0_i32_0, %c0_i32_1, %c0_i32_2 : i32, i32, i32, i32
  }
  func.func @transform_4(%arg0: i32) -> (i32, i32) {
    %c0_i32 = arith.constant 0 : i32
    %c0_i32_0 = arith.constant 0 : i32
    %c0_i32_1 = arith.constant 0 : i32
    return %c0_i32, %c0_i32_0 : i32, i32
  }
  func.func @transform_5(%arg0: i32) -> (i32, i32, i32) {
    %c0_i32 = arith.constant 0 : i32
    %c0_i32_0 = arith.constant 0 : i32
    %c0_i32_1 = arith.constant 0 : i32
    %c0_i32_2 = arith.constant 0 : i32
    return %c0_i32, %c0_i32_0, %c0_i32_1 : i32, i32, i32
  }
  func.func @transform_6(%arg0: i32) -> (i32, i32) {
    %c0_i32 = arith.constant 0 : i32
    %c0_i32_0 = arith.constant 0 : i32
    %c0_i32_1 = arith.constant 0 : i32
    return %c0_i32, %c0_i32_0 : i32, i32
  }
  func.func @transform_7(%arg0: i32) -> (i32, i32) {
    %c0_i32 = arith.constant 0 : i32
    %c0_i32_0 = arith.constant 0 : i32
    %c0_i32_1 = arith.constant 0 : i32
    return %c0_i32, %c0_i32_0 : i32, i32
  }
  func.func @transform_8(%arg0: i32) -> (i32, i32) {
    %c0_i32 = arith.constant 0 : i32
    %c0_i32_0 = arith.constant 0 : i32
    %c0_i32_1 = arith.constant 0 : i32
    return %c0_i32, %c0_i32_0 : i32, i32
  }
  func.func @transform_9(%arg0: i32) -> (i32, i32, i32) {
    %c0_i32 = arith.constant 0 : i32
    %c0_i32_0 = arith.constant 0 : i32
    %c0_i32_1 = arith.constant 0 : i32
    return %arg0, %c0_i32, %c0_i32_0 : i32, i32, i32
  }
}

</mosaic_0001>

<llo_original>
// kernel: _lambda_.1
$region0: #{_lambda_.1}
  #allocation0 [shape = 'u32[]', space=smem, size = 0x4, offset = 0x4, fixed_abs, tag = 'smem constant byte address 0x4 - core index']
  #allocation1 [shape = 'u32[72,128]{1,0:T(1,128)}', space=vmem, size = 0x9000, scoped, tag = 'internal scratch']
  %s0 = inlined_call_operand.vmem [shape: bf16[1,128,735], index: 0, kind: input, shape index: {}]
  %s1 = inlined_call_operand.vmem [shape: bf16[735,180], index: 1, kind: input, shape index: {}]
  %s2 = inlined_call_operand.vmem [shape: f32[1,180], index: 2, kind: input, shape index: {}]
  %s3 = inlined_call_operand.vmem [shape: bf16[4,2,180,144], index: 3, kind: input, shape index: {}]
  %s4 = inlined_call_operand.vmem [shape: f32[1,144], index: 4, kind: input, shape index: {}]
  %s5 = inlined_call_operand.vmem [shape: bf16[6,144,432], index: 5, kind: input, shape index: {}]
  %s6 = inlined_call_operand.vmem [shape: f32[1,432], index: 6, kind: input, shape index: {}]
  %s7 = inlined_call_operand.vmem [shape: bf16[432,16], index: 7, kind: input, shape index: {}]
  %s8 = inlined_call_operand.vmem [shape: f32[1,16], index: 8, kind: input, shape index: {}]
  %s9 = inlined_call_operand.vmem [shape: f32[1,2,16], index: 9, kind: output, shape index: {}]
  %s10 = sld [smem:[#allocation0]]
  $region46: #{_lambda_.1} parent=0
    _
  %s12 = ssub.s32 1, %s10
  %s13 = scalar_select 0, %s12, %s10
  // Predicated region
  $region2: #{_lambda_.1} parent=0 // pred_check
    _
  $region3: #{_lambda_.1} parent=0 // pred_check_branch
    %15 = sbr.rel (0) target = $region5
  $region4: #{_lambda_.1} parent=0 // pred_region
    _
  $region5: #{_lambda_.1} parent=0 // pred_fallthru
    _
  // Predicated region
  $region6: #{_lambda_.1} parent=0 // pred_check
    _
  $region7: #{_lambda_.1} parent=0 // pred_check_branch
    %17 = sbr.rel (0) target = $region9
  $region8: #{_lambda_.1} parent=0 // pred_region
    _
  $region9: #{_lambda_.1} parent=0 // pred_fallthru
    _
  // Predicated region
  $region10: #{_lambda_.1} parent=0 // pred_check
    _
  $region11: #{_lambda_.1} parent=0 // pred_check_branch
    %19 = sbr.rel (0) target = $region13
  $region12: #{_lambda_.1} parent=0 // pred_region
    _
  $region13: #{_lambda_.1} parent=0 // pred_fallthru
    _
  // Predicated region
  $region14: #{_lambda_.1} parent=0 // pred_check
    _
  $region15: #{_lambda_.1} parent=0 // pred_check_branch
    %21 = sbr.rel (0) target = $region17
  $region16: #{_lambda_.1} parent=0 // pred_region
    _
  $region17: #{_lambda_.1} parent=0 // pred_fallthru
    _
  // Predicated region
  $region18: #{_lambda_.1} parent=0 // pred_check
    _
  $region19: #{_lambda_.1} parent=0 // pred_check_branch
    %23 = sbr.rel (0) target = $region21
  $region20: #{_lambda_.1} parent=0 // pred_region
    _
  $region21: #{_lambda_.1} parent=0 // pred_fallthru
    _
  // Predicated region
  $region22: #{_lambda_.1} parent=0 // pred_check
    _
  $region23: #{_lambda_.1} parent=0 // pred_check_branch
    %25 = sbr.rel (0) target = $region25
  $region24: #{_lambda_.1} parent=0 // pred_region
    _
  $region25: #{_lambda_.1} parent=0 // pred_fallthru
    _
  // Predicated region
  $region26: #{_lambda_.1} parent=0 // pred_check
    _
  $region27: #{_lambda_.1} parent=0 // pred_check_branch
    %27 = sbr.rel (0) target = $region29
  $region28: #{_lambda_.1} parent=0 // pred_region
    _
  $region29: #{_lambda_.1} parent=0 // pred_fallthru
    _
  // Predicated region
  $region30: #{_lambda_.1} parent=0 // pred_check
    _
  $region31: #{_lambda_.1} parent=0 // pred_check_branch
    %29 = sbr.rel (0) target = $region33
  $region32: #{_lambda_.1} parent=0 // pred_region
    _
  $region33: #{_lambda_.1} parent=0 // pred_fallthru
    _
  // Predicated region
  $region34: #{_lambda_.1} parent=0 // pred_check
    _
  $region35: #{_lambda_.1} parent=0 // pred_check_branch
    %31 = sbr.rel (0) target = $region37
  $region36: #{_lambda_.1} parent=0 // pred_region
    _
  $region37: #{_lambda_.1} parent=0 // pred_fallthru
    _
  %v33 = vld [vmem:[%s0] sm:$0xff]
  %v34 = vld [vmem:[%s0 + $0x8] sm:$0xff]
  %v35 = vld [vmem:[%s0 + $0x10] sm:$0xff]
  %v36 = vld [vmem:[%s0 + $0x18] sm:$0xff]
  %v37 = vld [vmem:[%s0 + $0x20] sm:$0xff]
  %v38 = vld [vmem:[%s0 + $0x28] sm:$0xff]
  %v39 = vld [vmem:[%s0 + $0x30] sm:$0xff]
  %v40 = vld [vmem:[%s0 + $0x38] sm:$0xff]
  %v41 = vld [vmem:[%s0 + $0x40] sm:$0xff]
  %v42 = vld [vmem:[%s0 + $0x48] sm:$0xff]
  %v43 = vld [vmem:[%s0 + $0x50] sm:$0xff]
  %v44 = vld [vmem:[%s0 + $0x58] sm:$0xff]
  %v45 = vld [vmem:[%s0 + $0x60] sm:$0xff]
  %v46 = vld [vmem:[%s0 + $0x68] sm:$0xff]
  %v47 = vld [vmem:[%s0 + $0x70] sm:$0xff]
  %v48 = vld [vmem:[%s0 + $0x78] sm:$0xff]
  %v49 = vld [vmem:[%s0 + $0x80] sm:$0xff]
  %v50 = vld [vmem:[%s0 + $0x88] sm:$0xff]
  %v51 = vld [vmem:[%s0 + $0x90] sm:$0xff]
  %v52 = vld [vmem:[%s0 + $0x98] sm:$0xff]
  %v53 = vld [vmem:[%s0 + $0xa0] sm:$0xff]
  %v54 = vld [vmem:[%s0 + $0xa8] sm:$0xff]
  %v55 = vld [vmem:[%s0 + $0xb0] sm:$0xff]
  %v56 = vld [vmem:[%s0 + $0xb8] sm:$0xff]
  %v57 = vld [vmem:[%s0 + $0xc0] sm:$0xff]
  %v58 = vld [vmem:[%s0 + $0xc8] sm:$0xff]
  %v59 = vld [vmem:[%s0 + $0xd0] sm:$0xff]
  %v60 = vld [vmem:[%s0 + $0xd8] sm:$0xff]
  %v61 = vld [vmem:[%s0 + $0xe0] sm:$0xff]
  %v62 = vld [vmem:[%s0 + $0xe8] sm:$0xff]
  %v63 = vld [vmem:[%s0 + $0xf0] sm:$0xff]
  %v64 = vld [vmem:[%s0 + $0xf8] sm:$0xff]
  %v65 = vld [vmem:[%s0 + $0x100] sm:$0xff]
  %v66 = vld [vmem:[%s0 + $0x108] sm:$0xff]
  %v67 = vld [vmem:[%s0 + $0x110] sm:$0xff]
  %v68 = vld [vmem:[%s0 + $0x118] sm:$0xff]
  %v69 = vld [vmem:[%s0 + $0x120] sm:$0xff]
  %v70 = vld [vmem:[%s0 + $0x128] sm:$0xff]
  %v71 = vld [vmem:[%s0 + $0x130] sm:$0xff]
  %v72 = vld [vmem:[%s0 + $0x138] sm:$0xff]
  %v73 = vld [vmem:[%s0 + $0x140] sm:$0xff]
  %v74 = vld [vmem:[%s0 + $0x148] sm:$0xff]
  %v75 = vld [vmem:[%s0 + $0x150] sm:$0xff]
  %v76 = vld [vmem:[%s0 + $0x158] sm:$0xff]
  %v77 = vld [vmem:[%s0 + $0x160] sm:$0xff]
  %v78 = vld [vmem:[%s0 + $0x168] sm:$0xff]
  %v79 = vld [vmem:[%s0 + $0x170] sm:$0xff]
  %v80 = vld [vmem:[%s0 + $0x178] sm:$0xff]
  %v81 = vld [vmem:[%s1] sm:$0xff]
  %v82 = vld [vmem:[%s1 + $0x8] sm:$0xff]
  %v83 = vld [vmem:[%s1 + $0x10] sm:$0xff]
  %v84 = vld [vmem:[%s1 + $0x18] sm:$0xff]
  %v85 = vld [vmem:[%s1 + $0x20] sm:$0xff]
  %v86 = vld [vmem:[%s1 + $0x28] sm:$0xff]
  %v87 = vld [vmem:[%s1 + $0x30] sm:$0xff]
  %v88 = vld [vmem:[%s1 + $0x38] sm:$0xff]
  %v89 = vld [vmem:[%s1 + $0x40] sm:$0xff]
  %v90 = vld [vmem:[%s1 + $0x48] sm:$0xff]
  %v91 = vld [vmem:[%s1 + $0x50] sm:$0xff]
  %v92 = vld [vmem:[%s1 + $0x58] sm:$0xff]
  %v93 = vld [vmem:[%s1 + $0x60] sm:$0xff]
  %v94 = vld [vmem:[%s1 + $0x68] sm:$0xff]
  %v95 = vld [vmem:[%s1 + $0x70] sm:$0xff]
  %v96 = vld [vmem:[%s1 + $0x78] sm:$0xff]
  %v97 = vld [vmem:[%s1 + $0x80] sm:$0xff]
  %v98 = vld [vmem:[%s1 + $0x88] sm:$0xff]
  %v99 = vld [vmem:[%s1 + $0x90] sm:$0xff]
  %v100 = vld [vmem:[%s1 + $0x98] sm:$0xff]
  %v101 = vld [vmem:[%s1 + $0xa0] sm:$0xff]
  %v102 = vld [vmem:[%s1 + $0xa8] sm:$0xff]
  %v103 = vld [vmem:[%s1 + $0xb0] sm:$0xff]
  %v104 = vld [vmem:[%s1 + $0xb8] sm:$0xff]
  %v105 = vld [vmem:[%s1 + $0xc0] sm:$0xff]
  %v106 = vld [vmem:[%s1 + $0xc8] sm:$0xff]
  %v107 = vld [vmem:[%s1 + $0xd0] sm:$0xff]
  %v108 = vld [vmem:[%s1 + $0xd8] sm:$0xff]
  %v109 = vld [vmem:[%s1 + $0xe0] sm:$0xff]
  %v110 = vld [vmem:[%s1 + $0xe8] sm:$0xff]
  %v111 = vld [vmem:[%s1 + $0xf0] sm:$0xff]
  %v112 = vld [vmem:[%s1 + $0xf8] sm:$0xff]
  %v113 = vld [vmem:[%s1 + $0x100] sm:$0xff]
  %v114 = vld [vmem:[%s1 + $0x108] sm:$0xff]
  %v115 = vld [vmem:[%s1 + $0x110] sm:$0xff]
  %v116 = vld [vmem:[%s1 + $0x118] sm:$0xff]
  %v117 = vld [vmem:[%s1 + $0x120] sm:$0xff]
  %v118 = vld [vmem:[%s1 + $0x128] sm:$0xff]
  %v119 = vld [vmem:[%s1 + $0x130] sm:$0xff]
  %v120 = vld [vmem:[%s1 + $0x138] sm:$0xff]
  %v121 = vld [vmem:[%s1 + $0x140] sm:$0xff]
  %v122 = vld [vmem:[%s1 + $0x148] sm:$0xff]
  %v123 = vld [vmem:[%s1 + $0x150] sm:$0xff]
  %v124 = vld [vmem:[%s1 + $0x158] sm:$0xff]
  %v125 = vld [vmem:[%s1 + $0x160] sm:$0xff]
  %v126 = vld [vmem:[%s1 + $0x168] sm:$0xff]
  %v127 = vld [vmem:[%s1 + $0x170] sm:$0xff]
  %v128 = vld [vmem:[%s1 + $0x178] sm:$0xff]
  %v129 = vld [vmem:[%s1 + $0x180] sm:$0xff]
  %v130 = vld [vmem:[%s1 + $0x188] sm:$0xff]
  %v131 = vld [vmem:[%s1 + $0x190] sm:$0xff]
  %v132 = vld [vmem:[%s1 + $0x198] sm:$0xff]
  %v133 = vld [vmem:[%s1 + $0x1a0] sm:$0xff]
  %v134 = vld [vmem:[%s1 + $0x1a8] sm:$0xff]
  %v135 = vld [vmem:[%s1 + $0x1b0] sm:$0xff]
  %v136 = vld [vmem:[%s1 + $0x1b8] sm:$0xff]
  %v137 = vld [vmem:[%s1 + $0x1c0] sm:$0xff]
  %v138 = vld [vmem:[%s1 + $0x1c8] sm:$0xff]
  %v139 = vld [vmem:[%s1 + $0x1d0] sm:$0xff]
  %v140 = vld [vmem:[%s1 + $0x1d8] sm:$0xff]
  %v141 = vld [vmem:[%s1 + $0x1e0] sm:$0xff]
  %v142 = vld [vmem:[%s1 + $0x1e8] sm:$0xff]
  %v143 = vld [vmem:[%s1 + $0x1f0] sm:$0xff]
  %v144 = vld [vmem:[%s1 + $0x1f8] sm:$0xff]
  %v145 = vld [vmem:[%s1 + $0x200] sm:$0xff]
  %v146 = vld [vmem:[%s1 + $0x208] sm:$0xff]
  %v147 = vld [vmem:[%s1 + $0x210] sm:$0xff]
  %v148 = vld [vmem:[%s1 + $0x218] sm:$0xff]
  %v149 = vld [vmem:[%s1 + $0x220] sm:$0xff]
  %v150 = vld [vmem:[%s1 + $0x228] sm:$0xff]
  %v151 = vld [vmem:[%s1 + $0x230] sm:$0xff]
  %v152 = vld [vmem:[%s1 + $0x238] sm:$0xff]
  %v153 = vld [vmem:[%s1 + $0x240] sm:$0xff]
  %v154 = vld [vmem:[%s1 + $0x248] sm:$0xff]
  %v155 = vld [vmem:[%s1 + $0x250] sm:$0xff]
  %v156 = vld [vmem:[%s1 + $0x258] sm:$0xff]
  %v157 = vld [vmem:[%s1 + $0x260] sm:$0xff]
  %v158 = vld [vmem:[%s1 + $0x268] sm:$0xff]
  %v159 = vld [vmem:[%s1 + $0x270] sm:$0xff]
  %v160 = vld [vmem:[%s1 + $0x278] sm:$0xff]
  %v161 = vld [vmem:[%s1 + $0x280] sm:$0xff]
  %v162 = vld [vmem:[%s1 + $0x288] sm:$0xff]
  %v163 = vld [vmem:[%s1 + $0x290] sm:$0xff]
  %v164 = vld [vmem:[%s1 + $0x298] sm:$0xff]
  %v165 = vld [vmem:[%s1 + $0x2a0] sm:$0xff]
  %v166 = vld [vmem:[%s1 + $0x2a8] sm:$0xff]
  %v167 = vld [vmem:[%s1 + $0x2b0] sm:$0xff]
  %v168 = vld [vmem:[%s1 + $0x2b8] sm:$0xff]
  %v169 = vld [vmem:[%s1 + $0x2c0] sm:$0xff]
  %v170 = vld [vmem:[%s1 + $0x2c8] sm:$0xff]
  %v171 = vld [vmem:[%s1 + $0x2d0] sm:$0xff]
  %v172 = vld [vmem:[%s1 + $0x2d8] sm:$0xff]
  %v221 = vunpack.c.l.b16 %v33
  %v222 = vunpack.c.h.b16 %v33
  %v223 = vunpack.c.l.b16 %v34
  %v224 = vunpack.c.h.b16 %v34
  %v225 = vunpack.c.l.b16 %v35
  %v226 = vunpack.c.h.b16 %v35
  %v227 = vunpack.c.l.b16 %v36
  %v228 = vunpack.c.h.b16 %v36
  %v229 = vunpack.c.l.b16 %v37
  %v230 = vunpack.c.h.b16 %v37
  %v231 = vunpack.c.l.b16 %v38
  %v232 = vunpack.c.h.b16 %v38
  %v233 = vunpack.c.l.b16 %v39
  %v234 = vunpack.c.h.b16 %v39
  %v235 = vunpack.c.l.b16 %v40
  %v236 = vunpack.c.h.b16 %v40
  %v237 = vunpack.c.l.b16 %v41
  %v238 = vunpack.c.h.b16 %v41
  %v239 = vunpack.c.l.b16 %v42
  %v240 = vunpack.c.h.b16 %v42
  %v241 = vunpack.c.l.b16 %v43
  %v242 = vunpack.c.h.b16 %v43
  %v243 = vunpack.c.l.b16 %v44
  %v244 = vunpack.c.h.b16 %v44
  %v245 = vunpack.c.l.b16 %v45
  %v246 = vunpack.c.h.b16 %v45
  %v247 = vunpack.c.l.b16 %v46
  %v248 = vunpack.c.h.b16 %v46
  %v249 = vunpack.c.l.b16 %v47
  %v250 = vunpack.c.h.b16 %v47
  %v251 = vunpack.c.l.b16 %v48
  %v252 = vunpack.c.h.b16 %v48
  %v253 = vunpack.c.l.b16 %v49
  %v254 = vunpack.c.h.b16 %v49
  %v255 = vunpack.c.l.b16 %v50
  %v256 = vunpack.c.h.b16 %v50
  %v257 = vunpack.c.l.b16 %v51
  %v258 = vunpack.c.h.b16 %v51
  %v259 = vunpack.c.l.b16 %v52
  %v260 = vunpack.c.h.b16 %v52
  %v261 = vunpack.c.l.b16 %v53
  %v262 = vunpack.c.h.b16 %v53
  %v263 = vunpack.c.l.b16 %v54
  %v264 = vunpack.c.h.b16 %v54
  %v265 = vunpack.c.l.b16 %v55
  %v266 = vunpack.c.h.b16 %v55
  %v267 = vunpack.c.l.b16 %v56
  %v268 = vunpack.c.h.b16 %v56
  %v269 = vunpack.c.l.b16 %v57
  %v270 = vunpack.c.h.b16 %v57
  %v271 = vunpack.c.l.b16 %v58
  %v272 = vunpack.c.h.b16 %v58
  %v273 = vunpack.c.l.b16 %v59
  %v274 = vunpack.c.h.b16 %v59
  %v275 = vunpack.c.l.b16 %v60
  %v276 = vunpack.c.h.b16 %v60
  %v277 = vunpack.c.l.b16 %v61
  %v278 = vunpack.c.h.b16 %v61
  %v279 = vunpack.c.l.b16 %v62
  %v280 = vunpack.c.h.b16 %v62
  %v281 = vunpack.c.l.b16 %v63
  %v282 = vunpack.c.h.b16 %v63
  %v283 = vunpack.c.l.b16 %v64
  %v284 = vunpack.c.h.b16 %v64
  %v285 = vunpack.c.l.b16 %v65
  %v286 = vunpack.c.h.b16 %v65
  %v287 = vunpack.c.l.b16 %v66
  %v288 = vunpack.c.h.b16 %v66
  %v289 = vunpack.c.l.b16 %v67
  %v290 = vunpack.c.h.b16 %v67
  %v291 = vunpack.c.l.b16 %v68
  %v292 = vunpack.c.h.b16 %v68
  %v293 = vunpack.c.l.b16 %v69
  %v294 = vunpack.c.h.b16 %v69
  %v295 = vunpack.c.l.b16 %v70
  %v296 = vunpack.c.h.b16 %v70
  %v297 = vunpack.c.l.b16 %v71
  %v298 = vunpack.c.h.b16 %v71
  %v299 = vunpack.c.l.b16 %v72
  %v300 = vunpack.c.h.b16 %v72
  %v301 = vunpack.c.l.b16 %v73
  %v302 = vunpack.c.h.b16 %v73
  %v303 = vunpack.c.l.b16 %v74
  %v304 = vunpack.c.h.b16 %v74
  %v305 = vunpack.c.l.b16 %v75
  %v306 = vunpack.c.h.b16 %v75
  %v307 = vunpack.c.l.b16 %v76
  %v308 = vunpack.c.h.b16 %v76
  %v309 = vunpack.c.l.b16 %v77
  %v310 = vunpack.c.h.b16 %v77
  %v311 = vunpack.c.l.b16 %v78
  %v312 = vunpack.c.h.b16 %v78
  %v313 = vunpack.c.l.b16 %v79
  %v314 = vunpack.c.h.b16 %v79
  %v315 = vunpack.c.l.b16 %v80
  %v316 = vunpack.c.h.b16 %v80
  %v317 = vpack.c.b16 %v227, %v221
  %v318 = vpack.c.b16 %v228, %v222
  %v319 = vpack.c.b16 %v229, %v223
  %v320 = vpack.c.b16 %v230, %v224
  %v321 = vpack.c.b16 %v231, %v225
  %v322 = vpack.c.b16 %v232, %v226
  %v323 = vpack.c.b16 %v239, %v233
  %v324 = vpack.c.b16 %v240, %v234
  %v325 = vpack.c.b16 %v241, %v235
  %v326 = vpack.c.b16 %v242, %v236
  %v327 = vpack.c.b16 %v243, %v237
  %v328 = vpack.c.b16 %v244, %v238
  %v329 = vpack.c.b16 %v251, %v245
  %v330 = vpack.c.b16 %v252, %v246
  %v331 = vpack.c.b16 %v253, %v247
  %v332 = vpack.c.b16 %v254, %v248
  %v333 = vpack.c.b16 %v255, %v249
  %v334 = vpack.c.b16 %v256, %v250
  %v335 = vpack.c.b16 %v263, %v257
  %v336 = vpack.c.b16 %v264, %v258
  %v337 = vpack.c.b16 %v265, %v259
  %v338 = vpack.c.b16 %v266, %v260
  %v339 = vpack.c.b16 %v267, %v261
  %v340 = vpack.c.b16 %v268, %v262
  %v341 = vpack.c.b16 %v275, %v269
  %v342 = vpack.c.b16 %v276, %v270
  %v343 = vpack.c.b16 %v277, %v271
  %v344 = vpack.c.b16 %v278, %v272
  %v345 = vpack.c.b16 %v279, %v273
  %v346 = vpack.c.b16 %v280, %v274
  %v347 = vpack.c.b16 %v287, %v281
  %v348 = vpack.c.b16 %v288, %v282
  %v349 = vpack.c.b16 %v289, %v283
  %v350 = vpack.c.b16 %v290, %v284
  %v351 = vpack.c.b16 %v291, %v285
  %v352 = vpack.c.b16 %v292, %v286
  %v353 = vpack.c.b16 %v299, %v293
  %v354 = vpack.c.b16 %v300, %v294
  %v355 = vpack.c.b16 %v301, %v295
  %v356 = vpack.c.b16 %v302, %v296
  %v357 = vpack.c.b16 %v303, %v297
  %v358 = vpack.c.b16 %v304, %v298
  %v359 = vpack.c.b16 %v311, %v305
  %v360 = vpack.c.b16 %v312, %v306
  %v361 = vpack.c.b16 %v313, %v307
  %v362 = vpack.c.b16 %v314, %v308
  %v363 = vpack.c.b16 %v315, %v309
  %v364 = vpack.c.b16 %v316, %v310
  %v497 = vunpack.c.l.b16 %v81
  %v498 = vunpack.c.h.b16 %v81
  %v499 = vunpack.c.l.b16 %v82
  %v500 = vunpack.c.h.b16 %v82
  %v501 = vunpack.c.l.b16 %v83
  %v502 = vunpack.c.h.b16 %v83
  %v503 = vunpack.c.l.b16 %v84
  %v504 = vunpack.c.h.b16 %v84
  %v505 = vunpack.c.l.b16 %v85
  %v506 = vunpack.c.h.b16 %v85
  %v507 = vunpack.c.l.b16 %v86
  %v508 = vunpack.c.h.b16 %v86
  %v509 = vunpack.c.l.b16 %v87
  %v510 = vunpack.c.h.b16 %v87
  %v511 = vunpack.c.l.b16 %v88
  %v512 = vunpack.c.h.b16 %v88
  %v513 = vunpack.c.l.b16 %v89
  %v514 = vunpack.c.h.b16 %v89
  %v515 = vunpack.c.l.b16 %v90
  %v516 = vunpack.c.h.b16 %v90
  %v517 = vunpack.c.l.b16 %v91
  %v518 = vunpack.c.h.b16 %v91
  %v519 = vunpack.c.l.b16 %v92
  %v520 = vunpack.c.h.b16 %v92
  %v521 = vunpack.c.l.b16 %v93
  %v522 = vunpack.c.h.b16 %v93
  %v523 = vunpack.c.l.b16 %v94
  %v524 = vunpack.c.h.b16 %v94
  %v525 = vunpack.c.l.b16 %v95
  %v526 = vunpack.c.h.b16 %v95
  %v527 = vunpack.c.l.b16 %v96
  %v528 = vunpack.c.h.b16 %v96
  %v529 = vunpack.c.l.b16 %v97
  %v530 = vunpack.c.h.b16 %v97
  %v531 = vunpack.c.l.b16 %v98
  %v532 = vunpack.c.h.b16 %v98
  %v533 = vunpack.c.l.b16 %v99
  %v534 = vunpack.c.h.b16 %v99
  %v535 = vunpack.c.l.b16 %v100
  %v536 = vunpack.c.h.b16 %v100
  %v537 = vunpack.c.l.b16 %v101
  %v538 = vunpack.c.h.b16 %v101
  %v539 = vunpack.c.l.b16 %v102
  %v540 = vunpack.c.h.b16 %v102
  %v541 = vunpack.c.l.b16 %v103
  %v542 = vunpack.c.h.b16 %v103
  %v543 = vunpack.c.l.b16 %v104
  %v544 = vunpack.c.h.b16 %v104
  %v545 = vunpack.c.l.b16 %v105
  %v546 = vunpack.c.h.b16 %v105
  %v547 = vunpack.c.l.b16 %v106
  %v548 = vunpack.c.h.b16 %v106
  %v549 = vunpack.c.l.b16 %v107
  %v550 = vunpack.c.h.b16 %v107
  %v551 = vunpack.c.l.b16 %v108
  %v552 = vunpack.c.h.b16 %v108
  %v553 = vunpack.c.l.b16 %v109
  %v554 = vunpack.c.h.b16 %v109
  %v555 = vunpack.c.l.b16 %v110
  %v556 = vunpack.c.h.b16 %v110
  %v557 = vunpack.c.l.b16 %v111
  %v558 = vunpack.c.h.b16 %v111
  %v559 = vunpack.c.l.b16 %v112
  %v560 = vunpack.c.h.b16 %v112
  %v561 = vunpack.c.l.b16 %v113
  %v562 = vunpack.c.h.b16 %v113
  %v563 = vunpack.c.l.b16 %v114
  %v564 = vunpack.c.h.b16 %v114
  %v565 = vunpack.c.l.b16 %v115
  %v566 = vunpack.c.h.b16 %v115
  %v567 = vunpack.c.l.b16 %v116
  %v568 = vunpack.c.h.b16 %v116
  %v569 = vunpack.c.l.b16 %v117
  %v570 = vunpack.c.h.b16 %v117
  %v571 = vunpack.c.l.b16 %v118
  %v572 = vunpack.c.h.b16 %v118
  %v573 = vunpack.c.l.b16 %v119
  %v574 = vunpack.c.h.b16 %v119
  %v575 = vunpack.c.l.b16 %v120
  %v576 = vunpack.c.h.b16 %v120
  %v577 = vunpack.c.l.b16 %v121
  %v578 = vunpack.c.h.b16 %v121
  %v579 = vunpack.c.l.b16 %v122
  %v580 = vunpack.c.h.b16 %v122
  %v581 = vunpack.c.l.b16 %v123
  %v582 = vunpack.c.h.b16 %v123
  %v583 = vunpack.c.l.b16 %v124
  %v584 = vunpack.c.h.b16 %v124
  %v585 = vunpack.c.l.b16 %v125
  %v586 = vunpack.c.h.b16 %v125
  %v587 = vunpack.c.l.b16 %v126
  %v588 = vunpack.c.h.b16 %v126
  %v589 = vunpack.c.l.b16 %v127
  %v590 = vunpack.c.h.b16 %v127
  %v591 = vunpack.c.l.b16 %v128
  %v592 = vunpack.c.h.b16 %v128
  %v593 = vunpack.c.l.b16 %v129
  %v594 = vunpack.c.h.b16 %v129
  %v595 = vunpack.c.l.b16 %v130
  %v596 = vunpack.c.h.b16 %v130
  %v597 = vunpack.c.l.b16 %v131
  %v598 = vunpack.c.h.b16 %v131
  %v599 = vunpack.c.l.b16 %v132
  %v600 = vunpack.c.h.b16 %v132
  %v601 = vunpack.c.l.b16 %v133
  %v602 = vunpack.c.h.b16 %v133
  %v603 = vunpack.c.l.b16 %v134
  %v604 = vunpack.c.h.b16 %v134
  %v605 = vunpack.c.l.b16 %v135
  %v606 = vunpack.c.h.b16 %v135
  %v607 = vunpack.c.l.b16 %v136
  %v608 = vunpack.c.h.b16 %v136
  %v609 = vunpack.c.l.b16 %v137
  %v610 = vunpack.c.h.b16 %v137
  %v611 = vunpack.c.l.b16 %v138
  %v612 = vunpack.c.h.b16 %v138
  %v613 = vunpack.c.l.b16 %v139
  %v614 = vunpack.c.h.b16 %v139
  %v615 = vunpack.c.l.b16 %v140
  %v616 = vunpack.c.h.b16 %v140
  %v617 = vunpack.c.l.b16 %v141
  %v618 = vunpack.c.h.b16 %v141
  %v619 = vunpack.c.l.b16 %v142
  %v620 = vunpack.c.h.b16 %v142
  %v621 = vunpack.c.l.b16 %v143
  %v622 = vunpack.c.h.b16 %v143
  %v623 = vunpack.c.l.b16 %v144
  %v624 = vunpack.c.h.b16 %v144
  %v625 = vunpack.c.l.b16 %v145
  %v626 = vunpack.c.h.b16 %v145
  %v627 = vunpack.c.l.b16 %v146
  %v628 = vunpack.c.h.b16 %v146
  %v629 = vunpack.c.l.b16 %v147
  %v630 = vunpack.c.h.b16 %v147
  %v631 = vunpack.c.l.b16 %v148
  %v632 = vunpack.c.h.b16 %v148
  %v633 = vunpack.c.l.b16 %v149
  %v634 = vunpack.c.h.b16 %v149
  %v635 = vunpack.c.l.b16 %v150
  %v636 = vunpack.c.h.b16 %v150
  %v637 = vunpack.c.l.b16 %v151
  %v638 = vunpack.c.h.b16 %v151
  %v639 = vunpack.c.l.b16 %v152
  %v640 = vunpack.c.h.b16 %v152
  %v641 = vunpack.c.l.b16 %v153
  %v642 = vunpack.c.h.b16 %v153
  %v643 = vunpack.c.l.b16 %v154
  %v644 = vunpack.c.h.b16 %v154
  %v645 = vunpack.c.l.b16 %v155
  %v646 = vunpack.c.h.b16 %v155
  %v647 = vunpack.c.l.b16 %v156
  %v648 = vunpack.c.h.b16 %v156
  %v649 = vunpack.c.l.b16 %v157
  %v650 = vunpack.c.h.b16 %v157
  %v651 = vunpack.c.l.b16 %v158
  %v652 = vunpack.c.h.b16 %v158
  %v653 = vunpack.c.l.b16 %v159
  %v654 = vunpack.c.h.b16 %v159
  %v655 = vunpack.c.l.b16 %v160
  %v656 = vunpack.c.h.b16 %v160
  %v657 = vunpack.c.l.b16 %v161
  %v658 = vunpack.c.h.b16 %v161
  %v659 = vunpack.c.l.b16 %v162
  %v660 = vunpack.c.h.b16 %v162
  %v661 = vunpack.c.l.b16 %v163
  %v662 = vunpack.c.h.b16 %v163
  %v663 = vunpack.c.l.b16 %v164
  %v664 = vunpack.c.h.b16 %v164
  %v665 = vunpack.c.l.b16 %v165
  %v666 = vunpack.c.h.b16 %v165
  %v667 = vunpack.c.l.b16 %v166
  %v668 = vunpack.c.h.b16 %v166
  %v669 = vunpack.c.l.b16 %v167
  %v670 = vunpack.c.h.b16 %v167
  %v671 = vunpack.c.l.b16 %v168
  %v672 = vunpack.c.h.b16 %v168
  %v673 = vunpack.c.l.b16 %v169
  %v674 = vunpack.c.h.b16 %v169
  %v675 = vunpack.c.l.b16 %v170
  %v676 = vunpack.c.h.b16 %v170
  %v677 = vunpack.c.l.b16 %v171
  %v678 = vunpack.c.h.b16 %v171
  %v679 = vunpack.c.l.b16 %v172
  %v680 = vunpack.c.h.b16 %v172
  %v681 = vpack.c.b16 %v499, %v497
  %v682 = vpack.c.b16 %v500, %v498
  %v683 = vpack.c.b16 %v503, %v501
  %v684 = vpack.c.b16 %v504, %v502
  %v685 = vpack.c.b16 %v507, %v505
  %v686 = vpack.c.b16 %v508, %v506
  %v687 = vpack.c.b16 %v511, %v509
  %v688 = vpack.c.b16 %v512, %v510
  %v689 = vpack.c.b16 %v515, %v513
  %v690 = vpack.c.b16 %v516, %v514
  %v691 = vpack.c.b16 %v519, %v517
  %v692 = vpack.c.b16 %v520, %v518
  %v693 = vpack.c.b16 %v523, %v521
  %v694 = vpack.c.b16 %v524, %v522
  %v695 = vpack.c.b16 %v527, %v525
  %v696 = vpack.c.b16 %v528, %v526
  %v697 = vpack.c.b16 %v531, %v529
  %v698 = vpack.c.b16 %v532, %v530
  %v699 = vpack.c.b16 %v535, %v533
  %v700 = vpack.c.b16 %v536, %v534
  %v701 = vpack.c.b16 %v539, %v537
  %v702 = vpack.c.b16 %v540, %v538
  %v703 = vpack.c.b16 %v543, %v541
  %v704 = vpack.c.b16 %v544, %v542
  %v705 = vpack.c.b16 %v547, %v545
  %v706 = vpack.c.b16 %v548, %v546
  %v707 = vpack.c.b16 %v551, %v549
  %v708 = vpack.c.b16 %v552, %v550
  %v709 = vpack.c.b16 %v555, %v553
  %v710 = vpack.c.b16 %v556, %v554
  %v711 = vpack.c.b16 %v559, %v557
  %v712 = vpack.c.b16 %v560, %v558
  %v713 = vpack.c.b16 %v563, %v561
  %v714 = vpack.c.b16 %v564, %v562
  %v715 = vpack.c.b16 %v567, %v565
  %v716 = vpack.c.b16 %v568, %v566
  %v717 = vpack.c.b16 %v571, %v569
  %v718 = vpack.c.b16 %v572, %v570
  %v719 = vpack.c.b16 %v575, %v573
  %v720 = vpack.c.b16 %v576, %v574
  %v721 = vpack.c.b16 %v579, %v577
  %v722 = vpack.c.b16 %v580, %v578
  %v723 = vpack.c.b16 %v583, %v581
  %v724 = vpack.c.b16 %v584, %v582
  %v725 = vpack.c.b16 %v587, %v585
  %v726 = vpack.c.b16 %v588, %v586
  %v727 = vpack.c.b16 %v591, %v589
  %v728 = vpack.c.b16 %v592, %v590
  %v729 = vpack.c.b16 %v595, %v593
  %v730 = vpack.c.b16 %v596, %v594
  %v731 = vpack.c.b16 %v599, %v597
  %v732 = vpack.c.b16 %v600, %v598
  %v733 = vpack.c.b16 %v603, %v601
  %v734 = vpack.c.b16 %v604, %v602
  %v735 = vpack.c.b16 %v607, %v605
  %v736 = vpack.c.b16 %v608, %v606
  %v737 = vpack.c.b16 %v611, %v609
  %v738 = vpack.c.b16 %v612, %v610
  %v739 = vpack.c.b16 %v615, %v613
  %v740 = vpack.c.b16 %v616, %v614
  %v741 = vpack.c.b16 %v619, %v617
  %v742 = vpack.c.b16 %v620, %v618
  %v743 = vpack.c.b16 %v623, %v621
  %v744 = vpack.c.b16 %v624, %v622
  %v745 = vpack.c.b16 %v627, %v625
  %v746 = vpack.c.b16 %v628, %v626
  %v747 = vpack.c.b16 %v631, %v629
  %v748 = vpack.c.b16 %v632, %v630
  %v749 = vpack.c.b16 %v635, %v633
  %v750 = vpack.c.b16 %v636, %v634
  %v751 = vpack.c.b16 %v639, %v637
  %v752 = vpack.c.b16 %v640, %v638
  %v753 = vpack.c.b16 %v643, %v641
  %v754 = vpack.c.b16 %v644, %v642
  %v755 = vpack.c.b16 %v647, %v645
  %v756 = vpack.c.b16 %v648, %v646
  %v757 = vpack.c.b16 %v651, %v649
  %v758 = vpack.c.b16 %v652, %v650
  %v759 = vpack.c.b16 %v655, %v653
  %v760 = vpack.c.b16 %v656, %v654
  %v761 = vpack.c.b16 %v659, %v657
  %v762 = vpack.c.b16 %v660, %v658
  %v763 = vpack.c.b16 %v663, %v661
  %v764 = vpack.c.b16 %v664, %v662
  %v765 = vpack.c.b16 %v667, %v665
  %v766 = vpack.c.b16 %v668, %v666
  %v767 = vpack.c.b16 %v671, %v669
  %v768 = vpack.c.b16 %v672, %v670
  %v769 = vpack.c.b16 %v675, %v673
  %v770 = vpack.c.b16 %v676, %v674
  %v771 = vpack.c.b16 %v679, %v677
  %v772 = vpack.c.b16 %v680, %v678
  %vm863 = vcmask 777216
  %v865 = vsel %vm863, %v322, 0
  %v868 = vsel %vm863, %v328, 0
  %v871 = vsel %vm863, %v334, 0
  %v874 = vsel %vm863, %v340, 0
  %v877 = vsel %vm863, %v346, 0
  %v880 = vsel %vm863, %v352, 0
  %v883 = vsel %vm863, %v358, 0
  %v886 = vsel %vm863, %v364, 0
  %vm888 = vcmask 1046528
  %vm889 = vcmask 1047552
  %v890 = vsel %vm888, 4294967295, 65535
  %v891 = vsel %vm889, %v890, 0
  %v893 = vand.u32 %v771, %v891
  %v896 = vand.u32 %v772, %v891
  %898 = vmatpush.bf16.msra.mxu0 %v695
  %899 = vmatpush.bf16.msra.mxu0 %v693
  %900 = vmatpush.bf16.msra.mxu0 %v691
  %901 = vmatpush.bf16.msra.mxu0 %v689
  %902 = vmatpush.bf16.msra.mxu0 %v687
  %903 = vmatpush.bf16.msra.mxu0 %v685
  %904 = vmatpush.bf16.msra.mxu0 %v683
  %905 = vmatpush.bf16.msra.mxu0 %v681
  %906 = vmatmul.bf16.gmra.mxu0 %v317
  %v907 = vpop.f32.mrf.mxu0
  %v908 = vadd.f32 0.0, %v907
  %v909 = vpop.f32.mrf.mxu0
  %v910 = vadd.f32 0.0, %v909
  %911 = vmatmul.bf16.gmra.mxu0 %v323
  %v912 = vpop.f32.mrf.mxu0
  %v913 = vadd.f32 0.0, %v912
  %v914 = vpop.f32.mrf.mxu0
  %v915 = vadd.f32 0.0, %v914
  %916 = vmatmul.bf16.gmra.mxu0 %v329
  %v917 = vpop.f32.mrf.mxu0
  %v918 = vadd.f32 0.0, %v917
  %v919 = vpop.f32.mrf.mxu0
  %v920 = vadd.f32 0.0, %v919
  %921 = vmatmul.bf16.gmra.mxu0 %v335
  %v922 = vpop.f32.mrf.mxu0
  %v923 = vadd.f32 0.0, %v922
  %v924 = vpop.f32.mrf.mxu0
  %v925 = vadd.f32 0.0, %v924
  %926 = vmatmul.bf16.gmra.mxu0 %v341
  %v927 = vpop.f32.mrf.mxu0
  %v928 = vadd.f32 0.0, %v927
  %v929 = vpop.f32.mrf.mxu0
  %v930 = vadd.f32 0.0, %v929
  %931 = vmatmul.bf16.gmra.mxu0 %v347
  %v932 = vpop.f32.mrf.mxu0
  %v933 = vadd.f32 0.0, %v932
  %v934 = vpop.f32.mrf.mxu0
  %v935 = vadd.f32 0.0, %v934
  %936 = vmatmul.bf16.gmra.mxu0 %v353
  %v937 = vpop.f32.mrf.mxu0
  %v938 = vadd.f32 0.0, %v937
  %v939 = vpop.f32.mrf.mxu0
  %v940 = vadd.f32 0.0, %v939
  %941 = vmatmul.bf16.gmra.mxu0 %v359
  %v942 = vpop.f32.mrf.mxu0
  %v943 = vadd.f32 0.0, %v942
  %v944 = vpop.f32.mrf.mxu0
  %v945 = vadd.f32 0.0, %v944
  %946 = vdwg.mxu0
  %947 = vmatpush.bf16.msra.mxu0 %v711
  %948 = vmatpush.bf16.msra.mxu0 %v709
  %949 = vmatpush.bf16.msra.mxu0 %v707
  %950 = vmatpush.bf16.msra.mxu0 %v705
  %951 = vmatpush.bf16.msra.mxu0 %v703
  %952 = vmatpush.bf16.msra.mxu0 %v701
  %953 = vmatpush.bf16.msra.mxu0 %v699
  %954 = vmatpush.bf16.msra.mxu0 %v697
  %955 = vmatmul.bf16.gmra.mxu0 %v318
  %v956 = vpop.f32.mrf.mxu0
  %v957 = vadd.f32 %v908, %v956
  %v958 = vpop.f32.mrf.mxu0
  %v959 = vadd.f32 %v910, %v958
  %960 = vmatmul.bf16.gmra.mxu0 %v324
  %v961 = vpop.f32.mrf.mxu0
  %v962 = vadd.f32 %v913, %v961
  %v963 = vpop.f32.mrf.mxu0
  %v964 = vadd.f32 %v915, %v963
  %965 = vmatmul.bf16.gmra.mxu0 %v330
  %v966 = vpop.f32.mrf.mxu0
  %v967 = vadd.f32 %v918, %v966
  %v968 = vpop.f32.mrf.mxu0
  %v969 = vadd.f32 %v920, %v968
  %970 = vmatmul.bf16.gmra.mxu0 %v336
  %v971 = vpop.f32.mrf.mxu0
  %v972 = vadd.f32 %v923, %v971
  %v973 = vpop.f32.mrf.mxu0
  %v974 = vadd.f32 %v925, %v973
  %975 = vmatmul.bf16.gmra.mxu0 %v342
  %v976 = vpop.f32.mrf.mxu0
  %v977 = vadd.f32 %v928, %v976
  %v978 = vpop.f32.mrf.mxu0
  %v979 = vadd.f32 %v930, %v978
  %980 = vmatmul.bf16.gmra.mxu0 %v348
  %v981 = vpop.f32.mrf.mxu0
  %v982 = vadd.f32 %v933, %v981
  %v983 = vpop.f32.mrf.mxu0
  %v984 = vadd.f32 %v935, %v983
  %985 = vmatmul.bf16.gmra.mxu0 %v354
  %v986 = vpop.f32.mrf.mxu0
  %v987 = vadd.f32 %v938, %v986
  %v988 = vpop.f32.mrf.mxu0
  %v989 = vadd.f32 %v940, %v988
  %990 = vmatmul.bf16.gmra.mxu0 %v360
  %v991 = vpop.f32.mrf.mxu0
  %v992 = vadd.f32 %v943, %v991
  %v993 = vpop.f32.mrf.mxu0
  %v994 = vadd.f32 %v945, %v993
  %995 = vdwg.mxu0
  %996 = vmatpush.bf16.msra.mxu0 %v727
  %997 = vmatpush.bf16.msra.mxu0 %v725
  %998 = vmatpush.bf16.msra.mxu0 %v723
  %999 = vmatpush.bf16.msra.mxu0 %v721
  %1000 = vmatpush.bf16.msra.mxu0 %v719
  %1001 = vmatpush.bf16.msra.mxu0 %v717
  %1002 = vmatpush.bf16.msra.mxu0 %v715
  %1003 = vmatpush.bf16.msra.mxu0 %v713
  %1004 = vmatmul.bf16.gmra.mxu0 %v319
  %v1005 = vpop.f32.mrf.mxu0
  %v1006 = vadd.f32 %v957, %v1005
  %v1007 = vpop.f32.mrf.mxu0
  %v1008 = vadd.f32 %v959, %v1007
  %1009 = vmatmul.bf16.gmra.mxu0 %v325
  %v1010 = vpop.f32.mrf.mxu0
  %v1011 = vadd.f32 %v962, %v1010
  %v1012 = vpop.f32.mrf.mxu0
  %v1013 = vadd.f32 %v964, %v1012
  %1014 = vmatmul.bf16.gmra.mxu0 %v331
  %v1015 = vpop.f32.mrf.mxu0
  %v1016 = vadd.f32 %v967, %v1015
  %v1017 = vpop.f32.mrf.mxu0
  %v1018 = vadd.f32 %v969, %v1017
  %1019 = vmatmul.bf16.gmra.mxu0 %v337
  %v1020 = vpop.f32.mrf.mxu0
  %v1021 = vadd.f32 %v972, %v1020
  %v1022 = vpop.f32.mrf.mxu0
  %v1023 = vadd.f32 %v974, %v1022
  %1024 = vmatmul.bf16.gmra.mxu0 %v343
  %v1025 = vpop.f32.mrf.mxu0
  %v1026 = vadd.f32 %v977, %v1025
  %v1027 = vpop.f32.mrf.mxu0
  %v1028 = vadd.f32 %v979, %v1027
  %1029 = vmatmul.bf16.gmra.mxu0 %v349
  %v1030 = vpop.f32.mrf.mxu0
  %v1031 = vadd.f32 %v982, %v1030
  %v1032 = vpop.f32.mrf.mxu0
  %v1033 = vadd.f32 %v984, %v1032
  %1034 = vmatmul.bf16.gmra.mxu0 %v355
  %v1035 = vpop.f32.mrf.mxu0
  %v1036 = vadd.f32 %v987, %v1035
  %v1037 = vpop.f32.mrf.mxu0
  %v1038 = vadd.f32 %v989, %v1037
  %1039 = vmatmul.bf16.gmra.mxu0 %v361
  %v1040 = vpop.f32.mrf.mxu0
  %v1041 = vadd.f32 %v992, %v1040
  %v1042 = vpop.f32.mrf.mxu0
  %v1043 = vadd.f32 %v994, %v1042
  %1044 = vdwg.mxu0
  %1045 = vmatpush.bf16.msra.mxu0 %v743
  %1046 = vmatpush.bf16.msra.mxu0 %v741
  %1047 = vmatpush.bf16.msra.mxu0 %v739
  %1048 = vmatpush.bf16.msra.mxu0 %v737
  %1049 = vmatpush.bf16.msra.mxu0 %v735
  %1050 = vmatpush.bf16.msra.mxu0 %v733
  %1051 = vmatpush.bf16.msra.mxu0 %v731
  %1052 = vmatpush.bf16.msra.mxu0 %v729
  %1053 = vmatmul.bf16.gmra.mxu0 %v320
  %v1054 = vpop.f32.mrf.mxu0
  %v1055 = vadd.f32 %v1006, %v1054
  %v1056 = vpop.f32.mrf.mxu0
  %v1057 = vadd.f32 %v1008, %v1056
  %1058 = vmatmul.bf16.gmra.mxu0 %v326
  %v1059 = vpop.f32.mrf.mxu0
  %v1060 = vadd.f32 %v1011, %v1059
  %v1061 = vpop.f32.mrf.mxu0
  %v1062 = vadd.f32 %v1013, %v1061
  %1063 = vmatmul.bf16.gmra.mxu0 %v332
  %v1064 = vpop.f32.mrf.mxu0
  %v1065 = vadd.f32 %v1016, %v1064
  %v1066 = vpop.f32.mrf.mxu0
  %v1067 = vadd.f32 %v1018, %v1066
  %1068 = vmatmul.bf16.gmra.mxu0 %v338
  %v1069 = vpop.f32.mrf.mxu0
  %v1070 = vadd.f32 %v1021, %v1069
  %v1071 = vpop.f32.mrf.mxu0
  %v1072 = vadd.f32 %v1023, %v1071
  %1073 = vmatmul.bf16.gmra.mxu0 %v344
  %v1074 = vpop.f32.mrf.mxu0
  %v1075 = vadd.f32 %v1026, %v1074
  %v1076 = vpop.f32.mrf.mxu0
  %v1077 = vadd.f32 %v1028, %v1076
  %1078 = vmatmul.bf16.gmra.mxu0 %v350
  %v1079 = vpop.f32.mrf.mxu0
  %v1080 = vadd.f32 %v1031, %v1079
  %v1081 = vpop.f32.mrf.mxu0
  %v1082 = vadd.f32 %v1033, %v1081
  %1083 = vmatmul.bf16.gmra.mxu0 %v356
  %v1084 = vpop.f32.mrf.mxu0
  %v1085 = vadd.f32 %v1036, %v1084
  %v1086 = vpop.f32.mrf.mxu0
  %v1087 = vadd.f32 %v1038, %v1086
  %1088 = vmatmul.bf16.gmra.mxu0 %v362
  %v1089 = vpop.f32.mrf.mxu0
  %v1090 = vadd.f32 %v1041, %v1089
  %v1091 = vpop.f32.mrf.mxu0
  %v1092 = vadd.f32 %v1043, %v1091
  %1093 = vdwg.mxu0
  %1094 = vmatpush.bf16.msra.mxu0 %v759
  %1095 = vmatpush.bf16.msra.mxu0 %v757
  %1096 = vmatpush.bf16.msra.mxu0 %v755
  %1097 = vmatpush.bf16.msra.mxu0 %v753
  %1098 = vmatpush.bf16.msra.mxu0 %v751
  %1099 = vmatpush.bf16.msra.mxu0 %v749
  %1100 = vmatpush.bf16.msra.mxu0 %v747
  %1101 = vmatpush.bf16.msra.mxu0 %v745
  %1102 = vmatmul.bf16.gmra.mxu0 %v321
  %v1103 = vpop.f32.mrf.mxu0
  %v1104 = vadd.f32 %v1055, %v1103
  %v1105 = vpop.f32.mrf.mxu0
  %v1106 = vadd.f32 %v1057, %v1105
  %1107 = vmatmul.bf16.gmra.mxu0 %v327
  %v1108 = vpop.f32.mrf.mxu0
  %v1109 = vadd.f32 %v1060, %v1108
  %v1110 = vpop.f32.mrf.mxu0
  %v1111 = vadd.f32 %v1062, %v1110
  %1112 = vmatmul.bf16.gmra.mxu0 %v333
  %v1113 = vpop.f32.mrf.mxu0
  %v1114 = vadd.f32 %v1065, %v1113
  %v1115 = vpop.f32.mrf.mxu0
  %v1116 = vadd.f32 %v1067, %v1115
  %1117 = vmatmul.bf16.gmra.mxu0 %v339
  %v1118 = vpop.f32.mrf.mxu0
  %v1119 = vadd.f32 %v1070, %v1118
  %v1120 = vpop.f32.mrf.mxu0
  %v1121 = vadd.f32 %v1072, %v1120
  %1122 = vmatmul.bf16.gmra.mxu0 %v345
  %v1123 = vpop.f32.mrf.mxu0
  %v1124 = vadd.f32 %v1075, %v1123
  %v1125 = vpop.f32.mrf.mxu0
  %v1126 = vadd.f32 %v1077, %v1125
  %1127 = vmatmul.bf16.gmra.mxu0 %v351
  %v1128 = vpop.f32.mrf.mxu0
  %v1129 = vadd.f32 %v1080, %v1128
  %v1130 = vpop.f32.mrf.mxu0
  %v1131 = vadd.f32 %v1082, %v1130
  %1132 = vmatmul.bf16.gmra.mxu0 %v357
  %v1133 = vpop.f32.mrf.mxu0
  %v1134 = vadd.f32 %v1085, %v1133
  %v1135 = vpop.f32.mrf.mxu0
  %v1136 = vadd.f32 %v1087, %v1135
  %1137 = vmatmul.bf16.gmra.mxu0 %v363
  %v1138 = vpop.f32.mrf.mxu0
  %v1139 = vadd.f32 %v1090, %v1138
  %v1140 = vpop.f32.mrf.mxu0
  %v1141 = vadd.f32 %v1092, %v1140
  %1142 = vdwg.mxu0
  %1143 = vmatpush.bf16.msra.mxu0 0
  %1144 = vmatpush.bf16.msra.mxu0 0
  %1145 = vmatpush.bf16.msra.mxu0 %v893
  %1146 = vmatpush.bf16.msra.mxu0 %v769
  %1147 = vmatpush.bf16.msra.mxu0 %v767
  %1148 = vmatpush.bf16.msra.mxu0 %v765
  %1149 = vmatpush.bf16.msra.mxu0 %v763
  %1150 = vmatpush.bf16.msra.mxu0 %v761
  %1151 = vmatmul.bf16.gmra.mxu0 %v865
  %v1152 = vpop.f32.mrf.mxu0
  %v1153 = vadd.f32 %v1104, %v1152
  %v1154 = vpop.f32.mrf.mxu0
  %v1155 = vadd.f32 %v1106, %v1154
  %1156 = vmatmul.bf16.gmra.mxu0 %v868
  %v1157 = vpop.f32.mrf.mxu0
  %v1158 = vadd.f32 %v1109, %v1157
  %v1159 = vpop.f32.mrf.mxu0
  %v1160 = vadd.f32 %v1111, %v1159
  %1161 = vmatmul.bf16.gmra.mxu0 %v871
  %v1162 = vpop.f32.mrf.mxu0
  %v1163 = vadd.f32 %v1114, %v1162
  %v1164 = vpop.f32.mrf.mxu0
  %v1165 = vadd.f32 %v1116, %v1164
  %1166 = vmatmul.bf16.gmra.mxu0 %v874
  %v1167 = vpop.f32.mrf.mxu0
  %v1168 = vadd.f32 %v1119, %v1167
  %v1169 = vpop.f32.mrf.mxu0
  %v1170 = vadd.f32 %v1121, %v1169
  %1171 = vmatmul.bf16.gmra.mxu0 %v877
  %v1172 = vpop.f32.mrf.mxu0
  %v1173 = vadd.f32 %v1124, %v1172
  %v1174 = vpop.f32.mrf.mxu0
  %v1175 = vadd.f32 %v1126, %v1174
  %1176 = vmatmul.bf16.gmra.mxu0 %v880
  %v1177 = vpop.f32.mrf.mxu0
  %v1178 = vadd.f32 %v1129, %v1177
  %v1179 = vpop.f32.mrf.mxu0
  %v1180 = vadd.f32 %v1131, %v1179
  %1181 = vmatmul.bf16.gmra.mxu0 %v883
  %v1182 = vpop.f32.mrf.mxu0
  %v1183 = vadd.f32 %v1134, %v1182
  %v1184 = vpop.f32.mrf.mxu0
  %v1185 = vadd.f32 %v1136, %v1184
  %1186 = vmatmul.bf16.gmra.mxu0 %v886
  %v1187 = vpop.f32.mrf.mxu0
  %v1188 = vadd.f32 %v1139, %v1187
  %v1189 = vpop.f32.mrf.mxu0
  %v1190 = vadd.f32 %v1141, %v1189
  %1191 = vdwg.mxu0
  %1192 = vmatpush.bf16.msra.mxu0 %v696
  %1193 = vmatpush.bf16.msra.mxu0 %v694
  %1194 = vmatpush.bf16.msra.mxu0 %v692
  %1195 = vmatpush.bf16.msra.mxu0 %v690
  %1196 = vmatpush.bf16.msra.mxu0 %v688
  %1197 = vmatpush.bf16.msra.mxu0 %v686
  %1198 = vmatpush.bf16.msra.mxu0 %v684
  %1199 = vmatpush.bf16.msra.mxu0 %v682
  %1200 = vmatmul.bf16.gmra.mxu0 %v317
  %v1201 = vpop.f32.mrf.mxu0
  %v1202 = vadd.f32 0.0, %v1201
  %v1203 = vpop.f32.mrf.mxu0
  %v1204 = vadd.f32 0.0, %v1203
  %1205 = vmatmul.bf16.gmra.mxu0 %v323
  %v1206 = vpop.f32.mrf.mxu0
  %v1207 = vadd.f32 0.0, %v1206
  %v1208 = vpop.f32.mrf.mxu0
  %v1209 = vadd.f32 0.0, %v1208
  %1210 = vmatmul.bf16.gmra.mxu0 %v329
  %v1211 = vpop.f32.mrf.mxu0
  %v1212 = vadd.f32 0.0, %v1211
  %v1213 = vpop.f32.mrf.mxu0
  %v1214 = vadd.f32 0.0, %v1213
  %1215 = vmatmul.bf16.gmra.mxu0 %v335
  %v1216 = vpop.f32.mrf.mxu0
  %v1217 = vadd.f32 0.0, %v1216
  %v1218 = vpop.f32.mrf.mxu0
  %v1219 = vadd.f32 0.0, %v1218
  %1220 = vmatmul.bf16.gmra.mxu0 %v341
  %v1221 = vpop.f32.mrf.mxu0
  %v1222 = vadd.f32 0.0, %v1221
  %v1223 = vpop.f32.mrf.mxu0
  %v1224 = vadd.f32 0.0, %v1223
  %1225 = vmatmul.bf16.gmra.mxu0 %v347
  %v1226 = vpop.f32.mrf.mxu0
  %v1227 = vadd.f32 0.0, %v1226
  %v1228 = vpop.f32.mrf.mxu0
  %v1229 = vadd.f32 0.0, %v1228
  %1230 = vmatmul.bf16.gmra.mxu0 %v353
  %v1231 = vpop.f32.mrf.mxu0
  %v1232 = vadd.f32 0.0, %v1231
  %v1233 = vpop.f32.mrf.mxu0
  %v1234 = vadd.f32 0.0, %v1233
  %1235 = vmatmul.bf16.gmra.mxu0 %v359
  %v1236 = vpop.f32.mrf.mxu0
  %v1237 = vadd.f32 0.0, %v1236
  %v1238 = vpop.f32.mrf.mxu0
  %v1239 = vadd.f32 0.0, %v1238
  %1240 = vdwg.mxu0
  %1241 = vmatpush.bf16.msra.mxu0 %v712
  %1242 = vmatpush.bf16.msra.mxu0 %v710
  %1243 = vmatpush.bf16.msra.mxu0 %v708
  %1244 = vmatpush.bf16.msra.mxu0 %v706
  %1245 = vmatpush.bf16.msra.mxu0 %v704
  %1246 = vmatpush.bf16.msra.mxu0 %v702
  %1247 = vmatpush.bf16.msra.mxu0 %v700
  %1248 = vmatpush.bf16.msra.mxu0 %v698
  %1249 = vmatmul.bf16.gmra.mxu0 %v318
  %v1250 = vpop.f32.mrf.mxu0
  %v1251 = vadd.f32 %v1202, %v1250
  %v1252 = vpop.f32.mrf.mxu0
  %v1253 = vadd.f32 %v1204, %v1252
  %1254 = vmatmul.bf16.gmra.mxu0 %v324
  %v1255 = vpop.f32.mrf.mxu0
  %v1256 = vadd.f32 %v1207, %v1255
  %v1257 = vpop.f32.mrf.mxu0
  %v1258 = vadd.f32 %v1209, %v1257
  %1259 = vmatmul.bf16.gmra.mxu0 %v330
  %v1260 = vpop.f32.mrf.mxu0
  %v1261 = vadd.f32 %v1212, %v1260
  %v1262 = vpop.f32.mrf.mxu0
  %v1263 = vadd.f32 %v1214, %v1262
  %1264 = vmatmul.bf16.gmra.mxu0 %v336
  %v1265 = vpop.f32.mrf.mxu0
  %v1266 = vadd.f32 %v1217, %v1265
  %v1267 = vpop.f32.mrf.mxu0
  %v1268 = vadd.f32 %v1219, %v1267
  %1269 = vmatmul.bf16.gmra.mxu0 %v342
  %v1270 = vpop.f32.mrf.mxu0
  %v1271 = vadd.f32 %v1222, %v1270
  %v1272 = vpop.f32.mrf.mxu0
  %v1273 = vadd.f32 %v1224, %v1272
  %1274 = vmatmul.bf16.gmra.mxu0 %v348
  %v1275 = vpop.f32.mrf.mxu0
  %v1276 = vadd.f32 %v1227, %v1275
  %v1277 = vpop.f32.mrf.mxu0
  %v1278 = vadd.f32 %v1229, %v1277
  %1279 = vmatmul.bf16.gmra.mxu0 %v354
  %v1280 = vpop.f32.mrf.mxu0
  %v1281 = vadd.f32 %v1232, %v1280
  %v1282 = vpop.f32.mrf.mxu0
  %v1283 = vadd.f32 %v1234, %v1282
  %1284 = vmatmul.bf16.gmra.mxu0 %v360
  %v1285 = vpop.f32.mrf.mxu0
  %v1286 = vadd.f32 %v1237, %v1285
  %v1287 = vpop.f32.mrf.mxu0
  %v1288 = vadd.f32 %v1239, %v1287
  %1289 = vdwg.mxu0
  %1290 = vmatpush.bf16.msra.mxu0 %v728
  %1291 = vmatpush.bf16.msra.mxu0 %v726
  %1292 = vmatpush.bf16.msra.mxu0 %v724
  %1293 = vmatpush.bf16.msra.mxu0 %v722
  %1294 = vmatpush.bf16.msra.mxu0 %v720
  %1295 = vmatpush.bf16.msra.mxu0 %v718
  %1296 = vmatpush.bf16.msra.mxu0 %v716
  %1297 = vmatpush.bf16.msra.mxu0 %v714
  %1298 = vmatmul.bf16.gmra.mxu0 %v319
  %v1299 = vpop.f32.mrf.mxu0
  %v1300 = vadd.f32 %v1251, %v1299
  %v1301 = vpop.f32.mrf.mxu0
  %v1302 = vadd.f32 %v1253, %v1301
  %1303 = vmatmul.bf16.gmra.mxu0 %v325
  %v1304 = vpop.f32.mrf.mxu0
  %v1305 = vadd.f32 %v1256, %v1304
  %v1306 = vpop.f32.mrf.mxu0
  %v1307 = vadd.f32 %v1258, %v1306
  %1308 = vmatmul.bf16.gmra.mxu0 %v331
  %v1309 = vpop.f32.mrf.mxu0
  %v1310 = vadd.f32 %v1261, %v1309
  %v1311 = vpop.f32.mrf.mxu0
  %v1312 = vadd.f32 %v1263, %v1311
  %1313 = vmatmul.bf16.gmra.mxu0 %v337
  %v1314 = vpop.f32.mrf.mxu0
  %v1315 = vadd.f32 %v1266, %v1314
  %v1316 = vpop.f32.mrf.mxu0
  %v1317 = vadd.f32 %v1268, %v1316
  %1318 = vmatmul.bf16.gmra.mxu0 %v343
  %v1319 = vpop.f32.mrf.mxu0
  %v1320 = vadd.f32 %v1271, %v1319
  %v1321 = vpop.f32.mrf.mxu0
  %v1322 = vadd.f32 %v1273, %v1321
  %1323 = vmatmul.bf16.gmra.mxu0 %v349
  %v1324 = vpop.f32.mrf.mxu0
  %v1325 = vadd.f32 %v1276, %v1324
  %v1326 = vpop.f32.mrf.mxu0
  %v1327 = vadd.f32 %v1278, %v1326
  %1328 = vmatmul.bf16.gmra.mxu0 %v355
  %v1329 = vpop.f32.mrf.mxu0
  %v1330 = vadd.f32 %v1281, %v1329
  %v1331 = vpop.f32.mrf.mxu0
  %v1332 = vadd.f32 %v1283, %v1331
  %1333 = vmatmul.bf16.gmra.mxu0 %v361
  %v1334 = vpop.f32.mrf.mxu0
  %v1335 = vadd.f32 %v1286, %v1334
  %v1336 = vpop.f32.mrf.mxu0
  %v1337 = vadd.f32 %v1288, %v1336
  %1338 = vdwg.mxu0
  %1339 = vmatpush.bf16.msra.mxu0 %v744
  %1340 = vmatpush.bf16.msra.mxu0 %v742
  %1341 = vmatpush.bf16.msra.mxu0 %v740
  %1342 = vmatpush.bf16.msra.mxu0 %v738
  %1343 = vmatpush.bf16.msra.mxu0 %v736
  %1344 = vmatpush.bf16.msra.mxu0 %v734
  %1345 = vmatpush.bf16.msra.mxu0 %v732
  %1346 = vmatpush.bf16.msra.mxu0 %v730
  %1347 = vmatmul.bf16.gmra.mxu0 %v320
  %v1348 = vpop.f32.mrf.mxu0
  %v1349 = vadd.f32 %v1300, %v1348
  %v1350 = vpop.f32.mrf.mxu0
  %v1351 = vadd.f32 %v1302, %v1350
  %1352 = vmatmul.bf16.gmra.mxu0 %v326
  %v1353 = vpop.f32.mrf.mxu0
  %v1354 = vadd.f32 %v1305, %v1353
  %v1355 = vpop.f32.mrf.mxu0
  %v1356 = vadd.f32 %v1307, %v1355
  %1357 = vmatmul.bf16.gmra.mxu0 %v332
  %v1358 = vpop.f32.mrf.mxu0
  %v1359 = vadd.f32 %v1310, %v1358
  %v1360 = vpop.f32.mrf.mxu0
  %v1361 = vadd.f32 %v1312, %v1360
  %1362 = vmatmul.bf16.gmra.mxu0 %v338
  %v1363 = vpop.f32.mrf.mxu0
  %v1364 = vadd.f32 %v1315, %v1363
  %v1365 = vpop.f32.mrf.mxu0
  %v1366 = vadd.f32 %v1317, %v1365
  %1367 = vmatmul.bf16.gmra.mxu0 %v344
  %v1368 = vpop.f32.mrf.mxu0
  %v1369 = vadd.f32 %v1320, %v1368
  %v1370 = vpop.f32.mrf.mxu0
  %v1371 = vadd.f32 %v1322, %v1370
  %1372 = vmatmul.bf16.gmra.mxu0 %v350
  %v1373 = vpop.f32.mrf.mxu0
  %v1374 = vadd.f32 %v1325, %v1373
  %v1375 = vpop.f32.mrf.mxu0
  %v1376 = vadd.f32 %v1327, %v1375
  %1377 = vmatmul.bf16.gmra.mxu0 %v356
  %v1378 = vpop.f32.mrf.mxu0
  %v1379 = vadd.f32 %v1330, %v1378
  %v1380 = vpop.f32.mrf.mxu0
  %v1381 = vadd.f32 %v1332, %v1380
  %1382 = vmatmul.bf16.gmra.mxu0 %v362
  %v1383 = vpop.f32.mrf.mxu0
  %v1384 = vadd.f32 %v1335, %v1383
  %v1385 = vpop.f32.mrf.mxu0
  %v1386 = vadd.f32 %v1337, %v1385
  %1387 = vdwg.mxu0
  %1388 = vmatpush.bf16.msra.mxu0 %v760
  %1389 = vmatpush.bf16.msra.mxu0 %v758
  %1390 = vmatpush.bf16.msra.mxu0 %v756
  %1391 = vmatpush.bf16.msra.mxu0 %v754
  %1392 = vmatpush.bf16.msra.mxu0 %v752
  %1393 = vmatpush.bf16.msra.mxu0 %v750
  %1394 = vmatpush.bf16.msra.mxu0 %v748
  %1395 = vmatpush.bf16.msra.mxu0 %v746
  %1396 = vmatmul.bf16.gmra.mxu0 %v321
  %v1397 = vpop.f32.mrf.mxu0
  %v1398 = vadd.f32 %v1349, %v1397
  %v1399 = vpop.f32.mrf.mxu0
  %v1400 = vadd.f32 %v1351, %v1399
  %1401 = vmatmul.bf16.gmra.mxu0 %v327
  %v1402 = vpop.f32.mrf.mxu0
  %v1403 = vadd.f32 %v1354, %v1402
  %v1404 = vpop.f32.mrf.mxu0
  %v1405 = vadd.f32 %v1356, %v1404
  %1406 = vmatmul.bf16.gmra.mxu0 %v333
  %v1407 = vpop.f32.mrf.mxu0
  %v1408 = vadd.f32 %v1359, %v1407
  %v1409 = vpop.f32.mrf.mxu0
  %v1410 = vadd.f32 %v1361, %v1409
  %1411 = vmatmul.bf16.gmra.mxu0 %v339
  %v1412 = vpop.f32.mrf.mxu0
  %v1413 = vadd.f32 %v1364, %v1412
  %v1414 = vpop.f32.mrf.mxu0
  %v1415 = vadd.f32 %v1366, %v1414
  %1416 = vmatmul.bf16.gmra.mxu0 %v345
  %v1417 = vpop.f32.mrf.mxu0
  %v1418 = vadd.f32 %v1369, %v1417
  %v1419 = vpop.f32.mrf.mxu0
  %v1420 = vadd.f32 %v1371, %v1419
  %1421 = vmatmul.bf16.gmra.mxu0 %v351
  %v1422 = vpop.f32.mrf.mxu0
  %v1423 = vadd.f32 %v1374, %v1422
  %v1424 = vpop.f32.mrf.mxu0
  %v1425 = vadd.f32 %v1376, %v1424
  %1426 = vmatmul.bf16.gmra.mxu0 %v357
  %v1427 = vpop.f32.mrf.mxu0
  %v1428 = vadd.f32 %v1379, %v1427
  %v1429 = vpop.f32.mrf.mxu0
  %v1430 = vadd.f32 %v1381, %v1429
  %1431 = vmatmul.bf16.gmra.mxu0 %v363
  %v1432 = vpop.f32.mrf.mxu0
  %v1433 = vadd.f32 %v1384, %v1432
  %v1434 = vpop.f32.mrf.mxu0
  %v1435 = vadd.f32 %v1386, %v1434
  %1436 = vdwg.mxu0
  %1437 = vmatpush.bf16.msra.mxu0 0
  %1438 = vmatpush.bf16.msra.mxu0 0
  %1439 = vmatpush.bf16.msra.mxu0 %v896
  %1440 = vmatpush.bf16.msra.mxu0 %v770
  %1441 = vmatpush.bf16.msra.mxu0 %v768
  %1442 = vmatpush.bf16.msra.mxu0 %v766
  %1443 = vmatpush.bf16.msra.mxu0 %v764
  %1444 = vmatpush.bf16.msra.mxu0 %v762
  %1445 = vmatmul.bf16.gmra.mxu0 %v865
  %v1446 = vpop.f32.mrf.mxu0
  %v1447 = vadd.f32 %v1398, %v1446
  %v1448 = vpop.f32.mrf.mxu0
  %v1449 = vadd.f32 %v1400, %v1448
  %1450 = vmatmul.bf16.gmra.mxu0 %v868
  %v1451 = vpop.f32.mrf.mxu0
  %v1452 = vadd.f32 %v1403, %v1451
  %v1453 = vpop.f32.mrf.mxu0
  %v1454 = vadd.f32 %v1405, %v1453
  %1455 = vmatmul.bf16.gmra.mxu0 %v871
  %v1456 = vpop.f32.mrf.mxu0
  %v1457 = vadd.f32 %v1408, %v1456
  %v1458 = vpop.f32.mrf.mxu0
  %v1459 = vadd.f32 %v1410, %v1458
  %1460 = vmatmul.bf16.gmra.mxu0 %v874
  %v1461 = vpop.f32.mrf.mxu0
  %v1462 = vadd.f32 %v1413, %v1461
  %v1463 = vpop.f32.mrf.mxu0
  %v1464 = vadd.f32 %v1415, %v1463
  %1465 = vmatmul.bf16.gmra.mxu0 %v877
  %v1466 = vpop.f32.mrf.mxu0
  %v1467 = vadd.f32 %v1418, %v1466
  %v1468 = vpop.f32.mrf.mxu0
  %v1469 = vadd.f32 %v1420, %v1468
  %1470 = vmatmul.bf16.gmra.mxu0 %v880
  %v1471 = vpop.f32.mrf.mxu0
  %v1472 = vadd.f32 %v1423, %v1471
  %v1473 = vpop.f32.mrf.mxu0
  %v1474 = vadd.f32 %v1425, %v1473
  %1475 = vmatmul.bf16.gmra.mxu0 %v883
  %v1476 = vpop.f32.mrf.mxu0
  %v1477 = vadd.f32 %v1428, %v1476
  %v1478 = vpop.f32.mrf.mxu0
  %v1479 = vadd.f32 %v1430, %v1478
  %1480 = vmatmul.bf16.gmra.mxu0 %v886
  %v1481 = vpop.f32.mrf.mxu0
  %v1482 = vadd.f32 %v1433, %v1481
  %v1483 = vpop.f32.mrf.mxu0
  %v1484 = vadd.f32 %v1435, %v1483
  %1485 = vdwg.mxu0
  %v1486 = vmax.f32 %v1153, %v1163
  %v1487 = vmax.f32 %v1447, %v1457
  %v1488 = vmax.f32 %v1155, %v1165
  %v1489 = vmax.f32 %v1449, %v1459
  %v1490 = vmax.f32 %v1158, %v1168
  %v1491 = vmax.f32 %v1452, %v1462
  %v1492 = vmax.f32 %v1160, %v1170
  %v1493 = vmax.f32 %v1454, %v1464
  %v1494 = vmax.f32 %v1173, %v1183
  %v1495 = vmax.f32 %v1467, %v1477
  %v1496 = vmax.f32 %v1175, %v1185
  %v1497 = vmax.f32 %v1469, %v1479
  %v1498 = vmax.f32 %v1178, %v1188
  %v1499 = vmax.f32 %v1472, %v1482
  %v1500 = vmax.f32 %v1180, %v1190
  %v1501 = vmax.f32 %v1474, %v1484
  %v1502 = vmax.f32 %v1486, %v1494
  %v1503 = vmax.f32 %v1487, %v1495
  %v1504 = vmax.f32 %v1488, %v1496
  %v1505 = vmax.f32 %v1489, %v1497
  %v1506 = vmax.f32 %v1490, %v1498
  %v1507 = vmax.f32 %v1491, %v1499
  %v1508 = vmax.f32 %v1492, %v1500
  %v1509 = vmax.f32 %v1493, %v1501
  %v1510 = vld [vmem:[%s2] sm:$0x3]
  %v1512 = vperm.slane %v1510, 0
  %v1513 = vperm.slane %v1510, 1
  %v1516 = vadd.f32 %v1502, %v1512
  %v1517 = vadd.f32 %v1503, %v1513
  %v1518 = vadd.f32 %v1504, %v1512
  %v1519 = vadd.f32 %v1505, %v1513
  %v1520 = vadd.f32 %v1506, %v1512
  %v1521 = vadd.f32 %v1507, %v1513
  %v1522 = vadd.f32 %v1508, %v1512
  %v1523 = vadd.f32 %v1509, %v1513
  %v1524 = vmax.f32 %v1516, 0.0
  %v1525 = vmax.f32 %v1517, 0.0
  %v1526 = vmax.f32 %v1518, 0.0
  %v1527 = vmax.f32 %v1519, 0.0
  %v1528 = vmax.f32 %v1520, 0.0
  %v1529 = vmax.f32 %v1521, 0.0
  %v1530 = vmax.f32 %v1522, 0.0
  %v1531 = vmax.f32 %v1523, 0.0
  %v1532 = vpack.c.bf16 %v1525, %v1524
  %v1533 = vpack.c.bf16 %v1527, %v1526
  %v1534 = vpack.c.bf16 %v1529, %v1528
  %v1535 = vpack.c.bf16 %v1531, %v1530
  %v1536 = vld [vmem:[%s3] sm:$0xff]
  %v1537 = vld [vmem:[%s3 + $0x8] sm:$0xff]
  %v1538 = vld [vmem:[%s3 + $0x10] sm:$0xff]
  %v1539 = vld [vmem:[%s3 + $0x18] sm:$0xff]
  %v1540 = vld [vmem:[%s3 + $0x20] sm:$0xff]
  %v1541 = vld [vmem:[%s3 + $0x28] sm:$0xff]
  %v1542 = vld [vmem:[%s3 + $0x30] sm:$0xff]
  %v1543 = vld [vmem:[%s3 + $0x38] sm:$0xff]
  %v1544 = vld [vmem:[%s3 + $0x40] sm:$0xff]
  %v1545 = vld [vmem:[%s3 + $0x48] sm:$0xff]
  %v1546 = vld [vmem:[%s3 + $0x50] sm:$0xff]
  %v1547 = vld [vmem:[%s3 + $0x58] sm:$0xff]
  %v1548 = vld [vmem:[%s3 + $0x60] sm:$0xff]
  %v1549 = vld [vmem:[%s3 + $0x68] sm:$0xff]
  %v1550 = vld [vmem:[%s3 + $0x70] sm:$0xff]
  %v1551 = vld [vmem:[%s3 + $0x78] sm:$0xff]
  %v1552 = vld [vmem:[%s3 + $0x80] sm:$0xff]
  %v1553 = vld [vmem:[%s3 + $0x88] sm:$0xff]
  %v1554 = vld [vmem:[%s3 + $0x90] sm:$0xff]
  %v1555 = vld [vmem:[%s3 + $0x98] sm:$0xff]
  %v1556 = vld [vmem:[%s3 + $0xa0] sm:$0xff]
  %v1557 = vld [vmem:[%s3 + $0xa8] sm:$0xff]
  %v1558 = vld [vmem:[%s3 + $0xb0] sm:$0x33]
  %s1559 = scalar_lea.vmem %s3, 368
  %v1560 = vld [vmem:[%s1559] sm:$0xff]
  %v1561 = vld [vmem:[%s1559 + $0x8] sm:$0xff]
  %v1562 = vld [vmem:[%s1559 + $0x10] sm:$0xff]
  %v1563 = vld [vmem:[%s1559 + $0x18] sm:$0xff]
  %v1564 = vld [vmem:[%s1559 + $0x20] sm:$0xff]
  %v1565 = vld [vmem:[%s1559 + $0x28] sm:$0xff]
  %v1566 = vld [vmem:[%s1559 + $0x30] sm:$0xff]
  %v1567 = vld [vmem:[%s1559 + $0x38] sm:$0xff]
  %v1568 = vld [vmem:[%s1559 + $0x40] sm:$0xff]
  %v1569 = vld [vmem:[%s1559 + $0x48] sm:$0xff]
  %v1570 = vld [vmem:[%s1559 + $0x50] sm:$0xff]
  %v1571 = vld [vmem:[%s1559 + $0x58] sm:$0xff]
  %v1572 = vld [vmem:[%s1559 + $0x60] sm:$0xff]
  %v1573 = vld [vmem:[%s1559 + $0x68] sm:$0xff]
  %v1574 = vld [vmem:[%s1559 + $0x70] sm:$0xff]
  %v1575 = vld [vmem:[%s1559 + $0x78] sm:$0xff]
  %v1576 = vld [vmem:[%s1559 + $0x80] sm:$0xff]
  %v1577 = vld [vmem:[%s1559 + $0x88] sm:$0xff]
  %v1578 = vld [vmem:[%s1559 + $0x90] sm:$0xff]
  %v1579 = vld [vmem:[%s1559 + $0x98] sm:$0xff]
  %v1580 = vld [vmem:[%s1559 + $0xa0] sm:$0xff]
  %v1581 = vld [vmem:[%s1559 + $0xa8] sm:$0xff]
  %v1582 = vld [vmem:[%s1559 + $0xb0] sm:$0x33]
  %v1585 = vunpack.c.l.b16 %v1534
  %v1586 = vunpack.c.h.b16 %v1534
  %v1587 = vunpack.c.l.b16 %v1535
  %v1588 = vunpack.c.h.b16 %v1535
  %v1589 = vpack.c.b16 %v1587, %v1585
  %v1590 = vpack.c.b16 %v1588, %v1586
  %v1615 = vunpack.c.l.b16 %v1560
  %v1616 = vunpack.c.h.b16 %v1560
  %v1617 = vunpack.c.l.b16 %v1561
  %v1618 = vunpack.c.h.b16 %v1561
  %v1619 = vunpack.c.l.b16 %v1562
  %v1620 = vunpack.c.h.b16 %v1562
  %v1621 = vunpack.c.l.b16 %v1563
  %v1622 = vunpack.c.h.b16 %v1563
  %v1623 = vunpack.c.l.b16 %v1564
  %v1624 = vunpack.c.h.b16 %v1564
  %v1625 = vunpack.c.l.b16 %v1565
  %v1626 = vunpack.c.h.b16 %v1565
  %v1627 = vunpack.c.l.b16 %v1566
  %v1628 = vunpack.c.h.b16 %v1566
  %v1629 = vunpack.c.l.b16 %v1567
  %v1630 = vunpack.c.h.b16 %v1567
  %v1631 = vunpack.c.l.b16 %v1568
  %v1632 = vunpack.c.h.b16 %v1568
  %v1633 = vunpack.c.l.b16 %v1569
  %v1634 = vunpack.c.h.b16 %v1569
  %v1635 = vunpack.c.l.b16 %v1570
  %v1636 = vunpack.c.h.b16 %v1570
  %v1637 = vunpack.c.l.b16 %v1571
  %v1638 = vunpack.c.h.b16 %v1571
  %v1639 = vunpack.c.l.b16 %v1572
  %v1640 = vunpack.c.h.b16 %v1572
  %v1641 = vunpack.c.l.b16 %v1573
  %v1642 = vunpack.c.h.b16 %v1573
  %v1643 = vunpack.c.l.b16 %v1574
  %v1644 = vunpack.c.h.b16 %v1574
  %v1645 = vunpack.c.l.b16 %v1575
  %v1646 = vunpack.c.h.b16 %v1575
  %v1647 = vunpack.c.l.b16 %v1576
  %v1648 = vunpack.c.h.b16 %v1576
  %v1649 = vunpack.c.l.b16 %v1577
  %v1650 = vunpack.c.h.b16 %v1577
  %v1651 = vunpack.c.l.b16 %v1578
  %v1652 = vunpack.c.h.b16 %v1578
  %v1653 = vunpack.c.l.b16 %v1579
  %v1654 = vunpack.c.h.b16 %v1579
  %v1655 = vunpack.c.l.b16 %v1580
  %v1656 = vunpack.c.h.b16 %v1580
  %v1657 = vunpack.c.l.b16 %v1581
  %v1658 = vunpack.c.h.b16 %v1581
  %v1659 = vunpack.c.l.b16 %v1582
  %v1660 = vunpack.c.h.b16 %v1582
  %v1661 = vpack.c.b16 %v1617, %v1615
  %v1662 = vpack.c.b16 %v1618, %v1616
  %v1663 = vpack.c.b16 %v1621, %v1619
  %v1664 = vpack.c.b16 %v1622, %v1620
  %v1665 = vpack.c.b16 %v1625, %v1623
  %v1666 = vpack.c.b16 %v1626, %v1624
  %v1667 = vpack.c.b16 %v1629, %v1627
  %v1668 = vpack.c.b16 %v1630, %v1628
  %v1669 = vpack.c.b16 %v1633, %v1631
  %v1670 = vpack.c.b16 %v1634, %v1632
  %v1671 = vpack.c.b16 %v1637, %v1635
  %v1672 = vpack.c.b16 %v1638, %v1636
  %v1673 = vpack.c.b16 %v1641, %v1639
  %v1674 = vpack.c.b16 %v1642, %v1640
  %v1675 = vpack.c.b16 %v1645, %v1643
  %v1676 = vpack.c.b16 %v1646, %v1644
  %v1677 = vpack.c.b16 %v1649, %v1647
  %v1678 = vpack.c.b16 %v1650, %v1648
  %v1679 = vpack.c.b16 %v1653, %v1651
  %v1680 = vpack.c.b16 %v1654, %v1652
  %v1681 = vpack.c.b16 %v1657, %v1655
  %v1682 = vpack.c.b16 %v1658, %v1656
  %v1683 = vpack.c.b16 %v1659, %v1659
  %v1684 = vpack.c.b16 %v1660, %v1660
  %vm1707 = vcmask 424960
  %v1709 = vsel %vm1707, %v1590, 0
  %vm1711 = vcmask 1041408
  %v1713 = vsel %vm1711, %v1683, 0
  %v1716 = vsel %vm1711, %v1684, 0
  %1718 = vmatpush.bf16.msra.mxu0 %v1675
  %1719 = vmatpush.bf16.msra.mxu0 %v1673
  %1720 = vmatpush.bf16.msra.mxu0 %v1671
  %1721 = vmatpush.bf16.msra.mxu0 %v1669
  %1722 = vmatpush.bf16.msra.mxu0 %v1667
  %1723 = vmatpush.bf16.msra.mxu0 %v1665
  %1724 = vmatpush.bf16.msra.mxu0 %v1663
  %1725 = vmatpush.bf16.msra.mxu0 %v1661
  %1726 = vmatmul.bf16.gmra.mxu0 %v1589
  %v1727 = vpop.f32.mrf.mxu0
  %v1728 = vadd.f32 0.0, %v1727
  %v1729 = vpop.f32.mrf.mxu0
  %v1730 = vadd.f32 0.0, %v1729
  %1731 = vdwg.mxu0
  %1732 = vmatpush.bf16.msra.mxu0 0
  %1733 = vmatpush.bf16.msra.mxu0 0
  %1734 = vmatpush.bf16.msra.mxu0 0
  %1735 = vmatpush.bf16.msra.mxu0 0
  %1736 = vmatpush.bf16.msra.mxu0 %v1713
  %1737 = vmatpush.bf16.msra.mxu0 %v1681
  %1738 = vmatpush.bf16.msra.mxu0 %v1679
  %1739 = vmatpush.bf16.msra.mxu0 %v1677
  %1740 = vmatmul.bf16.gmra.mxu0 %v1709
  %v1741 = vpop.f32.mrf.mxu0
  %v1742 = vadd.f32 %v1728, %v1741
  %v1743 = vpop.f32.mrf.mxu0
  %v1744 = vadd.f32 %v1730, %v1743
  %1745 = vdwg.mxu0
  %1746 = vmatpush.bf16.msra.mxu0 %v1676
  %1747 = vmatpush.bf16.msra.mxu0 %v1674
  %1748 = vmatpush.bf16.msra.mxu0 %v1672
  %1749 = vmatpush.bf16.msra.mxu0 %v1670
  %1750 = vmatpush.bf16.msra.mxu0 %v1668
  %1751 = vmatpush.bf16.msra.mxu0 %v1666
  %1752 = vmatpush.bf16.msra.mxu0 %v1664
  %1753 = vmatpush.bf16.msra.mxu0 %v1662
  %1754 = vmatmul.bf16.gmra.mxu0 %v1589
  %v1755 = vpop.f32.mrf.mxu0
  %v1756 = vadd.f32 0.0, %v1755
  %v1757 = vpop.f32.mrf.mxu0
  %v1758 = vadd.f32 0.0, %v1757
  %1759 = vdwg.mxu0
  %1760 = vmatpush.bf16.msra.mxu0 0
  %1761 = vmatpush.bf16.msra.mxu0 0
  %1762 = vmatpush.bf16.msra.mxu0 0
  %1763 = vmatpush.bf16.msra.mxu0 0
  %1764 = vmatpush.bf16.msra.mxu0 %v1716
  %1765 = vmatpush.bf16.msra.mxu0 %v1682
  %1766 = vmatpush.bf16.msra.mxu0 %v1680
  %1767 = vmatpush.bf16.msra.mxu0 %v1678
  %1768 = vmatmul.bf16.gmra.mxu0 %v1709
  %v1769 = vpop.f32.mrf.mxu0
  %v1770 = vadd.f32 %v1756, %v1769
  %v1771 = vpop.f32.mrf.mxu0
  %v1772 = vadd.f32 %v1758, %v1771
  %1773 = vdwg.mxu0
  %v1776 = vunpack.c.l.b16 %v1532
  %v1777 = vunpack.c.h.b16 %v1532
  %v1778 = vunpack.c.l.b16 %v1533
  %v1779 = vunpack.c.h.b16 %v1533
  %v1780 = vpack.c.b16 %v1778, %v1776
  %v1781 = vpack.c.b16 %v1779, %v1777
  %v1806 = vunpack.c.l.b16 %v1536
  %v1807 = vunpack.c.h.b16 %v1536
  %v1808 = vunpack.c.l.b16 %v1537
  %v1809 = vunpack.c.h.b16 %v1537
  %v1810 = vunpack.c.l.b16 %v1538
  %v1811 = vunpack.c.h.b16 %v1538
  %v1812 = vunpack.c.l.b16 %v1539
  %v1813 = vunpack.c.h.b16 %v1539
  %v1814 = vunpack.c.l.b16 %v1540
  %v1815 = vunpack.c.h.b16 %v1540
  %v1816 = vunpack.c.l.b16 %v1541
  %v1817 = vunpack.c.h.b16 %v1541
  %v1818 = vunpack.c.l.b16 %v1542
  %v1819 = vunpack.c.h.b16 %v1542
  %v1820 = vunpack.c.l.b16 %v1543
  %v1821 = vunpack.c.h.b16 %v1543
  %v1822 = vunpack.c.l.b16 %v1544
  %v1823 = vunpack.c.h.b16 %v1544
  %v1824 = vunpack.c.l.b16 %v1545
  %v1825 = vunpack.c.h.b16 %v1545
  %v1826 = vunpack.c.l.b16 %v1546
  %v1827 = vunpack.c.h.b16 %v1546
  %v1828 = vunpack.c.l.b16 %v1547
  %v1829 = vunpack.c.h.b16 %v1547
  %v1830 = vunpack.c.l.b16 %v1548
  %v1831 = vunpack.c.h.b16 %v1548
  %v1832 = vunpack.c.l.b16 %v1549
  %v1833 = vunpack.c.h.b16 %v1549
  %v1834 = vunpack.c.l.b16 %v1550
  %v1835 = vunpack.c.h.b16 %v1550
  %v1836 = vunpack.c.l.b16 %v1551
  %v1837 = vunpack.c.h.b16 %v1551
  %v1838 = vunpack.c.l.b16 %v1552
  %v1839 = vunpack.c.h.b16 %v1552
  %v1840 = vunpack.c.l.b16 %v1553
  %v1841 = vunpack.c.h.b16 %v1553
  %v1842 = vunpack.c.l.b16 %v1554
  %v1843 = vunpack.c.h.b16 %v1554
  %v1844 = vunpack.c.l.b16 %v1555
  %v1845 = vunpack.c.h.b16 %v1555
  %v1846 = vunpack.c.l.b16 %v1556
  %v1847 = vunpack.c.h.b16 %v1556
  %v1848 = vunpack.c.l.b16 %v1557
  %v1849 = vunpack.c.h.b16 %v1557
  %v1850 = vunpack.c.l.b16 %v1558
  %v1851 = vunpack.c.h.b16 %v1558
  %v1852 = vpack.c.b16 %v1808, %v1806
  %v1853 = vpack.c.b16 %v1809, %v1807
  %v1854 = vpack.c.b16 %v1812, %v1810
  %v1855 = vpack.c.b16 %v1813, %v1811
  %v1856 = vpack.c.b16 %v1816, %v1814
  %v1857 = vpack.c.b16 %v1817, %v1815
  %v1858 = vpack.c.b16 %v1820, %v1818
  %v1859 = vpack.c.b16 %v1821, %v1819
  %v1860 = vpack.c.b16 %v1824, %v1822
  %v1861 = vpack.c.b16 %v1825, %v1823
  %v1862 = vpack.c.b16 %v1828, %v1826
  %v1863 = vpack.c.b16 %v1829, %v1827
  %v1864 = vpack.c.b16 %v1832, %v1830
  %v1865 = vpack.c.b16 %v1833, %v1831
  %v1866 = vpack.c.b16 %v1836, %v1834
  %v1867 = vpack.c.b16 %v1837, %v1835
  %v1868 = vpack.c.b16 %v1840, %v1838
  %v1869 = vpack.c.b16 %v1841, %v1839
  %v1870 = vpack.c.b16 %v1844, %v1842
  %v1871 = vpack.c.b16 %v1845, %v1843
  %v1872 = vpack.c.b16 %v1848, %v1846
  %v1873 = vpack.c.b16 %v1849, %v1847
  %v1874 = vpack.c.b16 %v1850, %v1850
  %v1875 = vpack.c.b16 %v1851, %v1851
  %v1899 = vsel %vm1707, %v1781, 0
  %v1902 = vsel %vm1711, %v1874, 0
  %v1905 = vsel %vm1711, %v1875, 0
  %1907 = vmatpush.bf16.msra.mxu0 %v1866
  %1908 = vmatpush.bf16.msra.mxu0 %v1864
  %1909 = vmatpush.bf16.msra.mxu0 %v1862
  %1910 = vmatpush.bf16.msra.mxu0 %v1860
  %1911 = vmatpush.bf16.msra.mxu0 %v1858
  %1912 = vmatpush.bf16.msra.mxu0 %v1856
  %1913 = vmatpush.bf16.msra.mxu0 %v1854
  %1914 = vmatpush.bf16.msra.mxu0 %v1852
  %1915 = vmatmul.bf16.gmra.mxu0 %v1780
  %v1916 = vpop.f32.mrf.mxu0
  %v1917 = vadd.f32 %v1742, %v1916
  %v1918 = vpop.f32.mrf.mxu0
  %v1919 = vadd.f32 %v1744, %v1918
  %1920 = vdwg.mxu0
  %1921 = vmatpush.bf16.msra.mxu0 0
  %1922 = vmatpush.bf16.msra.mxu0 0
  %1923 = vmatpush.bf16.msra.mxu0 0
  %1924 = vmatpush.bf16.msra.mxu0 0
  %1925 = vmatpush.bf16.msra.mxu0 %v1902
  %1926 = vmatpush.bf16.msra.mxu0 %v1872
  %1927 = vmatpush.bf16.msra.mxu0 %v1870
  %1928 = vmatpush.bf16.msra.mxu0 %v1868
  %1929 = vmatmul.bf16.gmra.mxu0 %v1899
  %v1930 = vpop.f32.mrf.mxu0
  %v1931 = vadd.f32 %v1917, %v1930
  %v1932 = vpop.f32.mrf.mxu0
  %v1933 = vadd.f32 %v1919, %v1932
  %1934 = vdwg.mxu0
  %1935 = vmatpush.bf16.msra.mxu0 %v1867
  %1936 = vmatpush.bf16.msra.mxu0 %v1865
  %1937 = vmatpush.bf16.msra.mxu0 %v1863
  %1938 = vmatpush.bf16.msra.mxu0 %v1861
  %1939 = vmatpush.bf16.msra.mxu0 %v1859
  %1940 = vmatpush.bf16.msra.mxu0 %v1857
  %1941 = vmatpush.bf16.msra.mxu0 %v1855
  %1942 = vmatpush.bf16.msra.mxu0 %v1853
  %1943 = vmatmul.bf16.gmra.mxu0 %v1780
  %v1944 = vpop.f32.mrf.mxu0
  %v1945 = vadd.f32 %v1770, %v1944
  %v1946 = vpop.f32.mrf.mxu0
  %v1947 = vadd.f32 %v1772, %v1946
  %1948 = vdwg.mxu0
  %1949 = vmatpush.bf16.msra.mxu0 0
  %1950 = vmatpush.bf16.msra.mxu0 0
  %1951 = vmatpush.bf16.msra.mxu0 0
  %1952 = vmatpush.bf16.msra.mxu0 0
  %1953 = vmatpush.bf16.msra.mxu0 %v1905
  %1954 = vmatpush.bf16.msra.mxu0 %v1873
  %1955 = vmatpush.bf16.msra.mxu0 %v1871
  %1956 = vmatpush.bf16.msra.mxu0 %v1869
  %1957 = vmatmul.bf16.gmra.mxu0 %v1899
  %v1958 = vpop.f32.mrf.mxu0
  %v1959 = vadd.f32 %v1945, %v1958
  %v1960 = vpop.f32.mrf.mxu0
  %v1961 = vadd.f32 %v1947, %v1960
  %1962 = vdwg.mxu0
  %s1963 = scalar_lea.vmem %s3, 736
  %v1964 = vld [vmem:[%s1963] sm:$0xff]
  %v1965 = vld [vmem:[%s1963 + $0x8] sm:$0xff]
  %v1966 = vld [vmem:[%s1963 + $0x10] sm:$0xff]
  %v1967 = vld [vmem:[%s1963 + $0x18] sm:$0xff]
  %v1968 = vld [vmem:[%s1963 + $0x20] sm:$0xff]
  %v1969 = vld [vmem:[%s1963 + $0x28] sm:$0xff]
  %v1970 = vld [vmem:[%s1963 + $0x30] sm:$0xff]
  %v1971 = vld [vmem:[%s1963 + $0x38] sm:$0xff]
  %v1972 = vld [vmem:[%s1963 + $0x40] sm:$0xff]
  %v1973 = vld [vmem:[%s1963 + $0x48] sm:$0xff]
  %v1974 = vld [vmem:[%s1963 + $0x50] sm:$0xff]
  %v1975 = vld [vmem:[%s1963 + $0x58] sm:$0xff]
  %v1976 = vld [vmem:[%s1963 + $0x60] sm:$0xff]
  %v1977 = vld [vmem:[%s1963 + $0x68] sm:$0xff]
  %v1978 = vld [vmem:[%s1963 + $0x70] sm:$0xff]
  %v1979 = vld [vmem:[%s1963 + $0x78] sm:$0xff]
  %v1980 = vld [vmem:[%s1963 + $0x80] sm:$0xff]
  %v1981 = vld [vmem:[%s1963 + $0x88] sm:$0xff]
  %v1982 = vld [vmem:[%s1963 + $0x90] sm:$0xff]
  %v1983 = vld [vmem:[%s1963 + $0x98] sm:$0xff]
  %v1984 = vld [vmem:[%s1963 + $0xa0] sm:$0xff]
  %v1985 = vld [vmem:[%s1963 + $0xa8] sm:$0xff]
  %v1986 = vld [vmem:[%s1963 + $0xb0] sm:$0x33]
  %v1987 = vrot.slane %v1780, 1
  %v1988 = vrot.slane %v1781, 1
  %v2013 = vunpack.c.l.b16 %v1964
  %v2014 = vunpack.c.h.b16 %v1964
  %v2015 = vunpack.c.l.b16 %v1965
  %v2016 = vunpack.c.h.b16 %v1965
  %v2017 = vunpack.c.l.b16 %v1966
  %v2018 = vunpack.c.h.b16 %v1966
  %v2019 = vunpack.c.l.b16 %v1967
  %v2020 = vunpack.c.h.b16 %v1967
  %v2021 = vunpack.c.l.b16 %v1968
  %v2022 = vunpack.c.h.b16 %v1968
  %v2023 = vunpack.c.l.b16 %v1969
  %v2024 = vunpack.c.h.b16 %v1969
  %v2025 = vunpack.c.l.b16 %v1970
  %v2026 = vunpack.c.h.b16 %v1970
  %v2027 = vunpack.c.l.b16 %v1971
  %v2028 = vunpack.c.h.b16 %v1971
  %v2029 = vunpack.c.l.b16 %v1972
  %v2030 = vunpack.c.h.b16 %v1972
  %v2031 = vunpack.c.l.b16 %v1973
  %v2032 = vunpack.c.h.b16 %v1973
  %v2033 = vunpack.c.l.b16 %v1974
  %v2034 = vunpack.c.h.b16 %v1974
  %v2035 = vunpack.c.l.b16 %v1975
  %v2036 = vunpack.c.h.b16 %v1975
  %v2037 = vunpack.c.l.b16 %v1976
  %v2038 = vunpack.c.h.b16 %v1976
  %v2039 = vunpack.c.l.b16 %v1977
  %v2040 = vunpack.c.h.b16 %v1977
  %v2041 = vunpack.c.l.b16 %v1978
  %v2042 = vunpack.c.h.b16 %v1978
  %v2043 = vunpack.c.l.b16 %v1979
  %v2044 = vunpack.c.h.b16 %v1979
  %v2045 = vunpack.c.l.b16 %v1980
  %v2046 = vunpack.c.h.b16 %v1980
  %v2047 = vunpack.c.l.b16 %v1981
  %v2048 = vunpack.c.h.b16 %v1981
  %v2049 = vunpack.c.l.b16 %v1982
  %v2050 = vunpack.c.h.b16 %v1982
  %v2051 = vunpack.c.l.b16 %v1983
  %v2052 = vunpack.c.h.b16 %v1983
  %v2053 = vunpack.c.l.b16 %v1984
  %v2054 = vunpack.c.h.b16 %v1984
  %v2055 = vunpack.c.l.b16 %v1985
  %v2056 = vunpack.c.h.b16 %v1985
  %v2057 = vunpack.c.l.b16 %v1986
  %v2058 = vunpack.c.h.b16 %v1986
  %v2059 = vpack.c.b16 %v2015, %v2013
  %v2060 = vpack.c.b16 %v2016, %v2014
  %v2061 = vpack.c.b16 %v2019, %v2017
  %v2062 = vpack.c.b16 %v2020, %v2018
  %v2063 = vpack.c.b16 %v2023, %v2021
  %v2064 = vpack.c.b16 %v2024, %v2022
  %v2065 = vpack.c.b16 %v2027, %v2025
  %v2066 = vpack.c.b16 %v2028, %v2026
  %v2067 = vpack.c.b16 %v2031, %v2029
  %v2068 = vpack.c.b16 %v2032, %v2030
  %v2069 = vpack.c.b16 %v2035, %v2033
  %v2070 = vpack.c.b16 %v2036, %v2034
  %v2071 = vpack.c.b16 %v2039, %v2037
  %v2072 = vpack.c.b16 %v2040, %v2038
  %v2073 = vpack.c.b16 %v2043, %v2041
  %v2074 = vpack.c.b16 %v2044, %v2042
  %v2075 = vpack.c.b16 %v2047, %v2045
  %v2076 = vpack.c.b16 %v2048, %v2046
  %v2077 = vpack.c.b16 %v2051, %v2049
  %v2078 = vpack.c.b16 %v2052, %v2050
  %v2079 = vpack.c.b16 %v2055, %v2053
  %v2080 = vpack.c.b16 %v2056, %v2054
  %v2081 = vpack.c.b16 %v2057, %v2057
  %v2082 = vpack.c.b16 %v2058, %v2058
  %v2106 = vsel %vm1707, %v1988, 0
  %v2109 = vsel %vm1711, %v2081, 0
  %v2112 = vsel %vm1711, %v2082, 0
  %2114 = vmatpush.bf16.msra.mxu0 %v2073
  %2115 = vmatpush.bf16.msra.mxu0 %v2071
  %2116 = vmatpush.bf16.msra.mxu0 %v2069
  %2117 = vmatpush.bf16.msra.mxu0 %v2067
  %2118 = vmatpush.bf16.msra.mxu0 %v2065
  %2119 = vmatpush.bf16.msra.mxu0 %v2063
  %2120 = vmatpush.bf16.msra.mxu0 %v2061
  %2121 = vmatpush.bf16.msra.mxu0 %v2059
  %2122 = vmatmul.bf16.gmra.mxu0 %v1987
  %v2123 = vpop.f32.mrf.mxu0
  %v2124 = vadd.f32 0.0, %v2123
  %v2125 = vpop.f32.mrf.mxu0
  %v2126 = vadd.f32 0.0, %v2125
  %2127 = vdwg.mxu0
  %2128 = vmatpush.bf16.msra.mxu0 0
  %2129 = vmatpush.bf16.msra.mxu0 0
  %2130 = vmatpush.bf16.msra.mxu0 0
  %2131 = vmatpush.bf16.msra.mxu0 0
  %2132 = vmatpush.bf16.msra.mxu0 %v2109
  %2133 = vmatpush.bf16.msra.mxu0 %v2079
  %2134 = vmatpush.bf16.msra.mxu0 %v2077
  %2135 = vmatpush.bf16.msra.mxu0 %v2075
  %2136 = vmatmul.bf16.gmra.mxu0 %v2106
  %v2137 = vpop.f32.mrf.mxu0
  %v2138 = vadd.f32 %v2124, %v2137
  %v2139 = vpop.f32.mrf.mxu0
  %v2140 = vadd.f32 %v2126, %v2139
  %2141 = vdwg.mxu0
  %2142 = vmatpush.bf16.msra.mxu0 %v2074
  %2143 = vmatpush.bf16.msra.mxu0 %v2072
  %2144 = vmatpush.bf16.msra.mxu0 %v2070
  %2145 = vmatpush.bf16.msra.mxu0 %v2068
  %2146 = vmatpush.bf16.msra.mxu0 %v2066
  %2147 = vmatpush.bf16.msra.mxu0 %v2064
  %2148 = vmatpush.bf16.msra.mxu0 %v2062
  %2149 = vmatpush.bf16.msra.mxu0 %v2060
  %2150 = vmatmul.bf16.gmra.mxu0 %v1987
  %v2151 = vpop.f32.mrf.mxu0
  %v2152 = vadd.f32 0.0, %v2151
  %v2153 = vpop.f32.mrf.mxu0
  %v2154 = vadd.f32 0.0, %v2153
  %2155 = vdwg.mxu0
  %2156 = vmatpush.bf16.msra.mxu0 0
  %2157 = vmatpush.bf16.msra.mxu0 0
  %2158 = vmatpush.bf16.msra.mxu0 0
  %2159 = vmatpush.bf16.msra.mxu0 0
  %2160 = vmatpush.bf16.msra.mxu0 %v2112
  %2161 = vmatpush.bf16.msra.mxu0 %v2080
  %2162 = vmatpush.bf16.msra.mxu0 %v2078
  %2163 = vmatpush.bf16.msra.mxu0 %v2076
  %2164 = vmatmul.bf16.gmra.mxu0 %v2106
  %v2165 = vpop.f32.mrf.mxu0
  %v2166 = vadd.f32 %v2152, %v2165
  %v2167 = vpop.f32.mrf.mxu0
  %v2168 = vadd.f32 %v2154, %v2167
  %2169 = vdwg.mxu0
  %v2170 = vadd.f32 %v1931, %v2138
  %v2171 = vadd.f32 %v1959, %v2166
  %v2172 = vadd.f32 %v1933, %v2140
  %v2173 = vadd.f32 %v1961, %v2168
  %s2174 = scalar_lea.vmem %s3, 1104
  %v2175 = vld [vmem:[%s2174] sm:$0xff]
  %v2176 = vld [vmem:[%s2174 + $0x8] sm:$0xff]
  %v2177 = vld [vmem:[%s2174 + $0x10] sm:$0xff]
  %v2178 = vld [vmem:[%s2174 + $0x18] sm:$0xff]
  %v2179 = vld [vmem:[%s2174 + $0x20] sm:$0xff]
  %v2180 = vld [vmem:[%s2174 + $0x28] sm:$0xff]
  %v2181 = vld [vmem:[%s2174 + $0x30] sm:$0xff]
  %v2182 = vld [vmem:[%s2174 + $0x38] sm:$0xff]
  %v2183 = vld [vmem:[%s2174 + $0x40] sm:$0xff]
  %v2184 = vld [vmem:[%s2174 + $0x48] sm:$0xff]
  %v2185 = vld [vmem:[%s2174 + $0x50] sm:$0xff]
  %v2186 = vld [vmem:[%s2174 + $0x58] sm:$0xff]
  %v2187 = vld [vmem:[%s2174 + $0x60] sm:$0xff]
  %v2188 = vld [vmem:[%s2174 + $0x68] sm:$0xff]
  %v2189 = vld [vmem:[%s2174 + $0x70] sm:$0xff]
  %v2190 = vld [vmem:[%s2174 + $0x78] sm:$0xff]
  %v2191 = vld [vmem:[%s2174 + $0x80] sm:$0xff]
  %v2192 = vld [vmem:[%s2174 + $0x88] sm:$0xff]
  %v2193 = vld [vmem:[%s2174 + $0x90] sm:$0xff]
  %v2194 = vld [vmem:[%s2174 + $0x98] sm:$0xff]
  %v2195 = vld [vmem:[%s2174 + $0xa0] sm:$0xff]
  %v2196 = vld [vmem:[%s2174 + $0xa8] sm:$0xff]
  %v2197 = vld [vmem:[%s2174 + $0xb0] sm:$0x33]
  %v2198 = vrot.slane %v1589, 1
  %v2199 = vrot.slane %v1590, 1
  %v2224 = vunpack.c.l.b16 %v2175
  %v2225 = vunpack.c.h.b16 %v2175
  %v2226 = vunpack.c.l.b16 %v2176
  %v2227 = vunpack.c.h.b16 %v2176
  %v2228 = vunpack.c.l.b16 %v2177
  %v2229 = vunpack.c.h.b16 %v2177
  %v2230 = vunpack.c.l.b16 %v2178
  %v2231 = vunpack.c.h.b16 %v2178
  %v2232 = vunpack.c.l.b16 %v2179
  %v2233 = vunpack.c.h.b16 %v2179
  %v2234 = vunpack.c.l.b16 %v2180
  %v2235 = vunpack.c.h.b16 %v2180
  %v2236 = vunpack.c.l.b16 %v2181
  %v2237 = vunpack.c.h.b16 %v2181
  %v2238 = vunpack.c.l.b16 %v2182
  %v2239 = vunpack.c.h.b16 %v2182
  %v2240 = vunpack.c.l.b16 %v2183
  %v2241 = vunpack.c.h.b16 %v2183
  %v2242 = vunpack.c.l.b16 %v2184
  %v2243 = vunpack.c.h.b16 %v2184
  %v2244 = vunpack.c.l.b16 %v2185
  %v2245 = vunpack.c.h.b16 %v2185
  %v2246 = vunpack.c.l.b16 %v2186
  %v2247 = vunpack.c.h.b16 %v2186
  %v2248 = vunpack.c.l.b16 %v2187
  %v2249 = vunpack.c.h.b16 %v2187
  %v2250 = vunpack.c.l.b16 %v2188
  %v2251 = vunpack.c.h.b16 %v2188
  %v2252 = vunpack.c.l.b16 %v2189
  %v2253 = vunpack.c.h.b16 %v2189
  %v2254 = vunpack.c.l.b16 %v2190
  %v2255 = vunpack.c.h.b16 %v2190
  %v2256 = vunpack.c.l.b16 %v2191
  %v2257 = vunpack.c.h.b16 %v2191
  %v2258 = vunpack.c.l.b16 %v2192
  %v2259 = vunpack.c.h.b16 %v2192
  %v2260 = vunpack.c.l.b16 %v2193
  %v2261 = vunpack.c.h.b16 %v2193
  %v2262 = vunpack.c.l.b16 %v2194
  %v2263 = vunpack.c.h.b16 %v2194
  %v2264 = vunpack.c.l.b16 %v2195
  %v2265 = vunpack.c.h.b16 %v2195
  %v2266 = vunpack.c.l.b16 %v2196
  %v2267 = vunpack.c.h.b16 %v2196
  %v2268 = vunpack.c.l.b16 %v2197
  %v2269 = vunpack.c.h.b16 %v2197
  %v2270 = vpack.c.b16 %v2226, %v2224
  %v2271 = vpack.c.b16 %v2227, %v2225
  %v2272 = vpack.c.b16 %v2230, %v2228
  %v2273 = vpack.c.b16 %v2231, %v2229
  %v2274 = vpack.c.b16 %v2234, %v2232
  %v2275 = vpack.c.b16 %v2235, %v2233
  %v2276 = vpack.c.b16 %v2238, %v2236
  %v2277 = vpack.c.b16 %v2239, %v2237
  %v2278 = vpack.c.b16 %v2242, %v2240
  %v2279 = vpack.c.b16 %v2243, %v2241
  %v2280 = vpack.c.b16 %v2246, %v2244
  %v2281 = vpack.c.b16 %v2247, %v2245
  %v2282 = vpack.c.b16 %v2250, %v2248
  %v2283 = vpack.c.b16 %v2251, %v2249
  %v2284 = vpack.c.b16 %v2254, %v2252
  %v2285 = vpack.c.b16 %v2255, %v2253
  %v2286 = vpack.c.b16 %v2258, %v2256
  %v2287 = vpack.c.b16 %v2259, %v2257
  %v2288 = vpack.c.b16 %v2262, %v2260
  %v2289 = vpack.c.b16 %v2263, %v2261
  %v2290 = vpack.c.b16 %v2266, %v2264
  %v2291 = vpack.c.b16 %v2267, %v2265
  %v2292 = vpack.c.b16 %v2268, %v2268
  %v2293 = vpack.c.b16 %v2269, %v2269
  %v2317 = vsel %vm1707, %v2199, 0
  %v2320 = vsel %vm1711, %v2292, 0
  %v2323 = vsel %vm1711, %v2293, 0
  %2325 = vmatpush.bf16.msra.mxu0 %v2284
  %2326 = vmatpush.bf16.msra.mxu0 %v2282
  %2327 = vmatpush.bf16.msra.mxu0 %v2280
  %2328 = vmatpush.bf16.msra.mxu0 %v2278
  %2329 = vmatpush.bf16.msra.mxu0 %v2276
  %2330 = vmatpush.bf16.msra.mxu0 %v2274
  %2331 = vmatpush.bf16.msra.mxu0 %v2272
  %2332 = vmatpush.bf16.msra.mxu0 %v2270
  %2333 = vmatmul.bf16.gmra.mxu0 %v2198
  %v2334 = vpop.f32.mrf.mxu0
  %v2335 = vadd.f32 0.0, %v2334
  %v2336 = vpop.f32.mrf.mxu0
  %v2337 = vadd.f32 0.0, %v2336
  %2338 = vdwg.mxu0
  %2339 = vmatpush.bf16.msra.mxu0 0
  %2340 = vmatpush.bf16.msra.mxu0 0
  %2341 = vmatpush.bf16.msra.mxu0 0
  %2342 = vmatpush.bf16.msra.mxu0 0
  %2343 = vmatpush.bf16.msra.mxu0 %v2320
  %2344 = vmatpush.bf16.msra.mxu0 %v2290
  %2345 = vmatpush.bf16.msra.mxu0 %v2288
  %2346 = vmatpush.bf16.msra.mxu0 %v2286
  %2347 = vmatmul.bf16.gmra.mxu0 %v2317
  %v2348 = vpop.f32.mrf.mxu0
  %v2349 = vadd.f32 %v2335, %v2348
  %v2350 = vpop.f32.mrf.mxu0
  %v2351 = vadd.f32 %v2337, %v2350
  %2352 = vdwg.mxu0
  %2353 = vmatpush.bf16.msra.mxu0 %v2285
  %2354 = vmatpush.bf16.msra.mxu0 %v2283
  %2355 = vmatpush.bf16.msra.mxu0 %v2281
  %2356 = vmatpush.bf16.msra.mxu0 %v2279
  %2357 = vmatpush.bf16.msra.mxu0 %v2277
  %2358 = vmatpush.bf16.msra.mxu0 %v2275
  %2359 = vmatpush.bf16.msra.mxu0 %v2273
  %2360 = vmatpush.bf16.msra.mxu0 %v2271
  %2361 = vmatmul.bf16.gmra.mxu0 %v2198
  %v2362 = vpop.f32.mrf.mxu0
  %v2363 = vadd.f32 0.0, %v2362
  %v2364 = vpop.f32.mrf.mxu0
  %v2365 = vadd.f32 0.0, %v2364
  %2366 = vdwg.mxu0
  %2367 = vmatpush.bf16.msra.mxu0 0
  %2368 = vmatpush.bf16.msra.mxu0 0
  %2369 = vmatpush.bf16.msra.mxu0 0
  %2370 = vmatpush.bf16.msra.mxu0 0
  %2371 = vmatpush.bf16.msra.mxu0 %v2323
  %2372 = vmatpush.bf16.msra.mxu0 %v2291
  %2373 = vmatpush.bf16.msra.mxu0 %v2289
  %2374 = vmatpush.bf16.msra.mxu0 %v2287
  %2375 = vmatmul.bf16.gmra.mxu0 %v2317
  %v2376 = vpop.f32.mrf.mxu0
  %v2377 = vadd.f32 %v2363, %v2376
  %v2378 = vpop.f32.mrf.mxu0
  %v2379 = vadd.f32 %v2365, %v2378
  %2380 = vdwg.mxu0
  %v2381 = vadd.f32 %v2170, %v2349
  %v2382 = vadd.f32 %v2171, %v2377
  %v2383 = vadd.f32 %v2172, %v2351
  %v2384 = vadd.f32 %v2173, %v2379
  %s2385 = scalar_lea.vmem %s3, 184
  %v2386 = vld [vmem:[%s2385] sm:$0xff]
  %v2387 = vld [vmem:[%s2385 + $0x8] sm:$0xff]
  %v2388 = vld [vmem:[%s2385 + $0x10] sm:$0xff]
  %v2389 = vld [vmem:[%s2385 + $0x18] sm:$0xff]
  %v2390 = vld [vmem:[%s2385 + $0x20] sm:$0xff]
  %v2391 = vld [vmem:[%s2385 + $0x28] sm:$0xff]
  %v2392 = vld [vmem:[%s2385 + $0x30] sm:$0xff]
  %v2393 = vld [vmem:[%s2385 + $0x38] sm:$0xff]
  %v2394 = vld [vmem:[%s2385 + $0x40] sm:$0xff]
  %v2395 = vld [vmem:[%s2385 + $0x48] sm:$0xff]
  %v2396 = vld [vmem:[%s2385 + $0x50] sm:$0xff]
  %v2397 = vld [vmem:[%s2385 + $0x58] sm:$0xff]
  %v2398 = vld [vmem:[%s2385 + $0x60] sm:$0xff]
  %v2399 = vld [vmem:[%s2385 + $0x68] sm:$0xff]
  %v2400 = vld [vmem:[%s2385 + $0x70] sm:$0xff]
  %v2401 = vld [vmem:[%s2385 + $0x78] sm:$0xff]
  %v2402 = vld [vmem:[%s2385 + $0x80] sm:$0xff]
  %v2403 = vld [vmem:[%s2385 + $0x88] sm:$0xff]
  %v2404 = vld [vmem:[%s2385 + $0x90] sm:$0xff]
  %v2405 = vld [vmem:[%s2385 + $0x98] sm:$0xff]
  %v2406 = vld [vmem:[%s2385 + $0xa0] sm:$0xff]
  %v2407 = vld [vmem:[%s2385 + $0xa8] sm:$0xff]
  %v2408 = vld [vmem:[%s2385 + $0xb0] sm:$0x33]
  %s2409 = scalar_lea.vmem %s3, 552
  %v2410 = vld [vmem:[%s2409] sm:$0xff]
  %v2411 = vld [vmem:[%s2409 + $0x8] sm:$0xff]
  %v2412 = vld [vmem:[%s2409 + $0x10] sm:$0xff]
  %v2413 = vld [vmem:[%s2409 + $0x18] sm:$0xff]
  %v2414 = vld [vmem:[%s2409 + $0x20] sm:$0xff]
  %v2415 = vld [vmem:[%s2409 + $0x28] sm:$0xff]
  %v2416 = vld [vmem:[%s2409 + $0x30] sm:$0xff]
  %v2417 = vld [vmem:[%s2409 + $0x38] sm:$0xff]
  %v2418 = vld [vmem:[%s2409 + $0x40] sm:$0xff]
  %v2419 = vld [vmem:[%s2409 + $0x48] sm:$0xff]
  %v2420 = vld [vmem:[%s2409 + $0x50] sm:$0xff]
  %v2421 = vld [vmem:[%s2409 + $0x58] sm:$0xff]
  %v2422 = vld [vmem:[%s2409 + $0x60] sm:$0xff]
  %v2423 = vld [vmem:[%s2409 + $0x68] sm:$0xff]
  %v2424 = vld [vmem:[%s2409 + $0x70] sm:$0xff]
  %v2425 = vld [vmem:[%s2409 + $0x78] sm:$0xff]
  %v2426 = vld [vmem:[%s2409 + $0x80] sm:$0xff]
  %v2427 = vld [vmem:[%s2409 + $0x88] sm:$0xff]
  %v2428 = vld [vmem:[%s2409 + $0x90] sm:$0xff]
  %v2429 = vld [vmem:[%s2409 + $0x98] sm:$0xff]
  %v2430 = vld [vmem:[%s2409 + $0xa0] sm:$0xff]
  %v2431 = vld [vmem:[%s2409 + $0xa8] sm:$0xff]
  %v2432 = vld [vmem:[%s2409 + $0xb0] sm:$0x33]
  %v2456 = vunpack.c.l.b16 %v2410
  %v2457 = vunpack.c.h.b16 %v2410
  %v2458 = vunpack.c.l.b16 %v2411
  %v2459 = vunpack.c.h.b16 %v2411
  %v2460 = vunpack.c.l.b16 %v2412
  %v2461 = vunpack.c.h.b16 %v2412
  %v2462 = vunpack.c.l.b16 %v2413
  %v2463 = vunpack.c.h.b16 %v2413
  %v2464 = vunpack.c.l.b16 %v2414
  %v2465 = vunpack.c.h.b16 %v2414
  %v2466 = vunpack.c.l.b16 %v2415
  %v2467 = vunpack.c.h.b16 %v2415
  %v2468 = vunpack.c.l.b16 %v2416
  %v2469 = vunpack.c.h.b16 %v2416
  %v2470 = vunpack.c.l.b16 %v2417
  %v2471 = vunpack.c.h.b16 %v2417
  %v2472 = vunpack.c.l.b16 %v2418
  %v2473 = vunpack.c.h.b16 %v2418
  %v2474 = vunpack.c.l.b16 %v2419
  %v2475 = vunpack.c.h.b16 %v2419
  %v2476 = vunpack.c.l.b16 %v2420
  %v2477 = vunpack.c.h.b16 %v2420
  %v2478 = vunpack.c.l.b16 %v2421
  %v2479 = vunpack.c.h.b16 %v2421
  %v2480 = vunpack.c.l.b16 %v2422
  %v2481 = vunpack.c.h.b16 %v2422
  %v2482 = vunpack.c.l.b16 %v2423
  %v2483 = vunpack.c.h.b16 %v2423
  %v2484 = vunpack.c.l.b16 %v2424
  %v2485 = vunpack.c.h.b16 %v2424
  %v2486 = vunpack.c.l.b16 %v2425
  %v2487 = vunpack.c.h.b16 %v2425
  %v2488 = vunpack.c.l.b16 %v2426
  %v2489 = vunpack.c.h.b16 %v2426
  %v2490 = vunpack.c.l.b16 %v2427
  %v2491 = vunpack.c.h.b16 %v2427
  %v2492 = vunpack.c.l.b16 %v2428
  %v2493 = vunpack.c.h.b16 %v2428
  %v2494 = vunpack.c.l.b16 %v2429
  %v2495 = vunpack.c.h.b16 %v2429
  %v2496 = vunpack.c.l.b16 %v2430
  %v2497 = vunpack.c.h.b16 %v2430
  %v2498 = vunpack.c.l.b16 %v2431
  %v2499 = vunpack.c.h.b16 %v2431
  %v2500 = vunpack.c.l.b16 %v2432
  %v2501 = vunpack.c.h.b16 %v2432
  %v2502 = vpack.c.b16 %v2458, %v2456
  %v2503 = vpack.c.b16 %v2459, %v2457
  %v2504 = vpack.c.b16 %v2462, %v2460
  %v2505 = vpack.c.b16 %v2463, %v2461
  %v2506 = vpack.c.b16 %v2466, %v2464
  %v2507 = vpack.c.b16 %v2467, %v2465
  %v2508 = vpack.c.b16 %v2470, %v2468
  %v2509 = vpack.c.b16 %v2471, %v2469
  %v2510 = vpack.c.b16 %v2474, %v2472
  %v2511 = vpack.c.b16 %v2475, %v2473
  %v2512 = vpack.c.b16 %v2478, %v2476
  %v2513 = vpack.c.b16 %v2479, %v2477
  %v2514 = vpack.c.b16 %v2482, %v2480
  %v2515 = vpack.c.b16 %v2483, %v2481
  %v2516 = vpack.c.b16 %v2486, %v2484
  %v2517 = vpack.c.b16 %v2487, %v2485
  %v2518 = vpack.c.b16 %v2490, %v2488
  %v2519 = vpack.c.b16 %v2491, %v2489
  %v2520 = vpack.c.b16 %v2494, %v2492
  %v2521 = vpack.c.b16 %v2495, %v2493
  %v2522 = vpack.c.b16 %v2498, %v2496
  %v2523 = vpack.c.b16 %v2499, %v2497
  %v2524 = vpack.c.b16 %v2500, %v2500
  %v2525 = vpack.c.b16 %v2501, %v2501
  %v2549 = vsel %vm1711, %v2524, 0
  %v2552 = vsel %vm1711, %v2525, 0
  %2554 = vmatpush.bf16.msra.mxu0 %v2516
  %2555 = vmatpush.bf16.msra.mxu0 %v2514
  %2556 = vmatpush.bf16.msra.mxu0 %v2512
  %2557 = vmatpush.bf16.msra.mxu0 %v2510
  %2558 = vmatpush.bf16.msra.mxu0 %v2508
  %2559 = vmatpush.bf16.msra.mxu0 %v2506
  %2560 = vmatpush.bf16.msra.mxu0 %v2504
  %2561 = vmatpush.bf16.msra.mxu0 %v2502
  %2562 = vmatmul.bf16.gmra.mxu0 %v1589
  %v2563 = vpop.f32.mrf.mxu0
  %v2564 = vadd.f32 0.0, %v2563
  %v2565 = vpop.f32.mrf.mxu0
  %v2566 = vadd.f32 0.0, %v2565
  %2567 = vdwg.mxu0
  %2568 = vmatpush.bf16.msra.mxu0 0
  %2569 = vmatpush.bf16.msra.mxu0 0
  %2570 = vmatpush.bf16.msra.mxu0 0
  %2571 = vmatpush.bf16.msra.mxu0 0
  %2572 = vmatpush.bf16.msra.mxu0 %v2549
  %2573 = vmatpush.bf16.msra.mxu0 %v2522
  %2574 = vmatpush.bf16.msra.mxu0 %v2520
  %2575 = vmatpush.bf16.msra.mxu0 %v2518
  %2576 = vmatmul.bf16.gmra.mxu0 %v1709
  %v2577 = vpop.f32.mrf.mxu0
  %v2578 = vadd.f32 %v2564, %v2577
  %v2579 = vpop.f32.mrf.mxu0
  %v2580 = vadd.f32 %v2566, %v2579
  %2581 = vdwg.mxu0
  %2582 = vmatpush.bf16.msra.mxu0 %v2517
  %2583 = vmatpush.bf16.msra.mxu0 %v2515
  %2584 = vmatpush.bf16.msra.mxu0 %v2513
  %2585 = vmatpush.bf16.msra.mxu0 %v2511
  %2586 = vmatpush.bf16.msra.mxu0 %v2509
  %2587 = vmatpush.bf16.msra.mxu0 %v2507
  %2588 = vmatpush.bf16.msra.mxu0 %v2505
  %2589 = vmatpush.bf16.msra.mxu0 %v2503
  %2590 = vmatmul.bf16.gmra.mxu0 %v1589
  %v2591 = vpop.f32.mrf.mxu0
  %v2592 = vadd.f32 0.0, %v2591
  %v2593 = vpop.f32.mrf.mxu0
  %v2594 = vadd.f32 0.0, %v2593
  %2595 = vdwg.mxu0
  %2596 = vmatpush.bf16.msra.mxu0 0
  %2597 = vmatpush.bf16.msra.mxu0 0
  %2598 = vmatpush.bf16.msra.mxu0 0
  %2599 = vmatpush.bf16.msra.mxu0 0
  %2600 = vmatpush.bf16.msra.mxu0 %v2552
  %2601 = vmatpush.bf16.msra.mxu0 %v2523
  %2602 = vmatpush.bf16.msra.mxu0 %v2521
  %2603 = vmatpush.bf16.msra.mxu0 %v2519
  %2604 = vmatmul.bf16.gmra.mxu0 %v1709
  %v2605 = vpop.f32.mrf.mxu0
  %v2606 = vadd.f32 %v2592, %v2605
  %v2607 = vpop.f32.mrf.mxu0
  %v2608 = vadd.f32 %v2594, %v2607
  %2609 = vdwg.mxu0
  %v2633 = vunpack.c.l.b16 %v2386
  %v2634 = vunpack.c.h.b16 %v2386
  %v2635 = vunpack.c.l.b16 %v2387
  %v2636 = vunpack.c.h.b16 %v2387
  %v2637 = vunpack.c.l.b16 %v2388
  %v2638 = vunpack.c.h.b16 %v2388
  %v2639 = vunpack.c.l.b16 %v2389
  %v2640 = vunpack.c.h.b16 %v2389
  %v2641 = vunpack.c.l.b16 %v2390
  %v2642 = vunpack.c.h.b16 %v2390
  %v2643 = vunpack.c.l.b16 %v2391
  %v2644 = vunpack.c.h.b16 %v2391
  %v2645 = vunpack.c.l.b16 %v2392
  %v2646 = vunpack.c.h.b16 %v2392
  %v2647 = vunpack.c.l.b16 %v2393
  %v2648 = vunpack.c.h.b16 %v2393
  %v2649 = vunpack.c.l.b16 %v2394
  %v2650 = vunpack.c.h.b16 %v2394
  %v2651 = vunpack.c.l.b16 %v2395
  %v2652 = vunpack.c.h.b16 %v2395
  %v2653 = vunpack.c.l.b16 %v2396
  %v2654 = vunpack.c.h.b16 %v2396
  %v2655 = vunpack.c.l.b16 %v2397
  %v2656 = vunpack.c.h.b16 %v2397
  %v2657 = vunpack.c.l.b16 %v2398
  %v2658 = vunpack.c.h.b16 %v2398
  %v2659 = vunpack.c.l.b16 %v2399
  %v2660 = vunpack.c.h.b16 %v2399
  %v2661 = vunpack.c.l.b16 %v2400
  %v2662 = vunpack.c.h.b16 %v2400
  %v2663 = vunpack.c.l.b16 %v2401
  %v2664 = vunpack.c.h.b16 %v2401
  %v2665 = vunpack.c.l.b16 %v2402
  %v2666 = vunpack.c.h.b16 %v2402
  %v2667 = vunpack.c.l.b16 %v2403
  %v2668 = vunpack.c.h.b16 %v2403
  %v2669 = vunpack.c.l.b16 %v2404
  %v2670 = vunpack.c.h.b16 %v2404
  %v2671 = vunpack.c.l.b16 %v2405
  %v2672 = vunpack.c.h.b16 %v2405
  %v2673 = vunpack.c.l.b16 %v2406
  %v2674 = vunpack.c.h.b16 %v2406
  %v2675 = vunpack.c.l.b16 %v2407
  %v2676 = vunpack.c.h.b16 %v2407
  %v2677 = vunpack.c.l.b16 %v2408
  %v2678 = vunpack.c.h.b16 %v2408
  %v2679 = vpack.c.b16 %v2635, %v2633
  %v2680 = vpack.c.b16 %v2636, %v2634
  %v2681 = vpack.c.b16 %v2639, %v2637
  %v2682 = vpack.c.b16 %v2640, %v2638
  %v2683 = vpack.c.b16 %v2643, %v2641
  %v2684 = vpack.c.b16 %v2644, %v2642
  %v2685 = vpack.c.b16 %v2647, %v2645
  %v2686 = vpack.c.b16 %v2648, %v2646
  %v2687 = vpack.c.b16 %v2651, %v2649
  %v2688 = vpack.c.b16 %v2652, %v2650
  %v2689 = vpack.c.b16 %v2655, %v2653
  %v2690 = vpack.c.b16 %v2656, %v2654
  %v2691 = vpack.c.b16 %v2659, %v2657
  %v2692 = vpack.c.b16 %v2660, %v2658
  %v2693 = vpack.c.b16 %v2663, %v2661
  %v2694 = vpack.c.b16 %v2664, %v2662
  %v2695 = vpack.c.b16 %v2667, %v2665
  %v2696 = vpack.c.b16 %v2668, %v2666
  %v2697 = vpack.c.b16 %v2671, %v2669
  %v2698 = vpack.c.b16 %v2672, %v2670
  %v2699 = vpack.c.b16 %v2675, %v2673
  %v2700 = vpack.c.b16 %v2676, %v2674
  %v2701 = vpack.c.b16 %v2677, %v2677
  %v2702 = vpack.c.b16 %v2678, %v2678
  %v2726 = vsel %vm1711, %v2701, 0
  %v2729 = vsel %vm1711, %v2702, 0
  %2731 = vmatpush.bf16.msra.mxu0 %v2693
  %2732 = vmatpush.bf16.msra.mxu0 %v2691
  %2733 = vmatpush.bf16.msra.mxu0 %v2689
  %2734 = vmatpush.bf16.msra.mxu0 %v2687
  %2735 = vmatpush.bf16.msra.mxu0 %v2685
  %2736 = vmatpush.bf16.msra.mxu0 %v2683
  %2737 = vmatpush.bf16.msra.mxu0 %v2681
  %2738 = vmatpush.bf16.msra.mxu0 %v2679
  %2739 = vmatmul.bf16.gmra.mxu0 %v1780
  %v2740 = vpop.f32.mrf.mxu0
  %v2741 = vadd.f32 %v2578, %v2740
  %v2742 = vpop.f32.mrf.mxu0
  %v2743 = vadd.f32 %v2580, %v2742
  %2744 = vdwg.mxu0
  %2745 = vmatpush.bf16.msra.mxu0 0
  %2746 = vmatpush.bf16.msra.mxu0 0
  %2747 = vmatpush.bf16.msra.mxu0 0
  %2748 = vmatpush.bf16.msra.mxu0 0
  %2749 = vmatpush.bf16.msra.mxu0 %v2726
  %2750 = vmatpush.bf16.msra.mxu0 %v2699
  %2751 = vmatpush.bf16.msra.mxu0 %v2697
  %2752 = vmatpush.bf16.msra.mxu0 %v2695
  %2753 = vmatmul.bf16.gmra.mxu0 %v1899
  %v2754 = vpop.f32.mrf.mxu0
  %v2755 = vadd.f32 %v2741, %v2754
  %v2756 = vpop.f32.mrf.mxu0
  %v2757 = vadd.f32 %v2743, %v2756
  %2758 = vdwg.mxu0
  %2759 = vmatpush.bf16.msra.mxu0 %v2694
  %2760 = vmatpush.bf16.msra.mxu0 %v2692
  %2761 = vmatpush.bf16.msra.mxu0 %v2690
  %2762 = vmatpush.bf16.msra.mxu0 %v2688
  %2763 = vmatpush.bf16.msra.mxu0 %v2686
  %2764 = vmatpush.bf16.msra.mxu0 %v2684
  %2765 = vmatpush.bf16.msra.mxu0 %v2682
  %2766 = vmatpush.bf16.msra.mxu0 %v2680
  %2767 = vmatmul.bf16.gmra.mxu0 %v1780
  %v2768 = vpop.f32.mrf.mxu0
  %v2769 = vadd.f32 %v2606, %v2768
  %v2770 = vpop.f32.mrf.mxu0
  %v2771 = vadd.f32 %v2608, %v2770
  %2772 = vdwg.mxu0
  %2773 = vmatpush.bf16.msra.mxu0 0
  %2774 = vmatpush.bf16.msra.mxu0 0
  %2775 = vmatpush.bf16.msra.mxu0 0
  %2776 = vmatpush.bf16.msra.mxu0 0
  %2777 = vmatpush.bf16.msra.mxu0 %v2729
  %2778 = vmatpush.bf16.msra.mxu0 %v2700
  %2779 = vmatpush.bf16.msra.mxu0 %v2698
  %2780 = vmatpush.bf16.msra.mxu0 %v2696
  %2781 = vmatmul.bf16.gmra.mxu0 %v1899
  %v2782 = vpop.f32.mrf.mxu0
  %v2783 = vadd.f32 %v2769, %v2782
  %v2784 = vpop.f32.mrf.mxu0
  %v2785 = vadd.f32 %v2771, %v2784
  %2786 = vdwg.mxu0
  %s2787 = scalar_lea.vmem %s3, 920
  %v2788 = vld [vmem:[%s2787] sm:$0xff]
  %v2789 = vld [vmem:[%s2787 + $0x8] sm:$0xff]
  %v2790 = vld [vmem:[%s2787 + $0x10] sm:$0xff]
  %v2791 = vld [vmem:[%s2787 + $0x18] sm:$0xff]
  %v2792 = vld [vmem:[%s2787 + $0x20] sm:$0xff]
  %v2793 = vld [vmem:[%s2787 + $0x28] sm:$0xff]
  %v2794 = vld [vmem:[%s2787 + $0x30] sm:$0xff]
  %v2795 = vld [vmem:[%s2787 + $0x38] sm:$0xff]
  %v2796 = vld [vmem:[%s2787 + $0x40] sm:$0xff]
  %v2797 = vld [vmem:[%s2787 + $0x48] sm:$0xff]
  %v2798 = vld [vmem:[%s2787 + $0x50] sm:$0xff]
  %v2799 = vld [vmem:[%s2787 + $0x58] sm:$0xff]
  %v2800 = vld [vmem:[%s2787 + $0x60] sm:$0xff]
  %v2801 = vld [vmem:[%s2787 + $0x68] sm:$0xff]
  %v2802 = vld [vmem:[%s2787 + $0x70] sm:$0xff]
  %v2803 = vld [vmem:[%s2787 + $0x78] sm:$0xff]
  %v2804 = vld [vmem:[%s2787 + $0x80] sm:$0xff]
  %v2805 = vld [vmem:[%s2787 + $0x88] sm:$0xff]
  %v2806 = vld [vmem:[%s2787 + $0x90] sm:$0xff]
  %v2807 = vld [vmem:[%s2787 + $0x98] sm:$0xff]
  %v2808 = vld [vmem:[%s2787 + $0xa0] sm:$0xff]
  %v2809 = vld [vmem:[%s2787 + $0xa8] sm:$0xff]
  %v2810 = vld [vmem:[%s2787 + $0xb0] sm:$0x33]
  %v2834 = vunpack.c.l.b16 %v2788
  %v2835 = vunpack.c.h.b16 %v2788
  %v2836 = vunpack.c.l.b16 %v2789
  %v2837 = vunpack.c.h.b16 %v2789
  %v2838 = vunpack.c.l.b16 %v2790
  %v2839 = vunpack.c.h.b16 %v2790
  %v2840 = vunpack.c.l.b16 %v2791
  %v2841 = vunpack.c.h.b16 %v2791
  %v2842 = vunpack.c.l.b16 %v2792
  %v2843 = vunpack.c.h.b16 %v2792
  %v2844 = vunpack.c.l.b16 %v2793
  %v2845 = vunpack.c.h.b16 %v2793
  %v2846 = vunpack.c.l.b16 %v2794
  %v2847 = vunpack.c.h.b16 %v2794
  %v2848 = vunpack.c.l.b16 %v2795
  %v2849 = vunpack.c.h.b16 %v2795
  %v2850 = vunpack.c.l.b16 %v2796
  %v2851 = vunpack.c.h.b16 %v2796
  %v2852 = vunpack.c.l.b16 %v2797
  %v2853 = vunpack.c.h.b16 %v2797
  %v2854 = vunpack.c.l.b16 %v2798
  %v2855 = vunpack.c.h.b16 %v2798
  %v2856 = vunpack.c.l.b16 %v2799
  %v2857 = vunpack.c.h.b16 %v2799
  %v2858 = vunpack.c.l.b16 %v2800
  %v2859 = vunpack.c.h.b16 %v2800
  %v2860 = vunpack.c.l.b16 %v2801
  %v2861 = vunpack.c.h.b16 %v2801
  %v2862 = vunpack.c.l.b16 %v2802
  %v2863 = vunpack.c.h.b16 %v2802
  %v2864 = vunpack.c.l.b16 %v2803
  %v2865 = vunpack.c.h.b16 %v2803
  %v2866 = vunpack.c.l.b16 %v2804
  %v2867 = vunpack.c.h.b16 %v2804
  %v2868 = vunpack.c.l.b16 %v2805
  %v2869 = vunpack.c.h.b16 %v2805
  %v2870 = vunpack.c.l.b16 %v2806
  %v2871 = vunpack.c.h.b16 %v2806
  %v2872 = vunpack.c.l.b16 %v2807
  %v2873 = vunpack.c.h.b16 %v2807
  %v2874 = vunpack.c.l.b16 %v2808
  %v2875 = vunpack.c.h.b16 %v2808
  %v2876 = vunpack.c.l.b16 %v2809
  %v2877 = vunpack.c.h.b16 %v2809
  %v2878 = vunpack.c.l.b16 %v2810
  %v2879 = vunpack.c.h.b16 %v2810
  %v2880 = vpack.c.b16 %v2836, %v2834
  %v2881 = vpack.c.b16 %v2837, %v2835
  %v2882 = vpack.c.b16 %v2840, %v2838
  %v2883 = vpack.c.b16 %v2841, %v2839
  %v2884 = vpack.c.b16 %v2844, %v2842
  %v2885 = vpack.c.b16 %v2845, %v2843
  %v2886 = vpack.c.b16 %v2848, %v2846
  %v2887 = vpack.c.b16 %v2849, %v2847
  %v2888 = vpack.c.b16 %v2852, %v2850
  %v2889 = vpack.c.b16 %v2853, %v2851
  %v2890 = vpack.c.b16 %v2856, %v2854
  %v2891 = vpack.c.b16 %v2857, %v2855
  %v2892 = vpack.c.b16 %v2860, %v2858
  %v2893 = vpack.c.b16 %v2861, %v2859
  %v2894 = vpack.c.b16 %v2864, %v2862
  %v2895 = vpack.c.b16 %v2865, %v2863
  %v2896 = vpack.c.b16 %v2868, %v2866
  %v2897 = vpack.c.b16 %v2869, %v2867
  %v2898 = vpack.c.b16 %v2872, %v2870
  %v2899 = vpack.c.b16 %v2873, %v2871
  %v2900 = vpack.c.b16 %v2876, %v2874
  %v2901 = vpack.c.b16 %v2877, %v2875
  %v2902 = vpack.c.b16 %v2878, %v2878
  %v2903 = vpack.c.b16 %v2879, %v2879
  %v2927 = vsel %vm1711, %v2902, 0
  %v2930 = vsel %vm1711, %v2903, 0
  %2932 = vmatpush.bf16.msra.mxu0 %v2894
  %2933 = vmatpush.bf16.msra.mxu0 %v2892
  %2934 = vmatpush.bf16.msra.mxu0 %v2890
  %2935 = vmatpush.bf16.msra.mxu0 %v2888
  %2936 = vmatpush.bf16.msra.mxu0 %v2886
  %2937 = vmatpush.bf16.msra.mxu0 %v2884
  %2938 = vmatpush.bf16.msra.mxu0 %v2882
  %2939 = vmatpush.bf16.msra.mxu0 %v2880
  %2940 = vmatmul.bf16.gmra.mxu0 %v1987
  %v2941 = vpop.f32.mrf.mxu0
  %v2942 = vadd.f32 0.0, %v2941
  %v2943 = vpop.f32.mrf.mxu0
  %v2944 = vadd.f32 0.0, %v2943
  %2945 = vdwg.mxu0
  %2946 = vmatpush.bf16.msra.mxu0 0
  %2947 = vmatpush.bf16.msra.mxu0 0
  %2948 = vmatpush.bf16.msra.mxu0 0
  %2949 = vmatpush.bf16.msra.mxu0 0
  %2950 = vmatpush.bf16.msra.mxu0 %v2927
  %2951 = vmatpush.bf16.msra.mxu0 %v2900
  %2952 = vmatpush.bf16.msra.mxu0 %v2898
  %2953 = vmatpush.bf16.msra.mxu0 %v2896
  %2954 = vmatmul.bf16.gmra.mxu0 %v2106
  %v2955 = vpop.f32.mrf.mxu0
  %v2956 = vadd.f32 %v2942, %v2955
  %v2957 = vpop.f32.mrf.mxu0
  %v2958 = vadd.f32 %v2944, %v2957
  %2959 = vdwg.mxu0
  %2960 = vmatpush.bf16.msra.mxu0 %v2895
  %2961 = vmatpush.bf16.msra.mxu0 %v2893
  %2962 = vmatpush.bf16.msra.mxu0 %v2891
  %2963 = vmatpush.bf16.msra.mxu0 %v2889
  %2964 = vmatpush.bf16.msra.mxu0 %v2887
  %2965 = vmatpush.bf16.msra.mxu0 %v2885
  %2966 = vmatpush.bf16.msra.mxu0 %v2883
  %2967 = vmatpush.bf16.msra.mxu0 %v2881
  %2968 = vmatmul.bf16.gmra.mxu0 %v1987
  %v2969 = vpop.f32.mrf.mxu0
  %v2970 = vadd.f32 0.0, %v2969
  %v2971 = vpop.f32.mrf.mxu0
  %v2972 = vadd.f32 0.0, %v2971
  %2973 = vdwg.mxu0
  %2974 = vmatpush.bf16.msra.mxu0 0
  %2975 = vmatpush.bf16.msra.mxu0 0
  %2976 = vmatpush.bf16.msra.mxu0 0
  %2977 = vmatpush.bf16.msra.mxu0 0
  %2978 = vmatpush.bf16.msra.mxu0 %v2930
  %2979 = vmatpush.bf16.msra.mxu0 %v2901
  %2980 = vmatpush.bf16.msra.mxu0 %v2899
  %2981 = vmatpush.bf16.msra.mxu0 %v2897
  %2982 = vmatmul.bf16.gmra.mxu0 %v2106
  %v2983 = vpop.f32.mrf.mxu0
  %v2984 = vadd.f32 %v2970, %v2983
  %v2985 = vpop.f32.mrf.mxu0
  %v2986 = vadd.f32 %v2972, %v2985
  %2987 = vdwg.mxu0
  %v2988 = vadd.f32 %v2755, %v2956
  %v2989 = vadd.f32 %v2783, %v2984
  %v2990 = vadd.f32 %v2757, %v2958
  %v2991 = vadd.f32 %v2785, %v2986
  %s2992 = scalar_lea.vmem %s3, 1288
  %v2993 = vld [vmem:[%s2992] sm:$0xff]
  %v2994 = vld [vmem:[%s2992 + $0x8] sm:$0xff]
  %v2995 = vld [vmem:[%s2992 + $0x10] sm:$0xff]
  %v2996 = vld [vmem:[%s2992 + $0x18] sm:$0xff]
  %v2997 = vld [vmem:[%s2992 + $0x20] sm:$0xff]
  %v2998 = vld [vmem:[%s2992 + $0x28] sm:$0xff]
  %v2999 = vld [vmem:[%s2992 + $0x30] sm:$0xff]
  %v3000 = vld [vmem:[%s2992 + $0x38] sm:$0xff]
  %v3001 = vld [vmem:[%s2992 + $0x40] sm:$0xff]
  %v3002 = vld [vmem:[%s2992 + $0x48] sm:$0xff]
  %v3003 = vld [vmem:[%s2992 + $0x50] sm:$0xff]
  %v3004 = vld [vmem:[%s2992 + $0x58] sm:$0xff]
  %v3005 = vld [vmem:[%s2992 + $0x60] sm:$0xff]
  %v3006 = vld [vmem:[%s2992 + $0x68] sm:$0xff]
  %v3007 = vld [vmem:[%s2992 + $0x70] sm:$0xff]
  %v3008 = vld [vmem:[%s2992 + $0x78] sm:$0xff]
  %v3009 = vld [vmem:[%s2992 + $0x80] sm:$0xff]
  %v3010 = vld [vmem:[%s2992 + $0x88] sm:$0xff]
  %v3011 = vld [vmem:[%s2992 + $0x90] sm:$0xff]
  %v3012 = vld [vmem:[%s2992 + $0x98] sm:$0xff]
  %v3013 = vld [vmem:[%s2992 + $0xa0] sm:$0xff]
  %v3014 = vld [vmem:[%s2992 + $0xa8] sm:$0xff]
  %v3015 = vld [vmem:[%s2992 + $0xb0] sm:$0x33]
  %v3039 = vunpack.c.l.b16 %v2993
  %v3040 = vunpack.c.h.b16 %v2993
  %v3041 = vunpack.c.l.b16 %v2994
  %v3042 = vunpack.c.h.b16 %v2994
  %v3043 = vunpack.c.l.b16 %v2995
  %v3044 = vunpack.c.h.b16 %v2995
  %v3045 = vunpack.c.l.b16 %v2996
  %v3046 = vunpack.c.h.b16 %v2996
  %v3047 = vunpack.c.l.b16 %v2997
  %v3048 = vunpack.c.h.b16 %v2997
  %v3049 = vunpack.c.l.b16 %v2998
  %v3050 = vunpack.c.h.b16 %v2998
  %v3051 = vunpack.c.l.b16 %v2999
  %v3052 = vunpack.c.h.b16 %v2999
  %v3053 = vunpack.c.l.b16 %v3000
  %v3054 = vunpack.c.h.b16 %v3000
  %v3055 = vunpack.c.l.b16 %v3001
  %v3056 = vunpack.c.h.b16 %v3001
  %v3057 = vunpack.c.l.b16 %v3002
  %v3058 = vunpack.c.h.b16 %v3002
  %v3059 = vunpack.c.l.b16 %v3003
  %v3060 = vunpack.c.h.b16 %v3003
  %v3061 = vunpack.c.l.b16 %v3004
  %v3062 = vunpack.c.h.b16 %v3004
  %v3063 = vunpack.c.l.b16 %v3005
  %v3064 = vunpack.c.h.b16 %v3005
  %v3065 = vunpack.c.l.b16 %v3006
  %v3066 = vunpack.c.h.b16 %v3006
  %v3067 = vunpack.c.l.b16 %v3007
  %v3068 = vunpack.c.h.b16 %v3007
  %v3069 = vunpack.c.l.b16 %v3008
  %v3070 = vunpack.c.h.b16 %v3008
  %v3071 = vunpack.c.l.b16 %v3009
  %v3072 = vunpack.c.h.b16 %v3009
  %v3073 = vunpack.c.l.b16 %v3010
  %v3074 = vunpack.c.h.b16 %v3010
  %v3075 = vunpack.c.l.b16 %v3011
  %v3076 = vunpack.c.h.b16 %v3011
  %v3077 = vunpack.c.l.b16 %v3012
  %v3078 = vunpack.c.h.b16 %v3012
  %v3079 = vunpack.c.l.b16 %v3013
  %v3080 = vunpack.c.h.b16 %v3013
  %v3081 = vunpack.c.l.b16 %v3014
  %v3082 = vunpack.c.h.b16 %v3014
  %v3083 = vunpack.c.l.b16 %v3015
  %v3084 = vunpack.c.h.b16 %v3015
  %v3085 = vpack.c.b16 %v3041, %v3039
  %v3086 = vpack.c.b16 %v3042, %v3040
  %v3087 = vpack.c.b16 %v3045, %v3043
  %v3088 = vpack.c.b16 %v3046, %v3044
  %v3089 = vpack.c.b16 %v3049, %v3047
  %v3090 = vpack.c.b16 %v3050, %v3048
  %v3091 = vpack.c.b16 %v3053, %v3051
  %v3092 = vpack.c.b16 %v3054, %v3052
  %v3093 = vpack.c.b16 %v3057, %v3055
  %v3094 = vpack.c.b16 %v3058, %v3056
  %v3095 = vpack.c.b16 %v3061, %v3059
  %v3096 = vpack.c.b16 %v3062, %v3060
  %v3097 = vpack.c.b16 %v3065, %v3063
  %v3098 = vpack.c.b16 %v3066, %v3064
  %v3099 = vpack.c.b16 %v3069, %v3067
  %v3100 = vpack.c.b16 %v3070, %v3068
  %v3101 = vpack.c.b16 %v3073, %v3071
  %v3102 = vpack.c.b16 %v3074, %v3072
  %v3103 = vpack.c.b16 %v3077, %v3075
  %v3104 = vpack.c.b16 %v3078, %v3076
  %v3105 = vpack.c.b16 %v3081, %v3079
  %v3106 = vpack.c.b16 %v3082, %v3080
  %v3107 = vpack.c.b16 %v3083, %v3083
  %v3108 = vpack.c.b16 %v3084, %v3084
  %v3132 = vsel %vm1711, %v3107, 0
  %v3135 = vsel %vm1711, %v3108, 0
  %3137 = vmatpush.bf16.msra.mxu0 %v3099
  %3138 = vmatpush.bf16.msra.mxu0 %v3097
  %3139 = vmatpush.bf16.msra.mxu0 %v3095
  %3140 = vmatpush.bf16.msra.mxu0 %v3093
  %3141 = vmatpush.bf16.msra.mxu0 %v3091
  %3142 = vmatpush.bf16.msra.mxu0 %v3089
  %3143 = vmatpush.bf16.msra.mxu0 %v3087
  %3144 = vmatpush.bf16.msra.mxu0 %v3085
  %3145 = vmatmul.bf16.gmra.mxu0 %v2198
  %v3146 = vpop.f32.mrf.mxu0
  %v3147 = vadd.f32 0.0, %v3146
  %v3148 = vpop.f32.mrf.mxu0
  %v3149 = vadd.f32 0.0, %v3148
  %3150 = vdwg.mxu0
  %3151 = vmatpush.bf16.msra.mxu0 0
  %3152 = vmatpush.bf16.msra.mxu0 0
  %3153 = vmatpush.bf16.msra.mxu0 0
  %3154 = vmatpush.bf16.msra.mxu0 0
  %3155 = vmatpush.bf16.msra.mxu0 %v3132
  %3156 = vmatpush.bf16.msra.mxu0 %v3105
  %3157 = vmatpush.bf16.msra.mxu0 %v3103
  %3158 = vmatpush.bf16.msra.mxu0 %v3101
  %3159 = vmatmul.bf16.gmra.mxu0 %v2317
  %v3160 = vpop.f32.mrf.mxu0
  %v3161 = vadd.f32 %v3147, %v3160
  %v3162 = vpop.f32.mrf.mxu0
  %v3163 = vadd.f32 %v3149, %v3162
  %3164 = vdwg.mxu0
  %3165 = vmatpush.bf16.msra.mxu0 %v3100
  %3166 = vmatpush.bf16.msra.mxu0 %v3098
  %3167 = vmatpush.bf16.msra.mxu0 %v3096
  %3168 = vmatpush.bf16.msra.mxu0 %v3094
  %3169 = vmatpush.bf16.msra.mxu0 %v3092
  %3170 = vmatpush.bf16.msra.mxu0 %v3090
  %3171 = vmatpush.bf16.msra.mxu0 %v3088
  %3172 = vmatpush.bf16.msra.mxu0 %v3086
  %3173 = vmatmul.bf16.gmra.mxu0 %v2198
  %v3174 = vpop.f32.mrf.mxu0
  %v3175 = vadd.f32 0.0, %v3174
  %v3176 = vpop.f32.mrf.mxu0
  %v3177 = vadd.f32 0.0, %v3176
  %3178 = vdwg.mxu0
  %3179 = vmatpush.bf16.msra.mxu0 0
  %3180 = vmatpush.bf16.msra.mxu0 0
  %3181 = vmatpush.bf16.msra.mxu0 0
  %3182 = vmatpush.bf16.msra.mxu0 0
  %3183 = vmatpush.bf16.msra.mxu0 %v3135
  %3184 = vmatpush.bf16.msra.mxu0 %v3106
  %3185 = vmatpush.bf16.msra.mxu0 %v3104
  %3186 = vmatpush.bf16.msra.mxu0 %v3102
  %3187 = vmatmul.bf16.gmra.mxu0 %v2317
  %v3188 = vpop.f32.mrf.mxu0
  %v3189 = vadd.f32 %v3175, %v3188
  %v3190 = vpop.f32.mrf.mxu0
  %v3191 = vadd.f32 %v3177, %v3190
  %3192 = vdwg.mxu0
  %v3193 = vadd.f32 %v2988, %v3161
  %v3194 = vadd.f32 %v2989, %v3189
  %v3195 = vadd.f32 %v2990, %v3163
  %v3196 = vadd.f32 %v2991, %v3191
  %v3197 = vmax.f32 %v2381, %v3193
  %v3198 = vmax.f32 %v2382, %v3194
  %v3199 = vmax.f32 %v2383, %v3195
  %v3200 = vmax.f32 %v2384, %v3196
  %3201 = vmatpush.bf16.msra.mxu0 %v1675
  %3202 = vmatpush.bf16.msra.mxu0 %v1673
  %3203 = vmatpush.bf16.msra.mxu0 %v1671
  %3204 = vmatpush.bf16.msra.mxu0 %v1669
  %3205 = vmatpush.bf16.msra.mxu0 %v1667
  %3206 = vmatpush.bf16.msra.mxu0 %v1665
  %3207 = vmatpush.bf16.msra.mxu0 %v1663
  %3208 = vmatpush.bf16.msra.mxu0 %v1661
  %3209 = vmatmul.bf16.gmra.mxu0 %v1987
  %v3210 = vpop.f32.mrf.mxu0
  %v3211 = vadd.f32 0.0, %v3210
  %v3212 = vpop.f32.mrf.mxu0
  %v3213 = vadd.f32 0.0, %v3212
  %3214 = vdwg.mxu0
  %3215 = vmatpush.bf16.msra.mxu0 0
  %3216 = vmatpush.bf16.msra.mxu0 0
  %3217 = vmatpush.bf16.msra.mxu0 0
  %3218 = vmatpush.bf16.msra.mxu0 0
  %3219 = vmatpush.bf16.msra.mxu0 %v1713
  %3220 = vmatpush.bf16.msra.mxu0 %v1681
  %3221 = vmatpush.bf16.msra.mxu0 %v1679
  %3222 = vmatpush.bf16.msra.mxu0 %v1677
  %3223 = vmatmul.bf16.gmra.mxu0 %v2106
  %v3224 = vpop.f32.mrf.mxu0
  %v3225 = vadd.f32 %v3211, %v3224
  %v3226 = vpop.f32.mrf.mxu0
  %v3227 = vadd.f32 %v3213, %v3226
  %3228 = vdwg.mxu0
  %3229 = vmatpush.bf16.msra.mxu0 %v1676
  %3230 = vmatpush.bf16.msra.mxu0 %v1674
  %3231 = vmatpush.bf16.msra.mxu0 %v1672
  %3232 = vmatpush.bf16.msra.mxu0 %v1670
  %3233 = vmatpush.bf16.msra.mxu0 %v1668
  %3234 = vmatpush.bf16.msra.mxu0 %v1666
  %3235 = vmatpush.bf16.msra.mxu0 %v1664
  %3236 = vmatpush.bf16.msra.mxu0 %v1662
  %3237 = vmatmul.bf16.gmra.mxu0 %v1987
  %v3238 = vpop.f32.mrf.mxu0
  %v3239 = vadd.f32 0.0, %v3238
  %v3240 = vpop.f32.mrf.mxu0
  %v3241 = vadd.f32 0.0, %v3240
  %3242 = vdwg.mxu0
  %3243 = vmatpush.bf16.msra.mxu0 0
  %3244 = vmatpush.bf16.msra.mxu0 0
  %3245 = vmatpush.bf16.msra.mxu0 0
  %3246 = vmatpush.bf16.msra.mxu0 0
  %3247 = vmatpush.bf16.msra.mxu0 %v1716
  %3248 = vmatpush.bf16.msra.mxu0 %v1682
  %3249 = vmatpush.bf16.msra.mxu0 %v1680
  %3250 = vmatpush.bf16.msra.mxu0 %v1678
  %3251 = vmatmul.bf16.gmra.mxu0 %v2106
  %v3252 = vpop.f32.mrf.mxu0
  %v3253 = vadd.f32 %v3239, %v3252
  %v3254 = vpop.f32.mrf.mxu0
  %v3255 = vadd.f32 %v3241, %v3254
  %3256 = vdwg.mxu0
  %3257 = vmatpush.bf16.msra.mxu0 %v1866
  %3258 = vmatpush.bf16.msra.mxu0 %v1864
  %3259 = vmatpush.bf16.msra.mxu0 %v1862
  %3260 = vmatpush.bf16.msra.mxu0 %v1860
  %3261 = vmatpush.bf16.msra.mxu0 %v1858
  %3262 = vmatpush.bf16.msra.mxu0 %v1856
  %3263 = vmatpush.bf16.msra.mxu0 %v1854
  %3264 = vmatpush.bf16.msra.mxu0 %v1852
  %3265 = vmatmul.bf16.gmra.mxu0 %v1589
  %v3266 = vpop.f32.mrf.mxu0
  %v3267 = vadd.f32 %v3225, %v3266
  %v3268 = vpop.f32.mrf.mxu0
  %v3269 = vadd.f32 %v3227, %v3268
  %3270 = vdwg.mxu0
  %3271 = vmatpush.bf16.msra.mxu0 0
  %3272 = vmatpush.bf16.msra.mxu0 0
  %3273 = vmatpush.bf16.msra.mxu0 0
  %3274 = vmatpush.bf16.msra.mxu0 0
  %3275 = vmatpush.bf16.msra.mxu0 %v1902
  %3276 = vmatpush.bf16.msra.mxu0 %v1872
  %3277 = vmatpush.bf16.msra.mxu0 %v1870
  %3278 = vmatpush.bf16.msra.mxu0 %v1868
  %3279 = vmatmul.bf16.gmra.mxu0 %v1709
  %v3280 = vpop.f32.mrf.mxu0
  %v3281 = vadd.f32 %v3267, %v3280
  %v3282 = vpop.f32.mrf.mxu0
  %v3283 = vadd.f32 %v3269, %v3282
  %3284 = vdwg.mxu0
  %3285 = vmatpush.bf16.msra.mxu0 %v1867
  %3286 = vmatpush.bf16.msra.mxu0 %v1865
  %3287 = vmatpush.bf16.msra.mxu0 %v1863
  %3288 = vmatpush.bf16.msra.mxu0 %v1861
  %3289 = vmatpush.bf16.msra.mxu0 %v1859
  %3290 = vmatpush.bf16.msra.mxu0 %v1857
  %3291 = vmatpush.bf16.msra.mxu0 %v1855
  %3292 = vmatpush.bf16.msra.mxu0 %v1853
  %3293 = vmatmul.bf16.gmra.mxu0 %v1589
  %v3294 = vpop.f32.mrf.mxu0
  %v3295 = vadd.f32 %v3253, %v3294
  %v3296 = vpop.f32.mrf.mxu0
  %v3297 = vadd.f32 %v3255, %v3296
  %3298 = vdwg.mxu0
  %3299 = vmatpush.bf16.msra.mxu0 0
  %3300 = vmatpush.bf16.msra.mxu0 0
  %3301 = vmatpush.bf16.msra.mxu0 0
  %3302 = vmatpush.bf16.msra.mxu0 0
  %3303 = vmatpush.bf16.msra.mxu0 %v1905
  %3304 = vmatpush.bf16.msra.mxu0 %v1873
  %3305 = vmatpush.bf16.msra.mxu0 %v1871
  %3306 = vmatpush.bf16.msra.mxu0 %v1869
  %3307 = vmatmul.bf16.gmra.mxu0 %v1709
  %v3308 = vpop.f32.mrf.mxu0
  %v3309 = vadd.f32 %v3295, %v3308
  %v3310 = vpop.f32.mrf.mxu0
  %v3311 = vadd.f32 %v3297, %v3310
  %3312 = vdwg.mxu0
  %3313 = vmatpush.bf16.msra.mxu0 %v2073
  %3314 = vmatpush.bf16.msra.mxu0 %v2071
  %3315 = vmatpush.bf16.msra.mxu0 %v2069
  %3316 = vmatpush.bf16.msra.mxu0 %v2067
  %3317 = vmatpush.bf16.msra.mxu0 %v2065
  %3318 = vmatpush.bf16.msra.mxu0 %v2063
  %3319 = vmatpush.bf16.msra.mxu0 %v2061
  %3320 = vmatpush.bf16.msra.mxu0 %v2059
  %3321 = vmatmul.bf16.gmra.mxu0 %v2198
  %v3322 = vpop.f32.mrf.mxu0
  %v3323 = vadd.f32 0.0, %v3322
  %v3324 = vpop.f32.mrf.mxu0
  %v3325 = vadd.f32 0.0, %v3324
  %3326 = vdwg.mxu0
  %3327 = vmatpush.bf16.msra.mxu0 0
  %3328 = vmatpush.bf16.msra.mxu0 0
  %3329 = vmatpush.bf16.msra.mxu0 0
  %3330 = vmatpush.bf16.msra.mxu0 0
  %3331 = vmatpush.bf16.msra.mxu0 %v2109
  %3332 = vmatpush.bf16.msra.mxu0 %v2079
  %3333 = vmatpush.bf16.msra.mxu0 %v2077
  %3334 = vmatpush.bf16.msra.mxu0 %v2075
  %3335 = vmatmul.bf16.gmra.mxu0 %v2317
  %v3336 = vpop.f32.mrf.mxu0
  %v3337 = vadd.f32 %v3323, %v3336
  %v3338 = vpop.f32.mrf.mxu0
  %v3339 = vadd.f32 %v3325, %v3338
  %3340 = vdwg.mxu0
  %3341 = vmatpush.bf16.msra.mxu0 %v2074
  %3342 = vmatpush.bf16.msra.mxu0 %v2072
  %3343 = vmatpush.bf16.msra.mxu0 %v2070
  %3344 = vmatpush.bf16.msra.mxu0 %v2068
  %3345 = vmatpush.bf16.msra.mxu0 %v2066
  %3346 = vmatpush.bf16.msra.mxu0 %v2064
  %3347 = vmatpush.bf16.msra.mxu0 %v2062
  %3348 = vmatpush.bf16.msra.mxu0 %v2060
  %3349 = vmatmul.bf16.gmra.mxu0 %v2198
  %v3350 = vpop.f32.mrf.mxu0
  %v3351 = vadd.f32 0.0, %v3350
  %v3352 = vpop.f32.mrf.mxu0
  %v3353 = vadd.f32 0.0, %v3352
  %3354 = vdwg.mxu0
  %3355 = vmatpush.bf16.msra.mxu0 0
  %3356 = vmatpush.bf16.msra.mxu0 0
  %3357 = vmatpush.bf16.msra.mxu0 0
  %3358 = vmatpush.bf16.msra.mxu0 0
  %3359 = vmatpush.bf16.msra.mxu0 %v2112
  %3360 = vmatpush.bf16.msra.mxu0 %v2080
  %3361 = vmatpush.bf16.msra.mxu0 %v2078
  %3362 = vmatpush.bf16.msra.mxu0 %v2076
  %3363 = vmatmul.bf16.gmra.mxu0 %v2317
  %v3364 = vpop.f32.mrf.mxu0
  %v3365 = vadd.f32 %v3351, %v3364
  %v3366 = vpop.f32.mrf.mxu0
  %v3367 = vadd.f32 %v3353, %v3366
  %3368 = vdwg.mxu0
  %v3369 = vadd.f32 %v3281, %v3337
  %v3370 = vadd.f32 %v3309, %v3365
  %v3371 = vadd.f32 %v3283, %v3339
  %v3372 = vadd.f32 %v3311, %v3367
  %v3373 = vrot.slane %v1780, 2
  %v3374 = vrot.slane %v1781, 2
  %v3377 = vsel %vm1707, %v3374, 0
  %3379 = vmatpush.bf16.msra.mxu0 %v2284
  %3380 = vmatpush.bf16.msra.mxu0 %v2282
  %3381 = vmatpush.bf16.msra.mxu0 %v2280
  %3382 = vmatpush.bf16.msra.mxu0 %v2278
  %3383 = vmatpush.bf16.msra.mxu0 %v2276
  %3384 = vmatpush.bf16.msra.mxu0 %v2274
  %3385 = vmatpush.bf16.msra.mxu0 %v2272
  %3386 = vmatpush.bf16.msra.mxu0 %v2270
  %3387 = vmatmul.bf16.gmra.mxu0 %v3373
  %v3388 = vpop.f32.mrf.mxu0
  %v3389 = vadd.f32 0.0, %v3388
  %v3390 = vpop.f32.mrf.mxu0
  %v3391 = vadd.f32 0.0, %v3390
  %3392 = vdwg.mxu0
  %3393 = vmatpush.bf16.msra.mxu0 0
  %3394 = vmatpush.bf16.msra.mxu0 0
  %3395 = vmatpush.bf16.msra.mxu0 0
  %3396 = vmatpush.bf16.msra.mxu0 0
  %3397 = vmatpush.bf16.msra.mxu0 %v2320
  %3398 = vmatpush.bf16.msra.mxu0 %v2290
  %3399 = vmatpush.bf16.msra.mxu0 %v2288
  %3400 = vmatpush.bf16.msra.mxu0 %v2286
  %3401 = vmatmul.bf16.gmra.mxu0 %v3377
  %v3402 = vpop.f32.mrf.mxu0
  %v3403 = vadd.f32 %v3389, %v3402
  %v3404 = vpop.f32.mrf.mxu0
  %v3405 = vadd.f32 %v3391, %v3404
  %3406 = vdwg.mxu0
  %3407 = vmatpush.bf16.msra.mxu0 %v2285
  %3408 = vmatpush.bf16.msra.mxu0 %v2283
  %3409 = vmatpush.bf16.msra.mxu0 %v2281
  %3410 = vmatpush.bf16.msra.mxu0 %v2279
  %3411 = vmatpush.bf16.msra.mxu0 %v2277
  %3412 = vmatpush.bf16.msra.mxu0 %v2275
  %3413 = vmatpush.bf16.msra.mxu0 %v2273
  %3414 = vmatpush.bf16.msra.mxu0 %v2271
  %3415 = vmatmul.bf16.gmra.mxu0 %v3373
  %v3416 = vpop.f32.mrf.mxu0
  %v3417 = vadd.f32 0.0, %v3416
  %v3418 = vpop.f32.mrf.mxu0
  %v3419 = vadd.f32 0.0, %v3418
  %3420 = vdwg.mxu0
  %3421 = vmatpush.bf16.msra.mxu0 0
  %3422 = vmatpush.bf16.msra.mxu0 0
  %3423 = vmatpush.bf16.msra.mxu0 0
  %3424 = vmatpush.bf16.msra.mxu0 0
  %3425 = vmatpush.bf16.msra.mxu0 %v2323
  %3426 = vmatpush.bf16.msra.mxu0 %v2291
  %3427 = vmatpush.bf16.msra.mxu0 %v2289
  %3428 = vmatpush.bf16.msra.mxu0 %v2287
  %3429 = vmatmul.bf16.gmra.mxu0 %v3377
  %v3430 = vpop.f32.mrf.mxu0
  %v3431 = vadd.f32 %v3417, %v3430
  %v3432 = vpop.f32.mrf.mxu0
  %v3433 = vadd.f32 %v3419, %v3432
  %3434 = vdwg.mxu0
  %v3435 = vadd.f32 %v3369, %v3403
  %v3436 = vadd.f32 %v3370, %v3431
  %v3437 = vadd.f32 %v3371, %v3405
  %v3438 = vadd.f32 %v3372, %v3433
  %v3439 = vmax.f32 %v3197, %v3435
  %v3440 = vmax.f32 %v3198, %v3436
  %v3441 = vmax.f32 %v3199, %v3437
  %v3442 = vmax.f32 %v3200, %v3438
  %3443 = vmatpush.bf16.msra.mxu0 %v2516
  %3444 = vmatpush.bf16.msra.mxu0 %v2514
  %3445 = vmatpush.bf16.msra.mxu0 %v2512
  %3446 = vmatpush.bf16.msra.mxu0 %v2510
  %3447 = vmatpush.bf16.msra.mxu0 %v2508
  %3448 = vmatpush.bf16.msra.mxu0 %v2506
  %3449 = vmatpush.bf16.msra.mxu0 %v2504
  %3450 = vmatpush.bf16.msra.mxu0 %v2502
  %3451 = vmatmul.bf16.gmra.mxu0 %v1987
  %v3452 = vpop.f32.mrf.mxu0
  %v3453 = vadd.f32 0.0, %v3452
  %v3454 = vpop.f32.mrf.mxu0
  %v3455 = vadd.f32 0.0, %v3454
  %3456 = vdwg.mxu0
  %3457 = vmatpush.bf16.msra.mxu0 0
  %3458 = vmatpush.bf16.msra.mxu0 0
  %3459 = vmatpush.bf16.msra.mxu0 0
  %3460 = vmatpush.bf16.msra.mxu0 0
  %3461 = vmatpush.bf16.msra.mxu0 %v2549
  %3462 = vmatpush.bf16.msra.mxu0 %v2522
  %3463 = vmatpush.bf16.msra.mxu0 %v2520
  %3464 = vmatpush.bf16.msra.mxu0 %v2518
  %3465 = vmatmul.bf16.gmra.mxu0 %v2106
  %v3466 = vpop.f32.mrf.mxu0
  %v3467 = vadd.f32 %v3453, %v3466
  %v3468 = vpop.f32.mrf.mxu0
  %v3469 = vadd.f32 %v3455, %v3468
  %3470 = vdwg.mxu0
  %3471 = vmatpush.bf16.msra.mxu0 %v2517
  %3472 = vmatpush.bf16.msra.mxu0 %v2515
  %3473 = vmatpush.bf16.msra.mxu0 %v2513
  %3474 = vmatpush.bf16.msra.mxu0 %v2511
  %3475 = vmatpush.bf16.msra.mxu0 %v2509
  %3476 = vmatpush.bf16.msra.mxu0 %v2507
  %3477 = vmatpush.bf16.msra.mxu0 %v2505
  %3478 = vmatpush.bf16.msra.mxu0 %v2503
  %3479 = vmatmul.bf16.gmra.mxu0 %v1987
  %v3480 = vpop.f32.mrf.mxu0
  %v3481 = vadd.f32 0.0, %v3480
  %v3482 = vpop.f32.mrf.mxu0
  %v3483 = vadd.f32 0.0, %v3482
  %3484 = vdwg.mxu0
  %3485 = vmatpush.bf16.msra.mxu0 0
  %3486 = vmatpush.bf16.msra.mxu0 0
  %3487 = vmatpush.bf16.msra.mxu0 0
  %3488 = vmatpush.bf16.msra.mxu0 0
  %3489 = vmatpush.bf16.msra.mxu0 %v2552
  %3490 = vmatpush.bf16.msra.mxu0 %v2523
  %3491 = vmatpush.bf16.msra.mxu0 %v2521
  %3492 = vmatpush.bf16.msra.mxu0 %v2519
  %3493 = vmatmul.bf16.gmra.mxu0 %v2106
  %v3494 = vpop.f32.mrf.mxu0
  %v3495 = vadd.f32 %v3481, %v3494
  %v3496 = vpop.f32.mrf.mxu0
  %v3497 = vadd.f32 %v3483, %v3496
  %3498 = vdwg.mxu0
  %3499 = vmatpush.bf16.msra.mxu0 %v2693
  %3500 = vmatpush.bf16.msra.mxu0 %v2691
  %3501 = vmatpush.bf16.msra.mxu0 %v2689
  %3502 = vmatpush.bf16.msra.mxu0 %v2687
  %3503 = vmatpush.bf16.msra.mxu0 %v2685
  %3504 = vmatpush.bf16.msra.mxu0 %v2683
  %3505 = vmatpush.bf16.msra.mxu0 %v2681
  %3506 = vmatpush.bf16.msra.mxu0 %v2679
  %3507 = vmatmul.bf16.gmra.mxu0 %v1589
  %v3508 = vpop.f32.mrf.mxu0
  %v3509 = vadd.f32 %v3467, %v3508
  %v3510 = vpop.f32.mrf.mxu0
  %v3511 = vadd.f32 %v3469, %v3510
  %3512 = vdwg.mxu0
  %3513 = vmatpush.bf16.msra.mxu0 0
  %3514 = vmatpush.bf16.msra.mxu0 0
  %3515 = vmatpush.bf16.msra.mxu0 0
  %3516 = vmatpush.bf16.msra.mxu0 0
  %3517 = vmatpush.bf16.msra.mxu0 %v2726
  %3518 = vmatpush.bf16.msra.mxu0 %v2699
  %3519 = vmatpush.bf16.msra.mxu0 %v2697
  %3520 = vmatpush.bf16.msra.mxu0 %v2695
  %3521 = vmatmul.bf16.gmra.mxu0 %v1709
  %v3522 = vpop.f32.mrf.mxu0
  %v3523 = vadd.f32 %v3509, %v3522
  %v3524 = vpop.f32.mrf.mxu0
  %v3525 = vadd.f32 %v3511, %v3524
  %3526 = vdwg.mxu0
  %3527 = vmatpush.bf16.msra.mxu0 %v2694
  %3528 = vmatpush.bf16.msra.mxu0 %v2692
  %3529 = vmatpush.bf16.msra.mxu0 %v2690
  %3530 = vmatpush.bf16.msra.mxu0 %v2688
  %3531 = vmatpush.bf16.msra.mxu0 %v2686
  %3532 = vmatpush.bf16.msra.mxu0 %v2684
  %3533 = vmatpush.bf16.msra.mxu0 %v2682
  %3534 = vmatpush.bf16.msra.mxu0 %v2680
  %3535 = vmatmul.bf16.gmra.mxu0 %v1589
  %v3536 = vpop.f32.mrf.mxu0
  %v3537 = vadd.f32 %v3495, %v3536
  %v3538 = vpop.f32.mrf.mxu0
  %v3539 = vadd.f32 %v3497, %v3538
  %3540 = vdwg.mxu0
  %3541 = vmatpush.bf16.msra.mxu0 0
  %3542 = vmatpush.bf16.msra.mxu0 0
  %3543 = vmatpush.bf16.msra.mxu0 0
  %3544 = vmatpush.bf16.msra.mxu0 0
  %3545 = vmatpush.bf16.msra.mxu0 %v2729
  %3546 = vmatpush.bf16.msra.mxu0 %v2700
  %3547 = vmatpush.bf16.msra.mxu0 %v2698
  %3548 = vmatpush.bf16.msra.mxu0 %v2696
  %3549 = vmatmul.bf16.gmra.mxu0 %v1709
  %v3550 = vpop.f32.mrf.mxu0
  %v3551 = vadd.f32 %v3537, %v3550
  %v3552 = vpop.f32.mrf.mxu0
  %v3553 = vadd.f32 %v3539, %v3552
  %3554 = vdwg.mxu0
  %3555 = vmatpush.bf16.msra.mxu0 %v2894
  %3556 = vmatpush.bf16.msra.mxu0 %v2892
  %3557 = vmatpush.bf16.msra.mxu0 %v2890
  %3558 = vmatpush.bf16.msra.mxu0 %v2888
  %3559 = vmatpush.bf16.msra.mxu0 %v2886
  %3560 = vmatpush.bf16.msra.mxu0 %v2884
  %3561 = vmatpush.bf16.msra.mxu0 %v2882
  %3562 = vmatpush.bf16.msra.mxu0 %v2880
  %3563 = vmatmul.bf16.gmra.mxu0 %v2198
  %v3564 = vpop.f32.mrf.mxu0
  %v3565 = vadd.f32 0.0, %v3564
  %v3566 = vpop.f32.mrf.mxu0
  %v3567 = vadd.f32 0.0, %v3566
  %3568 = vdwg.mxu0
  %3569 = vmatpush.bf16.msra.mxu0 0
  %3570 = vmatpush.bf16.msra.mxu0 0
  %3571 = vmatpush.bf16.msra.mxu0 0
  %3572 = vmatpush.bf16.msra.mxu0 0
  %3573 = vmatpush.bf16.msra.mxu0 %v2927
  %3574 = vmatpush.bf16.msra.mxu0 %v2900
  %3575 = vmatpush.bf16.msra.mxu0 %v2898
  %3576 = vmatpush.bf16.msra.mxu0 %v2896
  %3577 = vmatmul.bf16.gmra.mxu0 %v2317
  %v3578 = vpop.f32.mrf.mxu0
  %v3579 = vadd.f32 %v3565, %v3578
  %v3580 = vpop.f32.mrf.mxu0
  %v3581 = vadd.f32 %v3567, %v3580
  %3582 = vdwg.mxu0
  %3583 = vmatpush.bf16.msra.mxu0 %v2895
  %3584 = vmatpush.bf16.msra.mxu0 %v2893
  %3585 = vmatpush.bf16.msra.mxu0 %v2891
  %3586 = vmatpush.bf16.msra.mxu0 %v2889
  %3587 = vmatpush.bf16.msra.mxu0 %v2887
  %3588 = vmatpush.bf16.msra.mxu0 %v2885
  %3589 = vmatpush.bf16.msra.mxu0 %v2883
  %3590 = vmatpush.bf16.msra.mxu0 %v2881
  %3591 = vmatmul.bf16.gmra.mxu0 %v2198
  %v3592 = vpop.f32.mrf.mxu0
  %v3593 = vadd.f32 0.0, %v3592
  %v3594 = vpop.f32.mrf.mxu0
  %v3595 = vadd.f32 0.0, %v3594
  %3596 = vdwg.mxu0
  %3597 = vmatpush.bf16.msra.mxu0 0
  %3598 = vmatpush.bf16.msra.mxu0 0
  %3599 = vmatpush.bf16.msra.mxu0 0
  %3600 = vmatpush.bf16.msra.mxu0 0
  %3601 = vmatpush.bf16.msra.mxu0 %v2930
  %3602 = vmatpush.bf16.msra.mxu0 %v2901
  %3603 = vmatpush.bf16.msra.mxu0 %v2899
  %3604 = vmatpush.bf16.msra.mxu0 %v2897
  %3605 = vmatmul.bf16.gmra.mxu0 %v2317
  %v3606 = vpop.f32.mrf.mxu0
  %v3607 = vadd.f32 %v3593, %v3606
  %v3608 = vpop.f32.mrf.mxu0
  %v3609 = vadd.f32 %v3595, %v3608
  %3610 = vdwg.mxu0
  %v3611 = vadd.f32 %v3523, %v3579
  %v3612 = vadd.f32 %v3551, %v3607
  %v3613 = vadd.f32 %v3525, %v3581
  %v3614 = vadd.f32 %v3553, %v3609
  %3615 = vmatpush.bf16.msra.mxu0 %v3099
  %3616 = vmatpush.bf16.msra.mxu0 %v3097
  %3617 = vmatpush.bf16.msra.mxu0 %v3095
  %3618 = vmatpush.bf16.msra.mxu0 %v3093
  %3619 = vmatpush.bf16.msra.mxu0 %v3091
  %3620 = vmatpush.bf16.msra.mxu0 %v3089
  %3621 = vmatpush.bf16.msra.mxu0 %v3087
  %3622 = vmatpush.bf16.msra.mxu0 %v3085
  %3623 = vmatmul.bf16.gmra.mxu0 %v3373
  %v3624 = vpop.f32.mrf.mxu0
  %v3625 = vadd.f32 0.0, %v3624
  %v3626 = vpop.f32.mrf.mxu0
  %v3627 = vadd.f32 0.0, %v3626
  %3628 = vdwg.mxu0
  %3629 = vmatpush.bf16.msra.mxu0 0
  %3630 = vmatpush.bf16.msra.mxu0 0
  %3631 = vmatpush.bf16.msra.mxu0 0
  %3632 = vmatpush.bf16.msra.mxu0 0
  %3633 = vmatpush.bf16.msra.mxu0 %v3132
  %3634 = vmatpush.bf16.msra.mxu0 %v3105
  %3635 = vmatpush.bf16.msra.mxu0 %v3103
  %3636 = vmatpush.bf16.msra.mxu0 %v3101
  %3637 = vmatmul.bf16.gmra.mxu0 %v3377
  %v3638 = vpop.f32.mrf.mxu0
  %v3639 = vadd.f32 %v3625, %v3638
  %v3640 = vpop.f32.mrf.mxu0
  %v3641 = vadd.f32 %v3627, %v3640
  %3642 = vdwg.mxu0
  %3643 = vmatpush.bf16.msra.mxu0 %v3100
  %3644 = vmatpush.bf16.msra.mxu0 %v3098
  %3645 = vmatpush.bf16.msra.mxu0 %v3096
  %3646 = vmatpush.bf16.msra.mxu0 %v3094
  %3647 = vmatpush.bf16.msra.mxu0 %v3092
  %3648 = vmatpush.bf16.msra.mxu0 %v3090
  %3649 = vmatpush.bf16.msra.mxu0 %v3088
  %3650 = vmatpush.bf16.msra.mxu0 %v3086
  %3651 = vmatmul.bf16.gmra.mxu0 %v3373
  %v3652 = vpop.f32.mrf.mxu0
  %v3653 = vadd.f32 0.0, %v3652
  %v3654 = vpop.f32.mrf.mxu0
  %v3655 = vadd.f32 0.0, %v3654
  %3656 = vdwg.mxu0
  %3657 = vmatpush.bf16.msra.mxu0 0
  %3658 = vmatpush.bf16.msra.mxu0 0
  %3659 = vmatpush.bf16.msra.mxu0 0
  %3660 = vmatpush.bf16.msra.mxu0 0
  %3661 = vmatpush.bf16.msra.mxu0 %v3135
  %3662 = vmatpush.bf16.msra.mxu0 %v3106
  %3663 = vmatpush.bf16.msra.mxu0 %v3104
  %3664 = vmatpush.bf16.msra.mxu0 %v3102
  %3665 = vmatmul.bf16.gmra.mxu0 %v3377
  %v3666 = vpop.f32.mrf.mxu0
  %v3667 = vadd.f32 %v3653, %v3666
  %v3668 = vpop.f32.mrf.mxu0
  %v3669 = vadd.f32 %v3655, %v3668
  %3670 = vdwg.mxu0
  %v3671 = vadd.f32 %v3611, %v3639
  %v3672 = vadd.f32 %v3612, %v3667
  %v3673 = vadd.f32 %v3613, %v3641
  %v3674 = vadd.f32 %v3614, %v3669
  %v3675 = vmax.f32 %v3439, %v3671
  %v3676 = vmax.f32 %v3440, %v3672
  %v3677 = vmax.f32 %v3441, %v3673
  %v3678 = vmax.f32 %v3442, %v3674
  %v3679 = vld [vmem:[%s4] sm:$0x3]
  %v3681 = vperm.slane %v3679, 0
  %v3682 = vperm.slane %v3679, 1
  %v3685 = vadd.f32 %v3675, %v3681
  %v3686 = vadd.f32 %v3676, %v3682
  %v3687 = vadd.f32 %v3677, %v3681
  %v3688 = vadd.f32 %v3678, %v3682
  %v3689 = vmax.f32 %v3685, 0.0
  %v3690 = vmax.f32 %v3686, 0.0
  %v3691 = vmax.f32 %v3687, 0.0
  %v3692 = vmax.f32 %v3688, 0.0
  %v3693 = vpack.c.bf16 %v3690, %v3689
  %v3694 = vpack.c.bf16 %v3692, %v3691
  %v3695 = vld [vmem:[%s5] sm:$0xff]
  %v3696 = vld [vmem:[%s5 + $0x8] sm:$0xff]
  %v3697 = vld [vmem:[%s5 + $0x10] sm:$0xff]
  %v3698 = vld [vmem:[%s5 + $0x18] sm:$0xff]
  %v3699 = vld [vmem:[%s5 + $0x20] sm:$0xff]
  %v3700 = vld [vmem:[%s5 + $0x28] sm:$0xff]
  %v3701 = vld [vmem:[%s5 + $0x30] sm:$0xff]
  %v3702 = vld [vmem:[%s5 + $0x38] sm:$0xff]
  %v3703 = vld [vmem:[%s5 + $0x40] sm:$0xff]
  %v3704 = vld [vmem:[%s5 + $0x48] sm:$0xff]
  %v3705 = vld [vmem:[%s5 + $0x50] sm:$0xff]
  %v3706 = vld [vmem:[%s5 + $0x58] sm:$0xff]
  %v3707 = vld [vmem:[%s5 + $0x60] sm:$0xff]
  %v3708 = vld [vmem:[%s5 + $0x68] sm:$0xff]
  %v3709 = vld [vmem:[%s5 + $0x70] sm:$0xff]
  %v3710 = vld [vmem:[%s5 + $0x78] sm:$0xff]
  %v3711 = vld [vmem:[%s5 + $0x80] sm:$0xff]
  %v3712 = vld [vmem:[%s5 + $0x88] sm:$0xff]
  %v3713 = vld [vmem:[%s5 + $0x90] sm:$0xff]
  %v3714 = vld [vmem:[%s5 + $0x98] sm:$0xff]
  %v3715 = vld [vmem:[%s5 + $0xa0] sm:$0xff]
  %v3716 = vld [vmem:[%s5 + $0xa8] sm:$0xff]
  %v3717 = vld [vmem:[%s5 + $0xb0] sm:$0xff]
  %v3718 = vld [vmem:[%s5 + $0xb8] sm:$0xff]
  %v3719 = vld [vmem:[%s5 + $0xc0] sm:$0xff]
  %v3720 = vld [vmem:[%s5 + $0xc8] sm:$0xff]
  %v3721 = vld [vmem:[%s5 + $0xd0] sm:$0xff]
  %v3722 = vld [vmem:[%s5 + $0xd8] sm:$0xff]
  %v3723 = vld [vmem:[%s5 + $0xe0] sm:$0xff]
  %v3724 = vld [vmem:[%s5 + $0xe8] sm:$0xff]
  %v3725 = vld [vmem:[%s5 + $0xf0] sm:$0xff]
  %v3726 = vld [vmem:[%s5 + $0xf8] sm:$0xff]
  %v3727 = vld [vmem:[%s5 + $0x100] sm:$0xff]
  %v3728 = vld [vmem:[%s5 + $0x108] sm:$0xff]
  %v3729 = vld [vmem:[%s5 + $0x110] sm:$0xff]
  %v3730 = vld [vmem:[%s5 + $0x118] sm:$0xff]
  %s3731 = scalar_lea.vmem %s5, 288
  %v3732 = vld [vmem:[%s3731] sm:$0xff]
  %v3733 = vld [vmem:[%s3731 + $0x8] sm:$0xff]
  %v3734 = vld [vmem:[%s3731 + $0x10] sm:$0xff]
  %v3735 = vld [vmem:[%s3731 + $0x18] sm:$0xff]
  %v3736 = vld [vmem:[%s3731 + $0x20] sm:$0xff]
  %v3737 = vld [vmem:[%s3731 + $0x28] sm:$0xff]
  %v3738 = vld [vmem:[%s3731 + $0x30] sm:$0xff]
  %v3739 = vld [vmem:[%s3731 + $0x38] sm:$0xff]
  %v3740 = vld [vmem:[%s3731 + $0x40] sm:$0xff]
  %v3741 = vld [vmem:[%s3731 + $0x48] sm:$0xff]
  %v3742 = vld [vmem:[%s3731 + $0x50] sm:$0xff]
  %v3743 = vld [vmem:[%s3731 + $0x58] sm:$0xff]
  %v3744 = vld [vmem:[%s3731 + $0x60] sm:$0xff]
  %v3745 = vld [vmem:[%s3731 + $0x68] sm:$0xff]
  %v3746 = vld [vmem:[%s3731 + $0x70] sm:$0xff]
  %v3747 = vld [vmem:[%s3731 + $0x78] sm:$0xff]
  %v3748 = vld [vmem:[%s3731 + $0x80] sm:$0xff]
  %v3749 = vld [vmem:[%s3731 + $0x88] sm:$0xff]
  %v3750 = vld [vmem:[%s3731 + $0x90] sm:$0xff]
  %v3751 = vld [vmem:[%s3731 + $0x98] sm:$0xff]
  %v3752 = vld [vmem:[%s3731 + $0xa0] sm:$0xff]
  %v3753 = vld [vmem:[%s3731 + $0xa8] sm:$0xff]
  %v3754 = vld [vmem:[%s3731 + $0xb0] sm:$0xff]
  %v3755 = vld [vmem:[%s3731 + $0xb8] sm:$0xff]
  %v3756 = vld [vmem:[%s3731 + $0xc0] sm:$0xff]
  %v3757 = vld [vmem:[%s3731 + $0xc8] sm:$0xff]
  %v3758 = vld [vmem:[%s3731 + $0xd0] sm:$0xff]
  %v3759 = vld [vmem:[%s3731 + $0xd8] sm:$0xff]
  %v3760 = vld [vmem:[%s3731 + $0xe0] sm:$0xff]
  %v3761 = vld [vmem:[%s3731 + $0xe8] sm:$0xff]
  %v3762 = vld [vmem:[%s3731 + $0xf0] sm:$0xff]
  %v3763 = vld [vmem:[%s3731 + $0xf8] sm:$0xff]
  %v3764 = vld [vmem:[%s3731 + $0x100] sm:$0xff]
  %v3765 = vld [vmem:[%s3731 + $0x108] sm:$0xff]
  %v3766 = vld [vmem:[%s3731 + $0x110] sm:$0xff]
  %v3767 = vld [vmem:[%s3731 + $0x118] sm:$0xff]
  %v3769 = vunpack.c.l.b16 %v3693
  %v3770 = vunpack.c.h.b16 %v3693
  %v3771 = vpack.c.b16 %v3769, %v3769
  %v3772 = vpack.c.b16 %v3770, %v3770
  %v3773 = vrot.slane %v3771, 1
  %v3774 = vrot.slane %v3772, 1
  %v3812 = vunpack.c.l.b16 %v3732
  %v3813 = vunpack.c.h.b16 %v3732
  %v3814 = vunpack.c.l.b16 %v3733
  %v3815 = vunpack.c.h.b16 %v3733
  %v3816 = vunpack.c.l.b16 %v3734
  %v3817 = vunpack.c.h.b16 %v3734
  %v3818 = vunpack.c.l.b16 %v3735
  %v3819 = vunpack.c.h.b16 %v3735
  %v3820 = vunpack.c.l.b16 %v3736
  %v3821 = vunpack.c.h.b16 %v3736
  %v3822 = vunpack.c.l.b16 %v3737
  %v3823 = vunpack.c.h.b16 %v3737
  %v3824 = vunpack.c.l.b16 %v3738
  %v3825 = vunpack.c.h.b16 %v3738
  %v3826 = vunpack.c.l.b16 %v3739
  %v3827 = vunpack.c.h.b16 %v3739
  %v3828 = vunpack.c.l.b16 %v3740
  %v3829 = vunpack.c.h.b16 %v3740
  %v3830 = vunpack.c.l.b16 %v3741
  %v3831 = vunpack.c.h.b16 %v3741
  %v3832 = vunpack.c.l.b16 %v3742
  %v3833 = vunpack.c.h.b16 %v3742
  %v3834 = vunpack.c.l.b16 %v3743
  %v3835 = vunpack.c.h.b16 %v3743
  %v3836 = vunpack.c.l.b16 %v3744
  %v3837 = vunpack.c.h.b16 %v3744
  %v3838 = vunpack.c.l.b16 %v3745
  %v3839 = vunpack.c.h.b16 %v3745
  %v3840 = vunpack.c.l.b16 %v3746
  %v3841 = vunpack.c.h.b16 %v3746
  %v3842 = vunpack.c.l.b16 %v3747
  %v3843 = vunpack.c.h.b16 %v3747
  %v3844 = vunpack.c.l.b16 %v3748
  %v3845 = vunpack.c.h.b16 %v3748
  %v3846 = vunpack.c.l.b16 %v3749
  %v3847 = vunpack.c.h.b16 %v3749
  %v3848 = vunpack.c.l.b16 %v3750
  %v3849 = vunpack.c.h.b16 %v3750
  %v3850 = vunpack.c.l.b16 %v3751
  %v3851 = vunpack.c.h.b16 %v3751
  %v3852 = vunpack.c.l.b16 %v3752
  %v3853 = vunpack.c.h.b16 %v3752
  %v3854 = vunpack.c.l.b16 %v3753
  %v3855 = vunpack.c.h.b16 %v3753
  %v3856 = vunpack.c.l.b16 %v3754
  %v3857 = vunpack.c.h.b16 %v3754
  %v3858 = vunpack.c.l.b16 %v3755
  %v3859 = vunpack.c.h.b16 %v3755
  %v3860 = vunpack.c.l.b16 %v3756
  %v3861 = vunpack.c.h.b16 %v3756
  %v3862 = vunpack.c.l.b16 %v3757
  %v3863 = vunpack.c.h.b16 %v3757
  %v3864 = vunpack.c.l.b16 %v3758
  %v3865 = vunpack.c.h.b16 %v3758
  %v3866 = vunpack.c.l.b16 %v3759
  %v3867 = vunpack.c.h.b16 %v3759
  %v3868 = vunpack.c.l.b16 %v3760
  %v3869 = vunpack.c.h.b16 %v3760
  %v3870 = vunpack.c.l.b16 %v3761
  %v3871 = vunpack.c.h.b16 %v3761
  %v3872 = vunpack.c.l.b16 %v3762
  %v3873 = vunpack.c.h.b16 %v3762
  %v3874 = vunpack.c.l.b16 %v3763
  %v3875 = vunpack.c.h.b16 %v3763
  %v3876 = vunpack.c.l.b16 %v3764
  %v3877 = vunpack.c.h.b16 %v3764
  %v3878 = vunpack.c.l.b16 %v3765
  %v3879 = vunpack.c.h.b16 %v3765
  %v3880 = vunpack.c.l.b16 %v3766
  %v3881 = vunpack.c.h.b16 %v3766
  %v3882 = vunpack.c.l.b16 %v3767
  %v3883 = vunpack.c.h.b16 %v3767
  %v3884 = vpack.c.b16 %v3816, %v3812
  %v3885 = vpack.c.b16 %v3817, %v3813
  %v3886 = vpack.c.b16 %v3818, %v3814
  %v3887 = vpack.c.b16 %v3819, %v3815
  %v3888 = vpack.c.b16 %v3824, %v3820
  %v3889 = vpack.c.b16 %v3825, %v3821
  %v3890 = vpack.c.b16 %v3826, %v3822
  %v3891 = vpack.c.b16 %v3827, %v3823
  %v3892 = vpack.c.b16 %v3832, %v3828
  %v3893 = vpack.c.b16 %v3833, %v3829
  %v3894 = vpack.c.b16 %v3834, %v3830
  %v3895 = vpack.c.b16 %v3835, %v3831
  %v3896 = vpack.c.b16 %v3840, %v3836
  %v3897 = vpack.c.b16 %v3841, %v3837
  %v3898 = vpack.c.b16 %v3842, %v3838
  %v3899 = vpack.c.b16 %v3843, %v3839
  %v3900 = vpack.c.b16 %v3848, %v3844
  %v3901 = vpack.c.b16 %v3849, %v3845
  %v3902 = vpack.c.b16 %v3850, %v3846
  %v3903 = vpack.c.b16 %v3851, %v3847
  %v3904 = vpack.c.b16 %v3856, %v3852
  %v3905 = vpack.c.b16 %v3857, %v3853
  %v3906 = vpack.c.b16 %v3858, %v3854
  %v3907 = vpack.c.b16 %v3859, %v3855
  %v3908 = vpack.c.b16 %v3864, %v3860
  %v3909 = vpack.c.b16 %v3865, %v3861
  %v3910 = vpack.c.b16 %v3866, %v3862
  %v3911 = vpack.c.b16 %v3867, %v3863
  %v3912 = vpack.c.b16 %v3872, %v3868
  %v3913 = vpack.c.b16 %v3873, %v3869
  %v3914 = vpack.c.b16 %v3874, %v3870
  %v3915 = vpack.c.b16 %v3875, %v3871
  %v3916 = vpack.c.b16 %v3880, %v3876
  %v3917 = vpack.c.b16 %v3881, %v3877
  %v3918 = vpack.c.b16 %v3882, %v3878
  %v3919 = vpack.c.b16 %v3883, %v3879
  %vm3956 = vcmask 130048
  %v3958 = vsel %vm3956, %v3774, 0
  %3960 = vmatpush.bf16.msra.mxu0 %v3912
  %3961 = vmatpush.bf16.msra.mxu0 %v3908
  %3962 = vmatpush.bf16.msra.mxu0 %v3904
  %3963 = vmatpush.bf16.msra.mxu0 %v3900
  %3964 = vmatpush.bf16.msra.mxu0 %v3896
  %3965 = vmatpush.bf16.msra.mxu0 %v3892
  %3966 = vmatpush.bf16.msra.mxu0 %v3888
  %3967 = vmatpush.bf16.msra.mxu0 %v3884
  %3968 = vmatmul.bf16.gmra.mxu0 %v3773
  %v3969 = vpop.f32.mrf.mxu0
  %v3970 = vadd.f32 0.0, %v3969
  %v3971 = vpop.f32.mrf.mxu0
  %3972 = vdwg.mxu0
  %3973 = vmatpush.bf16.msra.mxu0 0
  %3974 = vmatpush.bf16.msra.mxu0 0
  %3975 = vmatpush.bf16.msra.mxu0 0
  %3976 = vmatpush.bf16.msra.mxu0 0
  %3977 = vmatpush.bf16.msra.mxu0 0
  %3978 = vmatpush.bf16.msra.mxu0 0
  %3979 = vmatpush.bf16.msra.mxu0 0
  %3980 = vmatpush.bf16.msra.mxu0 %v3916
  %3981 = vmatmul.bf16.gmra.mxu0 %v3958
  %v3982 = vpop.f32.mrf.mxu0
  %v3983 = vadd.f32 %v3970, %v3982
  %v3984 = vpop.f32.mrf.mxu0
  %3985 = vdwg.mxu0
  %3986 = vmatpush.bf16.msra.mxu0 %v3913
  %3987 = vmatpush.bf16.msra.mxu0 %v3909
  %3988 = vmatpush.bf16.msra.mxu0 %v3905
  %3989 = vmatpush.bf16.msra.mxu0 %v3901
  %3990 = vmatpush.bf16.msra.mxu0 %v3897
  %3991 = vmatpush.bf16.msra.mxu0 %v3893
  %3992 = vmatpush.bf16.msra.mxu0 %v3889
  %3993 = vmatpush.bf16.msra.mxu0 %v3885
  %3994 = vmatmul.bf16.gmra.mxu0 %v3773
  %v3995 = vpop.f32.mrf.mxu0
  %v3996 = vadd.f32 0.0, %v3995
  %v3997 = vpop.f32.mrf.mxu0
  %3998 = vdwg.mxu0
  %3999 = vmatpush.bf16.msra.mxu0 0
  %4000 = vmatpush.bf16.msra.mxu0 0
  %4001 = vmatpush.bf16.msra.mxu0 0
  %4002 = vmatpush.bf16.msra.mxu0 0
  %4003 = vmatpush.bf16.msra.mxu0 0
  %4004 = vmatpush.bf16.msra.mxu0 0
  %4005 = vmatpush.bf16.msra.mxu0 0
  %4006 = vmatpush.bf16.msra.mxu0 %v3917
  %4007 = vmatmul.bf16.gmra.mxu0 %v3958
  %v4008 = vpop.f32.mrf.mxu0
  %v4009 = vadd.f32 %v3996, %v4008
  %v4010 = vpop.f32.mrf.mxu0
  %4011 = vdwg.mxu0
  %4012 = vmatpush.bf16.msra.mxu0 %v3914
  %4013 = vmatpush.bf16.msra.mxu0 %v3910
  %4014 = vmatpush.bf16.msra.mxu0 %v3906
  %4015 = vmatpush.bf16.msra.mxu0 %v3902
  %4016 = vmatpush.bf16.msra.mxu0 %v3898
  %4017 = vmatpush.bf16.msra.mxu0 %v3894
  %4018 = vmatpush.bf16.msra.mxu0 %v3890
  %4019 = vmatpush.bf16.msra.mxu0 %v3886
  %4020 = vmatmul.bf16.gmra.mxu0 %v3773
  %v4021 = vpop.f32.mrf.mxu0
  %v4022 = vadd.f32 0.0, %v4021
  %v4023 = vpop.f32.mrf.mxu0
  %4024 = vdwg.mxu0
  %4025 = vmatpush.bf16.msra.mxu0 0
  %4026 = vmatpush.bf16.msra.mxu0 0
  %4027 = vmatpush.bf16.msra.mxu0 0
  %4028 = vmatpush.bf16.msra.mxu0 0
  %4029 = vmatpush.bf16.msra.mxu0 0
  %4030 = vmatpush.bf16.msra.mxu0 0
  %4031 = vmatpush.bf16.msra.mxu0 0
  %4032 = vmatpush.bf16.msra.mxu0 %v3918
  %4033 = vmatmul.bf16.gmra.mxu0 %v3958
  %v4034 = vpop.f32.mrf.mxu0
  %v4035 = vadd.f32 %v4022, %v4034
  %v4036 = vpop.f32.mrf.mxu0
  %4037 = vdwg.mxu0
  %4038 = vmatpush.bf16.msra.mxu0 %v3915
  %4039 = vmatpush.bf16.msra.mxu0 %v3911
  %4040 = vmatpush.bf16.msra.mxu0 %v3907
  %4041 = vmatpush.bf16.msra.mxu0 %v3903
  %4042 = vmatpush.bf16.msra.mxu0 %v3899
  %4043 = vmatpush.bf16.msra.mxu0 %v3895
  %4044 = vmatpush.bf16.msra.mxu0 %v3891
  %4045 = vmatpush.bf16.msra.mxu0 %v3887
  %4046 = vmatmul.bf16.gmra.mxu0 %v3773
  %v4047 = vpop.f32.mrf.mxu0
  %v4048 = vadd.f32 0.0, %v4047
  %v4049 = vpop.f32.mrf.mxu0
  %4050 = vdwg.mxu0
  %4051 = vmatpush.bf16.msra.mxu0 0
  %4052 = vmatpush.bf16.msra.mxu0 0
  %4053 = vmatpush.bf16.msra.mxu0 0
  %4054 = vmatpush.bf16.msra.mxu0 0
  %4055 = vmatpush.bf16.msra.mxu0 0
  %4056 = vmatpush.bf16.msra.mxu0 0
  %4057 = vmatpush.bf16.msra.mxu0 0
  %4058 = vmatpush.bf16.msra.mxu0 %v3919
  %4059 = vmatmul.bf16.gmra.mxu0 %v3958
  %v4060 = vpop.f32.mrf.mxu0
  %v4061 = vadd.f32 %v4048, %v4060
  %v4062 = vpop.f32.mrf.mxu0
  %4063 = vdwg.mxu0
  %v4101 = vunpack.c.l.b16 %v3695
  %v4102 = vunpack.c.h.b16 %v3695
  %v4103 = vunpack.c.l.b16 %v3696
  %v4104 = vunpack.c.h.b16 %v3696
  %v4105 = vunpack.c.l.b16 %v3697
  %v4106 = vunpack.c.h.b16 %v3697
  %v4107 = vunpack.c.l.b16 %v3698
  %v4108 = vunpack.c.h.b16 %v3698
  %v4109 = vunpack.c.l.b16 %v3699
  %v4110 = vunpack.c.h.b16 %v3699
  %v4111 = vunpack.c.l.b16 %v3700
  %v4112 = vunpack.c.h.b16 %v3700
  %v4113 = vunpack.c.l.b16 %v3701
  %v4114 = vunpack.c.h.b16 %v3701
  %v4115 = vunpack.c.l.b16 %v3702
  %v4116 = vunpack.c.h.b16 %v3702
  %v4117 = vunpack.c.l.b16 %v3703
  %v4118 = vunpack.c.h.b16 %v3703
  %v4119 = vunpack.c.l.b16 %v3704
  %v4120 = vunpack.c.h.b16 %v3704
  %v4121 = vunpack.c.l.b16 %v3705
  %v4122 = vunpack.c.h.b16 %v3705
  %v4123 = vunpack.c.l.b16 %v3706
  %v4124 = vunpack.c.h.b16 %v3706
  %v4125 = vunpack.c.l.b16 %v3707
  %v4126 = vunpack.c.h.b16 %v3707
  %v4127 = vunpack.c.l.b16 %v3708
  %v4128 = vunpack.c.h.b16 %v3708
  %v4129 = vunpack.c.l.b16 %v3709
  %v4130 = vunpack.c.h.b16 %v3709
  %v4131 = vunpack.c.l.b16 %v3710
  %v4132 = vunpack.c.h.b16 %v3710
  %v4133 = vunpack.c.l.b16 %v3711
  %v4134 = vunpack.c.h.b16 %v3711
  %v4135 = vunpack.c.l.b16 %v3712
  %v4136 = vunpack.c.h.b16 %v3712
  %v4137 = vunpack.c.l.b16 %v3713
  %v4138 = vunpack.c.h.b16 %v3713
  %v4139 = vunpack.c.l.b16 %v3714
  %v4140 = vunpack.c.h.b16 %v3714
  %v4141 = vunpack.c.l.b16 %v3715
  %v4142 = vunpack.c.h.b16 %v3715
  %v4143 = vunpack.c.l.b16 %v3716
  %v4144 = vunpack.c.h.b16 %v3716
  %v4145 = vunpack.c.l.b16 %v3717
  %v4146 = vunpack.c.h.b16 %v3717
  %v4147 = vunpack.c.l.b16 %v3718
  %v4148 = vunpack.c.h.b16 %v3718
  %v4149 = vunpack.c.l.b16 %v3719
  %v4150 = vunpack.c.h.b16 %v3719
  %v4151 = vunpack.c.l.b16 %v3720
  %v4152 = vunpack.c.h.b16 %v3720
  %v4153 = vunpack.c.l.b16 %v3721
  %v4154 = vunpack.c.h.b16 %v3721
  %v4155 = vunpack.c.l.b16 %v3722
  %v4156 = vunpack.c.h.b16 %v3722
  %v4157 = vunpack.c.l.b16 %v3723
  %v4158 = vunpack.c.h.b16 %v3723
  %v4159 = vunpack.c.l.b16 %v3724
  %v4160 = vunpack.c.h.b16 %v3724
  %v4161 = vunpack.c.l.b16 %v3725
  %v4162 = vunpack.c.h.b16 %v3725
  %v4163 = vunpack.c.l.b16 %v3726
  %v4164 = vunpack.c.h.b16 %v3726
  %v4165 = vunpack.c.l.b16 %v3727
  %v4166 = vunpack.c.h.b16 %v3727
  %v4167 = vunpack.c.l.b16 %v3728
  %v4168 = vunpack.c.h.b16 %v3728
  %v4169 = vunpack.c.l.b16 %v3729
  %v4170 = vunpack.c.h.b16 %v3729
  %v4171 = vunpack.c.l.b16 %v3730
  %v4172 = vunpack.c.h.b16 %v3730
  %v4173 = vpack.c.b16 %v4105, %v4101
  %v4174 = vpack.c.b16 %v4106, %v4102
  %v4175 = vpack.c.b16 %v4107, %v4103
  %v4176 = vpack.c.b16 %v4108, %v4104
  %v4177 = vpack.c.b16 %v4113, %v4109
  %v4178 = vpack.c.b16 %v4114, %v4110
  %v4179 = vpack.c.b16 %v4115, %v4111
  %v4180 = vpack.c.b16 %v4116, %v4112
  %v4181 = vpack.c.b16 %v4121, %v4117
  %v4182 = vpack.c.b16 %v4122, %v4118
  %v4183 = vpack.c.b16 %v4123, %v4119
  %v4184 = vpack.c.b16 %v4124, %v4120
  %v4185 = vpack.c.b16 %v4129, %v4125
  %v4186 = vpack.c.b16 %v4130, %v4126
  %v4187 = vpack.c.b16 %v4131, %v4127
  %v4188 = vpack.c.b16 %v4132, %v4128
  %v4189 = vpack.c.b16 %v4137, %v4133
  %v4190 = vpack.c.b16 %v4138, %v4134
  %v4191 = vpack.c.b16 %v4139, %v4135
  %v4192 = vpack.c.b16 %v4140, %v4136
  %v4193 = vpack.c.b16 %v4145, %v4141
  %v4194 = vpack.c.b16 %v4146, %v4142
  %v4195 = vpack.c.b16 %v4147, %v4143
  %v4196 = vpack.c.b16 %v4148, %v4144
  %v4197 = vpack.c.b16 %v4153, %v4149
  %v4198 = vpack.c.b16 %v4154, %v4150
  %v4199 = vpack.c.b16 %v4155, %v4151
  %v4200 = vpack.c.b16 %v4156, %v4152
  %v4201 = vpack.c.b16 %v4161, %v4157
  %v4202 = vpack.c.b16 %v4162, %v4158
  %v4203 = vpack.c.b16 %v4163, %v4159
  %v4204 = vpack.c.b16 %v4164, %v4160
  %v4205 = vpack.c.b16 %v4169, %v4165
  %v4206 = vpack.c.b16 %v4170, %v4166
  %v4207 = vpack.c.b16 %v4171, %v4167
  %v4208 = vpack.c.b16 %v4172, %v4168
  %v4246 = vsel %vm3956, %v3772, 0
  %4248 = vmatpush.bf16.msra.mxu0 %v4201
  %4249 = vmatpush.bf16.msra.mxu0 %v4197
  %4250 = vmatpush.bf16.msra.mxu0 %v4193
  %4251 = vmatpush.bf16.msra.mxu0 %v4189
  %4252 = vmatpush.bf16.msra.mxu0 %v4185
  %4253 = vmatpush.bf16.msra.mxu0 %v4181
  %4254 = vmatpush.bf16.msra.mxu0 %v4177
  %4255 = vmatpush.bf16.msra.mxu0 %v4173
  %4256 = vmatmul.bf16.gmra.mxu0 %v3771
  %v4257 = vpop.f32.mrf.mxu0
  %v4258 = vadd.f32 %v3983, %v4257
  %v4259 = vpop.f32.mrf.mxu0
  %4260 = vdwg.mxu0
  %4261 = vmatpush.bf16.msra.mxu0 0
  %4262 = vmatpush.bf16.msra.mxu0 0
  %4263 = vmatpush.bf16.msra.mxu0 0
  %4264 = vmatpush.bf16.msra.mxu0 0
  %4265 = vmatpush.bf16.msra.mxu0 0
  %4266 = vmatpush.bf16.msra.mxu0 0
  %4267 = vmatpush.bf16.msra.mxu0 0
  %4268 = vmatpush.bf16.msra.mxu0 %v4205
  %4269 = vmatmul.bf16.gmra.mxu0 %v4246
  %v4270 = vpop.f32.mrf.mxu0
  %v4271 = vadd.f32 %v4258, %v4270
  %v4272 = vpop.f32.mrf.mxu0
  %4273 = vdwg.mxu0
  %4274 = vmatpush.bf16.msra.mxu0 %v4202
  %4275 = vmatpush.bf16.msra.mxu0 %v4198
  %4276 = vmatpush.bf16.msra.mxu0 %v4194
  %4277 = vmatpush.bf16.msra.mxu0 %v4190
  %4278 = vmatpush.bf16.msra.mxu0 %v4186
  %4279 = vmatpush.bf16.msra.mxu0 %v4182
  %4280 = vmatpush.bf16.msra.mxu0 %v4178
  %4281 = vmatpush.bf16.msra.mxu0 %v4174
  %4282 = vmatmul.bf16.gmra.mxu0 %v3771
  %v4283 = vpop.f32.mrf.mxu0
  %v4284 = vadd.f32 %v4009, %v4283
  %v4285 = vpop.f32.mrf.mxu0
  %4286 = vdwg.mxu0
  %4287 = vmatpush.bf16.msra.mxu0 0
  %4288 = vmatpush.bf16.msra.mxu0 0
  %4289 = vmatpush.bf16.msra.mxu0 0
  %4290 = vmatpush.bf16.msra.mxu0 0
  %4291 = vmatpush.bf16.msra.mxu0 0
  %4292 = vmatpush.bf16.msra.mxu0 0
  %4293 = vmatpush.bf16.msra.mxu0 0
  %4294 = vmatpush.bf16.msra.mxu0 %v4206
  %4295 = vmatmul.bf16.gmra.mxu0 %v4246
  %v4296 = vpop.f32.mrf.mxu0
  %v4297 = vadd.f32 %v4284, %v4296
  %v4298 = vpop.f32.mrf.mxu0
  %4299 = vdwg.mxu0
  %4300 = vmatpush.bf16.msra.mxu0 %v4203
  %4301 = vmatpush.bf16.msra.mxu0 %v4199
  %4302 = vmatpush.bf16.msra.mxu0 %v4195
  %4303 = vmatpush.bf16.msra.mxu0 %v4191
  %4304 = vmatpush.bf16.msra.mxu0 %v4187
  %4305 = vmatpush.bf16.msra.mxu0 %v4183
  %4306 = vmatpush.bf16.msra.mxu0 %v4179
  %4307 = vmatpush.bf16.msra.mxu0 %v4175
  %4308 = vmatmul.bf16.gmra.mxu0 %v3771
  %v4309 = vpop.f32.mrf.mxu0
  %v4310 = vadd.f32 %v4035, %v4309
  %v4311 = vpop.f32.mrf.mxu0
  %4312 = vdwg.mxu0
  %4313 = vmatpush.bf16.msra.mxu0 0
  %4314 = vmatpush.bf16.msra.mxu0 0
  %4315 = vmatpush.bf16.msra.mxu0 0
  %4316 = vmatpush.bf16.msra.mxu0 0
  %4317 = vmatpush.bf16.msra.mxu0 0
  %4318 = vmatpush.bf16.msra.mxu0 0
  %4319 = vmatpush.bf16.msra.mxu0 0
  %4320 = vmatpush.bf16.msra.mxu0 %v4207
  %4321 = vmatmul.bf16.gmra.mxu0 %v4246
  %v4322 = vpop.f32.mrf.mxu0
  %v4323 = vadd.f32 %v4310, %v4322
  %v4324 = vpop.f32.mrf.mxu0
  %4325 = vdwg.mxu0
  %4326 = vmatpush.bf16.msra.mxu0 %v4204
  %4327 = vmatpush.bf16.msra.mxu0 %v4200
  %4328 = vmatpush.bf16.msra.mxu0 %v4196
  %4329 = vmatpush.bf16.msra.mxu0 %v4192
  %4330 = vmatpush.bf16.msra.mxu0 %v4188
  %4331 = vmatpush.bf16.msra.mxu0 %v4184
  %4332 = vmatpush.bf16.msra.mxu0 %v4180
  %4333 = vmatpush.bf16.msra.mxu0 %v4176
  %4334 = vmatmul.bf16.gmra.mxu0 %v3771
  %v4335 = vpop.f32.mrf.mxu0
  %v4336 = vadd.f32 %v4061, %v4335
  %v4337 = vpop.f32.mrf.mxu0
  %4338 = vdwg.mxu0
  %4339 = vmatpush.bf16.msra.mxu0 0
  %4340 = vmatpush.bf16.msra.mxu0 0
  %4341 = vmatpush.bf16.msra.mxu0 0
  %4342 = vmatpush.bf16.msra.mxu0 0
  %4343 = vmatpush.bf16.msra.mxu0 0
  %4344 = vmatpush.bf16.msra.mxu0 0
  %4345 = vmatpush.bf16.msra.mxu0 0
  %4346 = vmatpush.bf16.msra.mxu0 %v4208
  %4347 = vmatmul.bf16.gmra.mxu0 %v4246
  %v4348 = vpop.f32.mrf.mxu0
  %v4349 = vadd.f32 %v4336, %v4348
  %v4350 = vpop.f32.mrf.mxu0
  %4351 = vdwg.mxu0
  %s4352 = scalar_lea.vmem %s5, 576
  %v4353 = vld [vmem:[%s4352] sm:$0xff]
  %v4354 = vld [vmem:[%s4352 + $0x8] sm:$0xff]
  %v4355 = vld [vmem:[%s4352 + $0x10] sm:$0xff]
  %v4356 = vld [vmem:[%s4352 + $0x18] sm:$0xff]
  %v4357 = vld [vmem:[%s4352 + $0x20] sm:$0xff]
  %v4358 = vld [vmem:[%s4352 + $0x28] sm:$0xff]
  %v4359 = vld [vmem:[%s4352 + $0x30] sm:$0xff]
  %v4360 = vld [vmem:[%s4352 + $0x38] sm:$0xff]
  %v4361 = vld [vmem:[%s4352 + $0x40] sm:$0xff]
  %v4362 = vld [vmem:[%s4352 + $0x48] sm:$0xff]
  %v4363 = vld [vmem:[%s4352 + $0x50] sm:$0xff]
  %v4364 = vld [vmem:[%s4352 + $0x58] sm:$0xff]
  %v4365 = vld [vmem:[%s4352 + $0x60] sm:$0xff]
  %v4366 = vld [vmem:[%s4352 + $0x68] sm:$0xff]
  %v4367 = vld [vmem:[%s4352 + $0x70] sm:$0xff]
  %v4368 = vld [vmem:[%s4352 + $0x78] sm:$0xff]
  %v4369 = vld [vmem:[%s4352 + $0x80] sm:$0xff]
  %v4370 = vld [vmem:[%s4352 + $0x88] sm:$0xff]
  %v4371 = vld [vmem:[%s4352 + $0x90] sm:$0xff]
  %v4372 = vld [vmem:[%s4352 + $0x98] sm:$0xff]
  %v4373 = vld [vmem:[%s4352 + $0xa0] sm:$0xff]
  %v4374 = vld [vmem:[%s4352 + $0xa8] sm:$0xff]
  %v4375 = vld [vmem:[%s4352 + $0xb0] sm:$0xff]
  %v4376 = vld [vmem:[%s4352 + $0xb8] sm:$0xff]
  %v4377 = vld [vmem:[%s4352 + $0xc0] sm:$0xff]
  %v4378 = vld [vmem:[%s4352 + $0xc8] sm:$0xff]
  %v4379 = vld [vmem:[%s4352 + $0xd0] sm:$0xff]
  %v4380 = vld [vmem:[%s4352 + $0xd8] sm:$0xff]
  %v4381 = vld [vmem:[%s4352 + $0xe0] sm:$0xff]
  %v4382 = vld [vmem:[%s4352 + $0xe8] sm:$0xff]
  %v4383 = vld [vmem:[%s4352 + $0xf0] sm:$0xff]
  %v4384 = vld [vmem:[%s4352 + $0xf8] sm:$0xff]
  %v4385 = vld [vmem:[%s4352 + $0x100] sm:$0xff]
  %v4386 = vld [vmem:[%s4352 + $0x108] sm:$0xff]
  %v4387 = vld [vmem:[%s4352 + $0x110] sm:$0xff]
  %v4388 = vld [vmem:[%s4352 + $0x118] sm:$0xff]
  %v4389 = vrot.slane %v3771, 2
  %v4390 = vrot.slane %v3772, 2
  %v4428 = vunpack.c.l.b16 %v4353
  %v4429 = vunpack.c.h.b16 %v4353
  %v4430 = vunpack.c.l.b16 %v4354
  %v4431 = vunpack.c.h.b16 %v4354
  %v4432 = vunpack.c.l.b16 %v4355
  %v4433 = vunpack.c.h.b16 %v4355
  %v4434 = vunpack.c.l.b16 %v4356
  %v4435 = vunpack.c.h.b16 %v4356
  %v4436 = vunpack.c.l.b16 %v4357
  %v4437 = vunpack.c.h.b16 %v4357
  %v4438 = vunpack.c.l.b16 %v4358
  %v4439 = vunpack.c.h.b16 %v4358
  %v4440 = vunpack.c.l.b16 %v4359
  %v4441 = vunpack.c.h.b16 %v4359
  %v4442 = vunpack.c.l.b16 %v4360
  %v4443 = vunpack.c.h.b16 %v4360
  %v4444 = vunpack.c.l.b16 %v4361
  %v4445 = vunpack.c.h.b16 %v4361
  %v4446 = vunpack.c.l.b16 %v4362
  %v4447 = vunpack.c.h.b16 %v4362
  %v4448 = vunpack.c.l.b16 %v4363
  %v4449 = vunpack.c.h.b16 %v4363
  %v4450 = vunpack.c.l.b16 %v4364
  %v4451 = vunpack.c.h.b16 %v4364
  %v4452 = vunpack.c.l.b16 %v4365
  %v4453 = vunpack.c.h.b16 %v4365
  %v4454 = vunpack.c.l.b16 %v4366
  %v4455 = vunpack.c.h.b16 %v4366
  %v4456 = vunpack.c.l.b16 %v4367
  %v4457 = vunpack.c.h.b16 %v4367
  %v4458 = vunpack.c.l.b16 %v4368
  %v4459 = vunpack.c.h.b16 %v4368
  %v4460 = vunpack.c.l.b16 %v4369
  %v4461 = vunpack.c.h.b16 %v4369
  %v4462 = vunpack.c.l.b16 %v4370
  %v4463 = vunpack.c.h.b16 %v4370
  %v4464 = vunpack.c.l.b16 %v4371
  %v4465 = vunpack.c.h.b16 %v4371
  %v4466 = vunpack.c.l.b16 %v4372
  %v4467 = vunpack.c.h.b16 %v4372
  %v4468 = vunpack.c.l.b16 %v4373
  %v4469 = vunpack.c.h.b16 %v4373
  %v4470 = vunpack.c.l.b16 %v4374
  %v4471 = vunpack.c.h.b16 %v4374
  %v4472 = vunpack.c.l.b16 %v4375
  %v4473 = vunpack.c.h.b16 %v4375
  %v4474 = vunpack.c.l.b16 %v4376
  %v4475 = vunpack.c.h.b16 %v4376
  %v4476 = vunpack.c.l.b16 %v4377
  %v4477 = vunpack.c.h.b16 %v4377
  %v4478 = vunpack.c.l.b16 %v4378
  %v4479 = vunpack.c.h.b16 %v4378
  %v4480 = vunpack.c.l.b16 %v4379
  %v4481 = vunpack.c.h.b16 %v4379
  %v4482 = vunpack.c.l.b16 %v4380
  %v4483 = vunpack.c.h.b16 %v4380
  %v4484 = vunpack.c.l.b16 %v4381
  %v4485 = vunpack.c.h.b16 %v4381
  %v4486 = vunpack.c.l.b16 %v4382
  %v4487 = vunpack.c.h.b16 %v4382
  %v4488 = vunpack.c.l.b16 %v4383
  %v4489 = vunpack.c.h.b16 %v4383
  %v4490 = vunpack.c.l.b16 %v4384
  %v4491 = vunpack.c.h.b16 %v4384
  %v4492 = vunpack.c.l.b16 %v4385
  %v4493 = vunpack.c.h.b16 %v4385
  %v4494 = vunpack.c.l.b16 %v4386
  %v4495 = vunpack.c.h.b16 %v4386
  %v4496 = vunpack.c.l.b16 %v4387
  %v4497 = vunpack.c.h.b16 %v4387
  %v4498 = vunpack.c.l.b16 %v4388
  %v4499 = vunpack.c.h.b16 %v4388
  %v4500 = vpack.c.b16 %v4432, %v4428
  %v4501 = vpack.c.b16 %v4433, %v4429
  %v4502 = vpack.c.b16 %v4434, %v4430
  %v4503 = vpack.c.b16 %v4435, %v4431
  %v4504 = vpack.c.b16 %v4440, %v4436
  %v4505 = vpack.c.b16 %v4441, %v4437
  %v4506 = vpack.c.b16 %v4442, %v4438
  %v4507 = vpack.c.b16 %v4443, %v4439
  %v4508 = vpack.c.b16 %v4448, %v4444
  %v4509 = vpack.c.b16 %v4449, %v4445
  %v4510 = vpack.c.b16 %v4450, %v4446
  %v4511 = vpack.c.b16 %v4451, %v4447
  %v4512 = vpack.c.b16 %v4456, %v4452
  %v4513 = vpack.c.b16 %v4457, %v4453
  %v4514 = vpack.c.b16 %v4458, %v4454
  %v4515 = vpack.c.b16 %v4459, %v4455
  %v4516 = vpack.c.b16 %v4464, %v4460
  %v4517 = vpack.c.b16 %v4465, %v4461
  %v4518 = vpack.c.b16 %v4466, %v4462
  %v4519 = vpack.c.b16 %v4467, %v4463
  %v4520 = vpack.c.b16 %v4472, %v4468
  %v4521 = vpack.c.b16 %v4473, %v4469
  %v4522 = vpack.c.b16 %v4474, %v4470
  %v4523 = vpack.c.b16 %v4475, %v4471
  %v4524 = vpack.c.b16 %v4480, %v4476
  %v4525 = vpack.c.b16 %v4481, %v4477
  %v4526 = vpack.c.b16 %v4482, %v4478
  %v4527 = vpack.c.b16 %v4483, %v4479
  %v4528 = vpack.c.b16 %v4488, %v4484
  %v4529 = vpack.c.b16 %v4489, %v4485
  %v4530 = vpack.c.b16 %v4490, %v4486
  %v4531 = vpack.c.b16 %v4491, %v4487
  %v4532 = vpack.c.b16 %v4496, %v4492
  %v4533 = vpack.c.b16 %v4497, %v4493
  %v4534 = vpack.c.b16 %v4498, %v4494
  %v4535 = vpack.c.b16 %v4499, %v4495
  %v4573 = vsel %vm3956, %v4390, 0
  %4575 = vmatpush.bf16.msra.mxu0 %v4528
  %4576 = vmatpush.bf16.msra.mxu0 %v4524
  %4577 = vmatpush.bf16.msra.mxu0 %v4520
  %4578 = vmatpush.bf16.msra.mxu0 %v4516
  %4579 = vmatpush.bf16.msra.mxu0 %v4512
  %4580 = vmatpush.bf16.msra.mxu0 %v4508
  %4581 = vmatpush.bf16.msra.mxu0 %v4504
  %4582 = vmatpush.bf16.msra.mxu0 %v4500
  %4583 = vmatmul.bf16.gmra.mxu0 %v4389
  %v4584 = vpop.f32.mrf.mxu0
  %v4585 = vadd.f32 0.0, %v4584
  %v4586 = vpop.f32.mrf.mxu0
  %4587 = vdwg.mxu0
  %4588 = vmatpush.bf16.msra.mxu0 0
  %4589 = vmatpush.bf16.msra.mxu0 0
  %4590 = vmatpush.bf16.msra.mxu0 0
  %4591 = vmatpush.bf16.msra.mxu0 0
  %4592 = vmatpush.bf16.msra.mxu0 0
  %4593 = vmatpush.bf16.msra.mxu0 0
  %4594 = vmatpush.bf16.msra.mxu0 0
  %4595 = vmatpush.bf16.msra.mxu0 %v4532
  %4596 = vmatmul.bf16.gmra.mxu0 %v4573
  %v4597 = vpop.f32.mrf.mxu0
  %v4598 = vadd.f32 %v4585, %v4597
  %v4599 = vpop.f32.mrf.mxu0
  %4600 = vdwg.mxu0
  %4601 = vmatpush.bf16.msra.mxu0 %v4529
  %4602 = vmatpush.bf16.msra.mxu0 %v4525
  %4603 = vmatpush.bf16.msra.mxu0 %v4521
  %4604 = vmatpush.bf16.msra.mxu0 %v4517
  %4605 = vmatpush.bf16.msra.mxu0 %v4513
  %4606 = vmatpush.bf16.msra.mxu0 %v4509
  %4607 = vmatpush.bf16.msra.mxu0 %v4505
  %4608 = vmatpush.bf16.msra.mxu0 %v4501
  %4609 = vmatmul.bf16.gmra.mxu0 %v4389
  %v4610 = vpop.f32.mrf.mxu0
  %v4611 = vadd.f32 0.0, %v4610
  %v4612 = vpop.f32.mrf.mxu0
  %4613 = vdwg.mxu0
  %4614 = vmatpush.bf16.msra.mxu0 0
  %4615 = vmatpush.bf16.msra.mxu0 0
  %4616 = vmatpush.bf16.msra.mxu0 0
  %4617 = vmatpush.bf16.msra.mxu0 0
  %4618 = vmatpush.bf16.msra.mxu0 0
  %4619 = vmatpush.bf16.msra.mxu0 0
  %4620 = vmatpush.bf16.msra.mxu0 0
  %4621 = vmatpush.bf16.msra.mxu0 %v4533
  %4622 = vmatmul.bf16.gmra.mxu0 %v4573
  %v4623 = vpop.f32.mrf.mxu0
  %v4624 = vadd.f32 %v4611, %v4623
  %v4625 = vpop.f32.mrf.mxu0
  %4626 = vdwg.mxu0
  %4627 = vmatpush.bf16.msra.mxu0 %v4530
  %4628 = vmatpush.bf16.msra.mxu0 %v4526
  %4629 = vmatpush.bf16.msra.mxu0 %v4522
  %4630 = vmatpush.bf16.msra.mxu0 %v4518
  %4631 = vmatpush.bf16.msra.mxu0 %v4514
  %4632 = vmatpush.bf16.msra.mxu0 %v4510
  %4633 = vmatpush.bf16.msra.mxu0 %v4506
  %4634 = vmatpush.bf16.msra.mxu0 %v4502
  %4635 = vmatmul.bf16.gmra.mxu0 %v4389
  %v4636 = vpop.f32.mrf.mxu0
  %v4637 = vadd.f32 0.0, %v4636
  %v4638 = vpop.f32.mrf.mxu0
  %4639 = vdwg.mxu0
  %4640 = vmatpush.bf16.msra.mxu0 0
  %4641 = vmatpush.bf16.msra.mxu0 0
  %4642 = vmatpush.bf16.msra.mxu0 0
  %4643 = vmatpush.bf16.msra.mxu0 0
  %4644 = vmatpush.bf16.msra.mxu0 0
  %4645 = vmatpush.bf16.msra.mxu0 0
  %4646 = vmatpush.bf16.msra.mxu0 0
  %4647 = vmatpush.bf16.msra.mxu0 %v4534
  %4648 = vmatmul.bf16.gmra.mxu0 %v4573
  %v4649 = vpop.f32.mrf.mxu0
  %v4650 = vadd.f32 %v4637, %v4649
  %v4651 = vpop.f32.mrf.mxu0
  %4652 = vdwg.mxu0
  %4653 = vmatpush.bf16.msra.mxu0 %v4531
  %4654 = vmatpush.bf16.msra.mxu0 %v4527
  %4655 = vmatpush.bf16.msra.mxu0 %v4523
  %4656 = vmatpush.bf16.msra.mxu0 %v4519
  %4657 = vmatpush.bf16.msra.mxu0 %v4515
  %4658 = vmatpush.bf16.msra.mxu0 %v4511
  %4659 = vmatpush.bf16.msra.mxu0 %v4507
  %4660 = vmatpush.bf16.msra.mxu0 %v4503
  %4661 = vmatmul.bf16.gmra.mxu0 %v4389
  %v4662 = vpop.f32.mrf.mxu0
  %v4663 = vadd.f32 0.0, %v4662
  %v4664 = vpop.f32.mrf.mxu0
  %4665 = vdwg.mxu0
  %4666 = vmatpush.bf16.msra.mxu0 0
  %4667 = vmatpush.bf16.msra.mxu0 0
  %4668 = vmatpush.bf16.msra.mxu0 0
  %4669 = vmatpush.bf16.msra.mxu0 0
  %4670 = vmatpush.bf16.msra.mxu0 0
  %4671 = vmatpush.bf16.msra.mxu0 0
  %4672 = vmatpush.bf16.msra.mxu0 0
  %4673 = vmatpush.bf16.msra.mxu0 %v4535
  %4674 = vmatmul.bf16.gmra.mxu0 %v4573
  %v4675 = vpop.f32.mrf.mxu0
  %v4676 = vadd.f32 %v4663, %v4675
  %v4677 = vpop.f32.mrf.mxu0
  %4678 = vdwg.mxu0
  %v4679 = vadd.f32 %v4271, %v4598
  %v4680 = vadd.f32 %v4297, %v4624
  %v4681 = vadd.f32 %v4323, %v4650
  %v4682 = vadd.f32 %v4349, %v4676
  %s4683 = scalar_lea.vmem %s5, 864
  %v4684 = vld [vmem:[%s4683] sm:$0xff]
  %v4685 = vld [vmem:[%s4683 + $0x8] sm:$0xff]
  %v4686 = vld [vmem:[%s4683 + $0x10] sm:$0xff]
  %v4687 = vld [vmem:[%s4683 + $0x18] sm:$0xff]
  %v4688 = vld [vmem:[%s4683 + $0x20] sm:$0xff]
  %v4689 = vld [vmem:[%s4683 + $0x28] sm:$0xff]
  %v4690 = vld [vmem:[%s4683 + $0x30] sm:$0xff]
  %v4691 = vld [vmem:[%s4683 + $0x38] sm:$0xff]
  %v4692 = vld [vmem:[%s4683 + $0x40] sm:$0xff]
  %v4693 = vld [vmem:[%s4683 + $0x48] sm:$0xff]
  %v4694 = vld [vmem:[%s4683 + $0x50] sm:$0xff]
  %v4695 = vld [vmem:[%s4683 + $0x58] sm:$0xff]
  %v4696 = vld [vmem:[%s4683 + $0x60] sm:$0xff]
  %v4697 = vld [vmem:[%s4683 + $0x68] sm:$0xff]
  %v4698 = vld [vmem:[%s4683 + $0x70] sm:$0xff]
  %v4699 = vld [vmem:[%s4683 + $0x78] sm:$0xff]
  %v4700 = vld [vmem:[%s4683 + $0x80] sm:$0xff]
  %v4701 = vld [vmem:[%s4683 + $0x88] sm:$0xff]
  %v4702 = vld [vmem:[%s4683 + $0x90] sm:$0xff]
  %v4703 = vld [vmem:[%s4683 + $0x98] sm:$0xff]
  %v4704 = vld [vmem:[%s4683 + $0xa0] sm:$0xff]
  %v4705 = vld [vmem:[%s4683 + $0xa8] sm:$0xff]
  %v4706 = vld [vmem:[%s4683 + $0xb0] sm:$0xff]
  %v4707 = vld [vmem:[%s4683 + $0xb8] sm:$0xff]
  %v4708 = vld [vmem:[%s4683 + $0xc0] sm:$0xff]
  %v4709 = vld [vmem:[%s4683 + $0xc8] sm:$0xff]
  %v4710 = vld [vmem:[%s4683 + $0xd0] sm:$0xff]
  %v4711 = vld [vmem:[%s4683 + $0xd8] sm:$0xff]
  %v4712 = vld [vmem:[%s4683 + $0xe0] sm:$0xff]
  %v4713 = vld [vmem:[%s4683 + $0xe8] sm:$0xff]
  %v4714 = vld [vmem:[%s4683 + $0xf0] sm:$0xff]
  %v4715 = vld [vmem:[%s4683 + $0xf8] sm:$0xff]
  %v4716 = vld [vmem:[%s4683 + $0x100] sm:$0xff]
  %v4717 = vld [vmem:[%s4683 + $0x108] sm:$0xff]
  %v4718 = vld [vmem:[%s4683 + $0x110] sm:$0xff]
  %v4719 = vld [vmem:[%s4683 + $0x118] sm:$0xff]
  %v4720 = vrot.slane %v3771, 3
  %v4721 = vrot.slane %v3772, 3
  %v4759 = vunpack.c.l.b16 %v4684
  %v4760 = vunpack.c.h.b16 %v4684
  %v4761 = vunpack.c.l.b16 %v4685
  %v4762 = vunpack.c.h.b16 %v4685
  %v4763 = vunpack.c.l.b16 %v4686
  %v4764 = vunpack.c.h.b16 %v4686
  %v4765 = vunpack.c.l.b16 %v4687
  %v4766 = vunpack.c.h.b16 %v4687
  %v4767 = vunpack.c.l.b16 %v4688
  %v4768 = vunpack.c.h.b16 %v4688
  %v4769 = vunpack.c.l.b16 %v4689
  %v4770 = vunpack.c.h.b16 %v4689
  %v4771 = vunpack.c.l.b16 %v4690
  %v4772 = vunpack.c.h.b16 %v4690
  %v4773 = vunpack.c.l.b16 %v4691
  %v4774 = vunpack.c.h.b16 %v4691
  %v4775 = vunpack.c.l.b16 %v4692
  %v4776 = vunpack.c.h.b16 %v4692
  %v4777 = vunpack.c.l.b16 %v4693
  %v4778 = vunpack.c.h.b16 %v4693
  %v4779 = vunpack.c.l.b16 %v4694
  %v4780 = vunpack.c.h.b16 %v4694
  %v4781 = vunpack.c.l.b16 %v4695
  %v4782 = vunpack.c.h.b16 %v4695
  %v4783 = vunpack.c.l.b16 %v4696
  %v4784 = vunpack.c.h.b16 %v4696
  %v4785 = vunpack.c.l.b16 %v4697
  %v4786 = vunpack.c.h.b16 %v4697
  %v4787 = vunpack.c.l.b16 %v4698
  %v4788 = vunpack.c.h.b16 %v4698
  %v4789 = vunpack.c.l.b16 %v4699
  %v4790 = vunpack.c.h.b16 %v4699
  %v4791 = vunpack.c.l.b16 %v4700
  %v4792 = vunpack.c.h.b16 %v4700
  %v4793 = vunpack.c.l.b16 %v4701
  %v4794 = vunpack.c.h.b16 %v4701
  %v4795 = vunpack.c.l.b16 %v4702
  %v4796 = vunpack.c.h.b16 %v4702
  %v4797 = vunpack.c.l.b16 %v4703
  %v4798 = vunpack.c.h.b16 %v4703
  %v4799 = vunpack.c.l.b16 %v4704
  %v4800 = vunpack.c.h.b16 %v4704
  %v4801 = vunpack.c.l.b16 %v4705
  %v4802 = vunpack.c.h.b16 %v4705
  %v4803 = vunpack.c.l.b16 %v4706
  %v4804 = vunpack.c.h.b16 %v4706
  %v4805 = vunpack.c.l.b16 %v4707
  %v4806 = vunpack.c.h.b16 %v4707
  %v4807 = vunpack.c.l.b16 %v4708
  %v4808 = vunpack.c.h.b16 %v4708
  %v4809 = vunpack.c.l.b16 %v4709
  %v4810 = vunpack.c.h.b16 %v4709
  %v4811 = vunpack.c.l.b16 %v4710
  %v4812 = vunpack.c.h.b16 %v4710
  %v4813 = vunpack.c.l.b16 %v4711
  %v4814 = vunpack.c.h.b16 %v4711
  %v4815 = vunpack.c.l.b16 %v4712
  %v4816 = vunpack.c.h.b16 %v4712
  %v4817 = vunpack.c.l.b16 %v4713
  %v4818 = vunpack.c.h.b16 %v4713
  %v4819 = vunpack.c.l.b16 %v4714
  %v4820 = vunpack.c.h.b16 %v4714
  %v4821 = vunpack.c.l.b16 %v4715
  %v4822 = vunpack.c.h.b16 %v4715
  %v4823 = vunpack.c.l.b16 %v4716
  %v4824 = vunpack.c.h.b16 %v4716
  %v4825 = vunpack.c.l.b16 %v4717
  %v4826 = vunpack.c.h.b16 %v4717
  %v4827 = vunpack.c.l.b16 %v4718
  %v4828 = vunpack.c.h.b16 %v4718
  %v4829 = vunpack.c.l.b16 %v4719
  %v4830 = vunpack.c.h.b16 %v4719
  %v4831 = vpack.c.b16 %v4763, %v4759
  %v4832 = vpack.c.b16 %v4764, %v4760
  %v4833 = vpack.c.b16 %v4765, %v4761
  %v4834 = vpack.c.b16 %v4766, %v4762
  %v4835 = vpack.c.b16 %v4771, %v4767
  %v4836 = vpack.c.b16 %v4772, %v4768
  %v4837 = vpack.c.b16 %v4773, %v4769
  %v4838 = vpack.c.b16 %v4774, %v4770
  %v4839 = vpack.c.b16 %v4779, %v4775
  %v4840 = vpack.c.b16 %v4780, %v4776
  %v4841 = vpack.c.b16 %v4781, %v4777
  %v4842 = vpack.c.b16 %v4782, %v4778
  %v4843 = vpack.c.b16 %v4787, %v4783
  %v4844 = vpack.c.b16 %v4788, %v4784
  %v4845 = vpack.c.b16 %v4789, %v4785
  %v4846 = vpack.c.b16 %v4790, %v4786
  %v4847 = vpack.c.b16 %v4795, %v4791
  %v4848 = vpack.c.b16 %v4796, %v4792
  %v4849 = vpack.c.b16 %v4797, %v4793
  %v4850 = vpack.c.b16 %v4798, %v4794
  %v4851 = vpack.c.b16 %v4803, %v4799
  %v4852 = vpack.c.b16 %v4804, %v4800
  %v4853 = vpack.c.b16 %v4805, %v4801
  %v4854 = vpack.c.b16 %v4806, %v4802
  %v4855 = vpack.c.b16 %v4811, %v4807
  %v4856 = vpack.c.b16 %v4812, %v4808
  %v4857 = vpack.c.b16 %v4813, %v4809
  %v4858 = vpack.c.b16 %v4814, %v4810
  %v4859 = vpack.c.b16 %v4819, %v4815
  %v4860 = vpack.c.b16 %v4820, %v4816
  %v4861 = vpack.c.b16 %v4821, %v4817
  %v4862 = vpack.c.b16 %v4822, %v4818
  %v4863 = vpack.c.b16 %v4827, %v4823
  %v4864 = vpack.c.b16 %v4828, %v4824
  %v4865 = vpack.c.b16 %v4829, %v4825
  %v4866 = vpack.c.b16 %v4830, %v4826
  %v4904 = vsel %vm3956, %v4721, 0
  %4906 = vmatpush.bf16.msra.mxu0 %v4859
  %4907 = vmatpush.bf16.msra.mxu0 %v4855
  %4908 = vmatpush.bf16.msra.mxu0 %v4851
  %4909 = vmatpush.bf16.msra.mxu0 %v4847
  %4910 = vmatpush.bf16.msra.mxu0 %v4843
  %4911 = vmatpush.bf16.msra.mxu0 %v4839
  %4912 = vmatpush.bf16.msra.mxu0 %v4835
  %4913 = vmatpush.bf16.msra.mxu0 %v4831
  %4914 = vmatmul.bf16.gmra.mxu0 %v4720
  %v4915 = vpop.f32.mrf.mxu0
  %v4916 = vadd.f32 0.0, %v4915
  %v4917 = vpop.f32.mrf.mxu0
  %4918 = vdwg.mxu0
  %4919 = vmatpush.bf16.msra.mxu0 0
  %4920 = vmatpush.bf16.msra.mxu0 0
  %4921 = vmatpush.bf16.msra.mxu0 0
  %4922 = vmatpush.bf16.msra.mxu0 0
  %4923 = vmatpush.bf16.msra.mxu0 0
  %4924 = vmatpush.bf16.msra.mxu0 0
  %4925 = vmatpush.bf16.msra.mxu0 0
  %4926 = vmatpush.bf16.msra.mxu0 %v4863
  %4927 = vmatmul.bf16.gmra.mxu0 %v4904
  %v4928 = vpop.f32.mrf.mxu0
  %v4929 = vadd.f32 %v4916, %v4928
  %v4930 = vpop.f32.mrf.mxu0
  %4931 = vdwg.mxu0
  %4932 = vmatpush.bf16.msra.mxu0 %v4860
  %4933 = vmatpush.bf16.msra.mxu0 %v4856
  %4934 = vmatpush.bf16.msra.mxu0 %v4852
  %4935 = vmatpush.bf16.msra.mxu0 %v4848
  %4936 = vmatpush.bf16.msra.mxu0 %v4844
  %4937 = vmatpush.bf16.msra.mxu0 %v4840
  %4938 = vmatpush.bf16.msra.mxu0 %v4836
  %4939 = vmatpush.bf16.msra.mxu0 %v4832
  %4940 = vmatmul.bf16.gmra.mxu0 %v4720
  %v4941 = vpop.f32.mrf.mxu0
  %v4942 = vadd.f32 0.0, %v4941
  %v4943 = vpop.f32.mrf.mxu0
  %4944 = vdwg.mxu0
  %4945 = vmatpush.bf16.msra.mxu0 0
  %4946 = vmatpush.bf16.msra.mxu0 0
  %4947 = vmatpush.bf16.msra.mxu0 0
  %4948 = vmatpush.bf16.msra.mxu0 0
  %4949 = vmatpush.bf16.msra.mxu0 0
  %4950 = vmatpush.bf16.msra.mxu0 0
  %4951 = vmatpush.bf16.msra.mxu0 0
  %4952 = vmatpush.bf16.msra.mxu0 %v4864
  %4953 = vmatmul.bf16.gmra.mxu0 %v4904
  %v4954 = vpop.f32.mrf.mxu0
  %v4955 = vadd.f32 %v4942, %v4954
  %v4956 = vpop.f32.mrf.mxu0
  %4957 = vdwg.mxu0
  %4958 = vmatpush.bf16.msra.mxu0 %v4861
  %4959 = vmatpush.bf16.msra.mxu0 %v4857
  %4960 = vmatpush.bf16.msra.mxu0 %v4853
  %4961 = vmatpush.bf16.msra.mxu0 %v4849
  %4962 = vmatpush.bf16.msra.mxu0 %v4845
  %4963 = vmatpush.bf16.msra.mxu0 %v4841
  %4964 = vmatpush.bf16.msra.mxu0 %v4837
  %4965 = vmatpush.bf16.msra.mxu0 %v4833
  %4966 = vmatmul.bf16.gmra.mxu0 %v4720
  %v4967 = vpop.f32.mrf.mxu0
  %v4968 = vadd.f32 0.0, %v4967
  %v4969 = vpop.f32.mrf.mxu0
  %4970 = vdwg.mxu0
  %4971 = vmatpush.bf16.msra.mxu0 0
  %4972 = vmatpush.bf16.msra.mxu0 0
  %4973 = vmatpush.bf16.msra.mxu0 0
  %4974 = vmatpush.bf16.msra.mxu0 0
  %4975 = vmatpush.bf16.msra.mxu0 0
  %4976 = vmatpush.bf16.msra.mxu0 0
  %4977 = vmatpush.bf16.msra.mxu0 0
  %4978 = vmatpush.bf16.msra.mxu0 %v4865
  %4979 = vmatmul.bf16.gmra.mxu0 %v4904
  %v4980 = vpop.f32.mrf.mxu0
  %v4981 = vadd.f32 %v4968, %v4980
  %v4982 = vpop.f32.mrf.mxu0
  %4983 = vdwg.mxu0
  %4984 = vmatpush.bf16.msra.mxu0 %v4862
  %4985 = vmatpush.bf16.msra.mxu0 %v4858
  %4986 = vmatpush.bf16.msra.mxu0 %v4854
  %4987 = vmatpush.bf16.msra.mxu0 %v4850
  %4988 = vmatpush.bf16.msra.mxu0 %v4846
  %4989 = vmatpush.bf16.msra.mxu0 %v4842
  %4990 = vmatpush.bf16.msra.mxu0 %v4838
  %4991 = vmatpush.bf16.msra.mxu0 %v4834
  %4992 = vmatmul.bf16.gmra.mxu0 %v4720
  %v4993 = vpop.f32.mrf.mxu0
  %v4994 = vadd.f32 0.0, %v4993
  %v4995 = vpop.f32.mrf.mxu0
  %4996 = vdwg.mxu0
  %4997 = vmatpush.bf16.msra.mxu0 0
  %4998 = vmatpush.bf16.msra.mxu0 0
  %4999 = vmatpush.bf16.msra.mxu0 0
  %5000 = vmatpush.bf16.msra.mxu0 0
  %5001 = vmatpush.bf16.msra.mxu0 0
  %5002 = vmatpush.bf16.msra.mxu0 0
  %5003 = vmatpush.bf16.msra.mxu0 0
  %5004 = vmatpush.bf16.msra.mxu0 %v4866
  %5005 = vmatmul.bf16.gmra.mxu0 %v4904
  %v5006 = vpop.f32.mrf.mxu0
  %v5007 = vadd.f32 %v4994, %v5006
  %v5008 = vpop.f32.mrf.mxu0
  %5009 = vdwg.mxu0
  %v5010 = vadd.f32 %v4679, %v4929
  %v5011 = vadd.f32 %v4680, %v4955
  %v5012 = vadd.f32 %v4681, %v4981
  %v5013 = vadd.f32 %v4682, %v5007
  %s5014 = scalar_lea.vmem %s5, 1152
  %v5015 = vld [vmem:[%s5014] sm:$0xff]
  %v5016 = vld [vmem:[%s5014 + $0x8] sm:$0xff]
  %v5017 = vld [vmem:[%s5014 + $0x10] sm:$0xff]
  %v5018 = vld [vmem:[%s5014 + $0x18] sm:$0xff]
  %v5019 = vld [vmem:[%s5014 + $0x20] sm:$0xff]
  %v5020 = vld [vmem:[%s5014 + $0x28] sm:$0xff]
  %v5021 = vld [vmem:[%s5014 + $0x30] sm:$0xff]
  %v5022 = vld [vmem:[%s5014 + $0x38] sm:$0xff]
  %v5023 = vld [vmem:[%s5014 + $0x40] sm:$0xff]
  %v5024 = vld [vmem:[%s5014 + $0x48] sm:$0xff]
  %v5025 = vld [vmem:[%s5014 + $0x50] sm:$0xff]
  %v5026 = vld [vmem:[%s5014 + $0x58] sm:$0xff]
  %v5027 = vld [vmem:[%s5014 + $0x60] sm:$0xff]
  %v5028 = vld [vmem:[%s5014 + $0x68] sm:$0xff]
  %v5029 = vld [vmem:[%s5014 + $0x70] sm:$0xff]
  %v5030 = vld [vmem:[%s5014 + $0x78] sm:$0xff]
  %v5031 = vld [vmem:[%s5014 + $0x80] sm:$0xff]
  %v5032 = vld [vmem:[%s5014 + $0x88] sm:$0xff]
  %v5033 = vld [vmem:[%s5014 + $0x90] sm:$0xff]
  %v5034 = vld [vmem:[%s5014 + $0x98] sm:$0xff]
  %v5035 = vld [vmem:[%s5014 + $0xa0] sm:$0xff]
  %v5036 = vld [vmem:[%s5014 + $0xa8] sm:$0xff]
  %v5037 = vld [vmem:[%s5014 + $0xb0] sm:$0xff]
  %v5038 = vld [vmem:[%s5014 + $0xb8] sm:$0xff]
  %v5039 = vld [vmem:[%s5014 + $0xc0] sm:$0xff]
  %v5040 = vld [vmem:[%s5014 + $0xc8] sm:$0xff]
  %v5041 = vld [vmem:[%s5014 + $0xd0] sm:$0xff]
  %v5042 = vld [vmem:[%s5014 + $0xd8] sm:$0xff]
  %v5043 = vld [vmem:[%s5014 + $0xe0] sm:$0xff]
  %v5044 = vld [vmem:[%s5014 + $0xe8] sm:$0xff]
  %v5045 = vld [vmem:[%s5014 + $0xf0] sm:$0xff]
  %v5046 = vld [vmem:[%s5014 + $0xf8] sm:$0xff]
  %v5047 = vld [vmem:[%s5014 + $0x100] sm:$0xff]
  %v5048 = vld [vmem:[%s5014 + $0x108] sm:$0xff]
  %v5049 = vld [vmem:[%s5014 + $0x110] sm:$0xff]
  %v5050 = vld [vmem:[%s5014 + $0x118] sm:$0xff]
  %v5052 = vunpack.c.l.b16 %v3694
  %v5053 = vunpack.c.h.b16 %v3694
  %v5054 = vpack.c.b16 %v5052, %v5052
  %v5055 = vpack.c.b16 %v5053, %v5053
  %v5093 = vunpack.c.l.b16 %v5015
  %v5094 = vunpack.c.h.b16 %v5015
  %v5095 = vunpack.c.l.b16 %v5016
  %v5096 = vunpack.c.h.b16 %v5016
  %v5097 = vunpack.c.l.b16 %v5017
  %v5098 = vunpack.c.h.b16 %v5017
  %v5099 = vunpack.c.l.b16 %v5018
  %v5100 = vunpack.c.h.b16 %v5018
  %v5101 = vunpack.c.l.b16 %v5019
  %v5102 = vunpack.c.h.b16 %v5019
  %v5103 = vunpack.c.l.b16 %v5020
  %v5104 = vunpack.c.h.b16 %v5020
  %v5105 = vunpack.c.l.b16 %v5021
  %v5106 = vunpack.c.h.b16 %v5021
  %v5107 = vunpack.c.l.b16 %v5022
  %v5108 = vunpack.c.h.b16 %v5022
  %v5109 = vunpack.c.l.b16 %v5023
  %v5110 = vunpack.c.h.b16 %v5023
  %v5111 = vunpack.c.l.b16 %v5024
  %v5112 = vunpack.c.h.b16 %v5024
  %v5113 = vunpack.c.l.b16 %v5025
  %v5114 = vunpack.c.h.b16 %v5025
  %v5115 = vunpack.c.l.b16 %v5026
  %v5116 = vunpack.c.h.b16 %v5026
  %v5117 = vunpack.c.l.b16 %v5027
  %v5118 = vunpack.c.h.b16 %v5027
  %v5119 = vunpack.c.l.b16 %v5028
  %v5120 = vunpack.c.h.b16 %v5028
  %v5121 = vunpack.c.l.b16 %v5029
  %v5122 = vunpack.c.h.b16 %v5029
  %v5123 = vunpack.c.l.b16 %v5030
  %v5124 = vunpack.c.h.b16 %v5030
  %v5125 = vunpack.c.l.b16 %v5031
  %v5126 = vunpack.c.h.b16 %v5031
  %v5127 = vunpack.c.l.b16 %v5032
  %v5128 = vunpack.c.h.b16 %v5032
  %v5129 = vunpack.c.l.b16 %v5033
  %v5130 = vunpack.c.h.b16 %v5033
  %v5131 = vunpack.c.l.b16 %v5034
  %v5132 = vunpack.c.h.b16 %v5034
  %v5133 = vunpack.c.l.b16 %v5035
  %v5134 = vunpack.c.h.b16 %v5035
  %v5135 = vunpack.c.l.b16 %v5036
  %v5136 = vunpack.c.h.b16 %v5036
  %v5137 = vunpack.c.l.b16 %v5037
  %v5138 = vunpack.c.h.b16 %v5037
  %v5139 = vunpack.c.l.b16 %v5038
  %v5140 = vunpack.c.h.b16 %v5038
  %v5141 = vunpack.c.l.b16 %v5039
  %v5142 = vunpack.c.h.b16 %v5039
  %v5143 = vunpack.c.l.b16 %v5040
  %v5144 = vunpack.c.h.b16 %v5040
  %v5145 = vunpack.c.l.b16 %v5041
  %v5146 = vunpack.c.h.b16 %v5041
  %v5147 = vunpack.c.l.b16 %v5042
  %v5148 = vunpack.c.h.b16 %v5042
  %v5149 = vunpack.c.l.b16 %v5043
  %v5150 = vunpack.c.h.b16 %v5043
  %v5151 = vunpack.c.l.b16 %v5044
  %v5152 = vunpack.c.h.b16 %v5044
  %v5153 = vunpack.c.l.b16 %v5045
  %v5154 = vunpack.c.h.b16 %v5045
  %v5155 = vunpack.c.l.b16 %v5046
  %v5156 = vunpack.c.h.b16 %v5046
  %v5157 = vunpack.c.l.b16 %v5047
  %v5158 = vunpack.c.h.b16 %v5047
  %v5159 = vunpack.c.l.b16 %v5048
  %v5160 = vunpack.c.h.b16 %v5048
  %v5161 = vunpack.c.l.b16 %v5049
  %v5162 = vunpack.c.h.b16 %v5049
  %v5163 = vunpack.c.l.b16 %v5050
  %v5164 = vunpack.c.h.b16 %v5050
  %v5165 = vpack.c.b16 %v5097, %v5093
  %v5166 = vpack.c.b16 %v5098, %v5094
  %v5167 = vpack.c.b16 %v5099, %v5095
  %v5168 = vpack.c.b16 %v5100, %v5096
  %v5169 = vpack.c.b16 %v5105, %v5101
  %v5170 = vpack.c.b16 %v5106, %v5102
  %v5171 = vpack.c.b16 %v5107, %v5103
  %v5172 = vpack.c.b16 %v5108, %v5104
  %v5173 = vpack.c.b16 %v5113, %v5109
  %v5174 = vpack.c.b16 %v5114, %v5110
  %v5175 = vpack.c.b16 %v5115, %v5111
  %v5176 = vpack.c.b16 %v5116, %v5112
  %v5177 = vpack.c.b16 %v5121, %v5117
  %v5178 = vpack.c.b16 %v5122, %v5118
  %v5179 = vpack.c.b16 %v5123, %v5119
  %v5180 = vpack.c.b16 %v5124, %v5120
  %v5181 = vpack.c.b16 %v5129, %v5125
  %v5182 = vpack.c.b16 %v5130, %v5126
  %v5183 = vpack.c.b16 %v5131, %v5127
  %v5184 = vpack.c.b16 %v5132, %v5128
  %v5185 = vpack.c.b16 %v5137, %v5133
  %v5186 = vpack.c.b16 %v5138, %v5134
  %v5187 = vpack.c.b16 %v5139, %v5135
  %v5188 = vpack.c.b16 %v5140, %v5136
  %v5189 = vpack.c.b16 %v5145, %v5141
  %v5190 = vpack.c.b16 %v5146, %v5142
  %v5191 = vpack.c.b16 %v5147, %v5143
  %v5192 = vpack.c.b16 %v5148, %v5144
  %v5193 = vpack.c.b16 %v5153, %v5149
  %v5194 = vpack.c.b16 %v5154, %v5150
  %v5195 = vpack.c.b16 %v5155, %v5151
  %v5196 = vpack.c.b16 %v5156, %v5152
  %v5197 = vpack.c.b16 %v5161, %v5157
  %v5198 = vpack.c.b16 %v5162, %v5158
  %v5199 = vpack.c.b16 %v5163, %v5159
  %v5200 = vpack.c.b16 %v5164, %v5160
  %v5238 = vsel %vm3956, %v5055, 0
  %5240 = vmatpush.bf16.msra.mxu0 %v5193
  %5241 = vmatpush.bf16.msra.mxu0 %v5189
  %5242 = vmatpush.bf16.msra.mxu0 %v5185
  %5243 = vmatpush.bf16.msra.mxu0 %v5181
  %5244 = vmatpush.bf16.msra.mxu0 %v5177
  %5245 = vmatpush.bf16.msra.mxu0 %v5173
  %5246 = vmatpush.bf16.msra.mxu0 %v5169
  %5247 = vmatpush.bf16.msra.mxu0 %v5165
  %5248 = vmatmul.bf16.gmra.mxu0 %v5054
  %v5249 = vpop.f32.mrf.mxu0
  %v5250 = vadd.f32 0.0, %v5249
  %v5251 = vpop.f32.mrf.mxu0
  %5252 = vdwg.mxu0
  %5253 = vmatpush.bf16.msra.mxu0 0
  %5254 = vmatpush.bf16.msra.mxu0 0
  %5255 = vmatpush.bf16.msra.mxu0 0
  %5256 = vmatpush.bf16.msra.mxu0 0
  %5257 = vmatpush.bf16.msra.mxu0 0
  %5258 = vmatpush.bf16.msra.mxu0 0
  %5259 = vmatpush.bf16.msra.mxu0 0
  %5260 = vmatpush.bf16.msra.mxu0 %v5197
  %5261 = vmatmul.bf16.gmra.mxu0 %v5238
  %v5262 = vpop.f32.mrf.mxu0
  %v5263 = vadd.f32 %v5250, %v5262
  %v5264 = vpop.f32.mrf.mxu0
  %5265 = vdwg.mxu0
  %5266 = vmatpush.bf16.msra.mxu0 %v5194
  %5267 = vmatpush.bf16.msra.mxu0 %v5190
  %5268 = vmatpush.bf16.msra.mxu0 %v5186
  %5269 = vmatpush.bf16.msra.mxu0 %v5182
  %5270 = vmatpush.bf16.msra.mxu0 %v5178
  %5271 = vmatpush.bf16.msra.mxu0 %v5174
  %5272 = vmatpush.bf16.msra.mxu0 %v5170
  %5273 = vmatpush.bf16.msra.mxu0 %v5166
  %5274 = vmatmul.bf16.gmra.mxu0 %v5054
  %v5275 = vpop.f32.mrf.mxu0
  %v5276 = vadd.f32 0.0, %v5275
  %v5277 = vpop.f32.mrf.mxu0
  %5278 = vdwg.mxu0
  %5279 = vmatpush.bf16.msra.mxu0 0
  %5280 = vmatpush.bf16.msra.mxu0 0
  %5281 = vmatpush.bf16.msra.mxu0 0
  %5282 = vmatpush.bf16.msra.mxu0 0
  %5283 = vmatpush.bf16.msra.mxu0 0
  %5284 = vmatpush.bf16.msra.mxu0 0
  %5285 = vmatpush.bf16.msra.mxu0 0
  %5286 = vmatpush.bf16.msra.mxu0 %v5198
  %5287 = vmatmul.bf16.gmra.mxu0 %v5238
  %v5288 = vpop.f32.mrf.mxu0
  %v5289 = vadd.f32 %v5276, %v5288
  %v5290 = vpop.f32.mrf.mxu0
  %5291 = vdwg.mxu0
  %5292 = vmatpush.bf16.msra.mxu0 %v5195
  %5293 = vmatpush.bf16.msra.mxu0 %v5191
  %5294 = vmatpush.bf16.msra.mxu0 %v5187
  %5295 = vmatpush.bf16.msra.mxu0 %v5183
  %5296 = vmatpush.bf16.msra.mxu0 %v5179
  %5297 = vmatpush.bf16.msra.mxu0 %v5175
  %5298 = vmatpush.bf16.msra.mxu0 %v5171
  %5299 = vmatpush.bf16.msra.mxu0 %v5167
  %5300 = vmatmul.bf16.gmra.mxu0 %v5054
  %v5301 = vpop.f32.mrf.mxu0
  %v5302 = vadd.f32 0.0, %v5301
  %v5303 = vpop.f32.mrf.mxu0
  %5304 = vdwg.mxu0
  %5305 = vmatpush.bf16.msra.mxu0 0
  %5306 = vmatpush.bf16.msra.mxu0 0
  %5307 = vmatpush.bf16.msra.mxu0 0
  %5308 = vmatpush.bf16.msra.mxu0 0
  %5309 = vmatpush.bf16.msra.mxu0 0
  %5310 = vmatpush.bf16.msra.mxu0 0
  %5311 = vmatpush.bf16.msra.mxu0 0
  %5312 = vmatpush.bf16.msra.mxu0 %v5199
  %5313 = vmatmul.bf16.gmra.mxu0 %v5238
  %v5314 = vpop.f32.mrf.mxu0
  %v5315 = vadd.f32 %v5302, %v5314
  %v5316 = vpop.f32.mrf.mxu0
  %5317 = vdwg.mxu0
  %5318 = vmatpush.bf16.msra.mxu0 %v5196
  %5319 = vmatpush.bf16.msra.mxu0 %v5192
  %5320 = vmatpush.bf16.msra.mxu0 %v5188
  %5321 = vmatpush.bf16.msra.mxu0 %v5184
  %5322 = vmatpush.bf16.msra.mxu0 %v5180
  %5323 = vmatpush.bf16.msra.mxu0 %v5176
  %5324 = vmatpush.bf16.msra.mxu0 %v5172
  %5325 = vmatpush.bf16.msra.mxu0 %v5168
  %5326 = vmatmul.bf16.gmra.mxu0 %v5054
  %v5327 = vpop.f32.mrf.mxu0
  %v5328 = vadd.f32 0.0, %v5327
  %v5329 = vpop.f32.mrf.mxu0
  %5330 = vdwg.mxu0
  %5331 = vmatpush.bf16.msra.mxu0 0
  %5332 = vmatpush.bf16.msra.mxu0 0
  %5333 = vmatpush.bf16.msra.mxu0 0
  %5334 = vmatpush.bf16.msra.mxu0 0
  %5335 = vmatpush.bf16.msra.mxu0 0
  %5336 = vmatpush.bf16.msra.mxu0 0
  %5337 = vmatpush.bf16.msra.mxu0 0
  %5338 = vmatpush.bf16.msra.mxu0 %v5200
  %5339 = vmatmul.bf16.gmra.mxu0 %v5238
  %v5340 = vpop.f32.mrf.mxu0
  %v5341 = vadd.f32 %v5328, %v5340
  %v5342 = vpop.f32.mrf.mxu0
  %5343 = vdwg.mxu0
  %v5344 = vadd.f32 %v5010, %v5263
  %v5345 = vadd.f32 %v5011, %v5289
  %v5346 = vadd.f32 %v5012, %v5315
  %v5347 = vadd.f32 %v5013, %v5341
  %s5348 = scalar_lea.vmem %s5, 1440
  %v5349 = vld [vmem:[%s5348] sm:$0xff]
  %v5350 = vld [vmem:[%s5348 + $0x8] sm:$0xff]
  %v5351 = vld [vmem:[%s5348 + $0x10] sm:$0xff]
  %v5352 = vld [vmem:[%s5348 + $0x18] sm:$0xff]
  %v5353 = vld [vmem:[%s5348 + $0x20] sm:$0xff]
  %v5354 = vld [vmem:[%s5348 + $0x28] sm:$0xff]
  %v5355 = vld [vmem:[%s5348 + $0x30] sm:$0xff]
  %v5356 = vld [vmem:[%s5348 + $0x38] sm:$0xff]
  %v5357 = vld [vmem:[%s5348 + $0x40] sm:$0xff]
  %v5358 = vld [vmem:[%s5348 + $0x48] sm:$0xff]
  %v5359 = vld [vmem:[%s5348 + $0x50] sm:$0xff]
  %v5360 = vld [vmem:[%s5348 + $0x58] sm:$0xff]
  %v5361 = vld [vmem:[%s5348 + $0x60] sm:$0xff]
  %v5362 = vld [vmem:[%s5348 + $0x68] sm:$0xff]
  %v5363 = vld [vmem:[%s5348 + $0x70] sm:$0xff]
  %v5364 = vld [vmem:[%s5348 + $0x78] sm:$0xff]
  %v5365 = vld [vmem:[%s5348 + $0x80] sm:$0xff]
  %v5366 = vld [vmem:[%s5348 + $0x88] sm:$0xff]
  %v5367 = vld [vmem:[%s5348 + $0x90] sm:$0xff]
  %v5368 = vld [vmem:[%s5348 + $0x98] sm:$0xff]
  %v5369 = vld [vmem:[%s5348 + $0xa0] sm:$0xff]
  %v5370 = vld [vmem:[%s5348 + $0xa8] sm:$0xff]
  %v5371 = vld [vmem:[%s5348 + $0xb0] sm:$0xff]
  %v5372 = vld [vmem:[%s5348 + $0xb8] sm:$0xff]
  %v5373 = vld [vmem:[%s5348 + $0xc0] sm:$0xff]
  %v5374 = vld [vmem:[%s5348 + $0xc8] sm:$0xff]
  %v5375 = vld [vmem:[%s5348 + $0xd0] sm:$0xff]
  %v5376 = vld [vmem:[%s5348 + $0xd8] sm:$0xff]
  %v5377 = vld [vmem:[%s5348 + $0xe0] sm:$0xff]
  %v5378 = vld [vmem:[%s5348 + $0xe8] sm:$0xff]
  %v5379 = vld [vmem:[%s5348 + $0xf0] sm:$0xff]
  %v5380 = vld [vmem:[%s5348 + $0xf8] sm:$0xff]
  %v5381 = vld [vmem:[%s5348 + $0x100] sm:$0xff]
  %v5382 = vld [vmem:[%s5348 + $0x108] sm:$0xff]
  %v5383 = vld [vmem:[%s5348 + $0x110] sm:$0xff]
  %v5384 = vld [vmem:[%s5348 + $0x118] sm:$0xff]
  %v5385 = vrot.slane %v5054, 1
  %v5386 = vrot.slane %v5055, 1
  %v5424 = vunpack.c.l.b16 %v5349
  %v5425 = vunpack.c.h.b16 %v5349
  %v5426 = vunpack.c.l.b16 %v5350
  %v5427 = vunpack.c.h.b16 %v5350
  %v5428 = vunpack.c.l.b16 %v5351
  %v5429 = vunpack.c.h.b16 %v5351
  %v5430 = vunpack.c.l.b16 %v5352
  %v5431 = vunpack.c.h.b16 %v5352
  %v5432 = vunpack.c.l.b16 %v5353
  %v5433 = vunpack.c.h.b16 %v5353
  %v5434 = vunpack.c.l.b16 %v5354
  %v5435 = vunpack.c.h.b16 %v5354
  %v5436 = vunpack.c.l.b16 %v5355
  %v5437 = vunpack.c.h.b16 %v5355
  %v5438 = vunpack.c.l.b16 %v5356
  %v5439 = vunpack.c.h.b16 %v5356
  %v5440 = vunpack.c.l.b16 %v5357
  %v5441 = vunpack.c.h.b16 %v5357
  %v5442 = vunpack.c.l.b16 %v5358
  %v5443 = vunpack.c.h.b16 %v5358
  %v5444 = vunpack.c.l.b16 %v5359
  %v5445 = vunpack.c.h.b16 %v5359
  %v5446 = vunpack.c.l.b16 %v5360
  %v5447 = vunpack.c.h.b16 %v5360
  %v5448 = vunpack.c.l.b16 %v5361
  %v5449 = vunpack.c.h.b16 %v5361
  %v5450 = vunpack.c.l.b16 %v5362
  %v5451 = vunpack.c.h.b16 %v5362
  %v5452 = vunpack.c.l.b16 %v5363
  %v5453 = vunpack.c.h.b16 %v5363
  %v5454 = vunpack.c.l.b16 %v5364
  %v5455 = vunpack.c.h.b16 %v5364
  %v5456 = vunpack.c.l.b16 %v5365
  %v5457 = vunpack.c.h.b16 %v5365
  %v5458 = vunpack.c.l.b16 %v5366
  %v5459 = vunpack.c.h.b16 %v5366
  %v5460 = vunpack.c.l.b16 %v5367
  %v5461 = vunpack.c.h.b16 %v5367
  %v5462 = vunpack.c.l.b16 %v5368
  %v5463 = vunpack.c.h.b16 %v5368
  %v5464 = vunpack.c.l.b16 %v5369
  %v5465 = vunpack.c.h.b16 %v5369
  %v5466 = vunpack.c.l.b16 %v5370
  %v5467 = vunpack.c.h.b16 %v5370
  %v5468 = vunpack.c.l.b16 %v5371
  %v5469 = vunpack.c.h.b16 %v5371
  %v5470 = vunpack.c.l.b16 %v5372
  %v5471 = vunpack.c.h.b16 %v5372
  %v5472 = vunpack.c.l.b16 %v5373
  %v5473 = vunpack.c.h.b16 %v5373
  %v5474 = vunpack.c.l.b16 %v5374
  %v5475 = vunpack.c.h.b16 %v5374
  %v5476 = vunpack.c.l.b16 %v5375
  %v5477 = vunpack.c.h.b16 %v5375
  %v5478 = vunpack.c.l.b16 %v5376
  %v5479 = vunpack.c.h.b16 %v5376
  %v5480 = vunpack.c.l.b16 %v5377
  %v5481 = vunpack.c.h.b16 %v5377
  %v5482 = vunpack.c.l.b16 %v5378
  %v5483 = vunpack.c.h.b16 %v5378
  %v5484 = vunpack.c.l.b16 %v5379
  %v5485 = vunpack.c.h.b16 %v5379
  %v5486 = vunpack.c.l.b16 %v5380
  %v5487 = vunpack.c.h.b16 %v5380
  %v5488 = vunpack.c.l.b16 %v5381
  %v5489 = vunpack.c.h.b16 %v5381
  %v5490 = vunpack.c.l.b16 %v5382
  %v5491 = vunpack.c.h.b16 %v5382
  %v5492 = vunpack.c.l.b16 %v5383
  %v5493 = vunpack.c.h.b16 %v5383
  %v5494 = vunpack.c.l.b16 %v5384
  %v5495 = vunpack.c.h.b16 %v5384
  %v5496 = vpack.c.b16 %v5428, %v5424
  %v5497 = vpack.c.b16 %v5429, %v5425
  %v5498 = vpack.c.b16 %v5430, %v5426
  %v5499 = vpack.c.b16 %v5431, %v5427
  %v5500 = vpack.c.b16 %v5436, %v5432
  %v5501 = vpack.c.b16 %v5437, %v5433
  %v5502 = vpack.c.b16 %v5438, %v5434
  %v5503 = vpack.c.b16 %v5439, %v5435
  %v5504 = vpack.c.b16 %v5444, %v5440
  %v5505 = vpack.c.b16 %v5445, %v5441
  %v5506 = vpack.c.b16 %v5446, %v5442
  %v5507 = vpack.c.b16 %v5447, %v5443
  %v5508 = vpack.c.b16 %v5452, %v5448
  %v5509 = vpack.c.b16 %v5453, %v5449
  %v5510 = vpack.c.b16 %v5454, %v5450
  %v5511 = vpack.c.b16 %v5455, %v5451
  %v5512 = vpack.c.b16 %v5460, %v5456
  %v5513 = vpack.c.b16 %v5461, %v5457
  %v5514 = vpack.c.b16 %v5462, %v5458
  %v5515 = vpack.c.b16 %v5463, %v5459
  %v5516 = vpack.c.b16 %v5468, %v5464
  %v5517 = vpack.c.b16 %v5469, %v5465
  %v5518 = vpack.c.b16 %v5470, %v5466
  %v5519 = vpack.c.b16 %v5471, %v5467
  %v5520 = vpack.c.b16 %v5476, %v5472
  %v5521 = vpack.c.b16 %v5477, %v5473
  %v5522 = vpack.c.b16 %v5478, %v5474
  %v5523 = vpack.c.b16 %v5479, %v5475
  %v5524 = vpack.c.b16 %v5484, %v5480
  %v5525 = vpack.c.b16 %v5485, %v5481
  %v5526 = vpack.c.b16 %v5486, %v5482
  %v5527 = vpack.c.b16 %v5487, %v5483
  %v5528 = vpack.c.b16 %v5492, %v5488
  %v5529 = vpack.c.b16 %v5493, %v5489
  %v5530 = vpack.c.b16 %v5494, %v5490
  %v5531 = vpack.c.b16 %v5495, %v5491
  %v5569 = vsel %vm3956, %v5386, 0
  %5571 = vmatpush.bf16.msra.mxu0 %v5524
  %5572 = vmatpush.bf16.msra.mxu0 %v5520
  %5573 = vmatpush.bf16.msra.mxu0 %v5516
  %5574 = vmatpush.bf16.msra.mxu0 %v5512
  %5575 = vmatpush.bf16.msra.mxu0 %v5508
  %5576 = vmatpush.bf16.msra.mxu0 %v5504
  %5577 = vmatpush.bf16.msra.mxu0 %v5500
  %5578 = vmatpush.bf16.msra.mxu0 %v5496
  %5579 = vmatmul.bf16.gmra.mxu0 %v5385
  %v5580 = vpop.f32.mrf.mxu0
  %v5581 = vadd.f32 0.0, %v5580
  %v5582 = vpop.f32.mrf.mxu0
  %5583 = vdwg.mxu0
  %5584 = vmatpush.bf16.msra.mxu0 0
  %5585 = vmatpush.bf16.msra.mxu0 0
  %5586 = vmatpush.bf16.msra.mxu0 0
  %5587 = vmatpush.bf16.msra.mxu0 0
  %5588 = vmatpush.bf16.msra.mxu0 0
  %5589 = vmatpush.bf16.msra.mxu0 0
  %5590 = vmatpush.bf16.msra.mxu0 0
  %5591 = vmatpush.bf16.msra.mxu0 %v5528
  %5592 = vmatmul.bf16.gmra.mxu0 %v5569
  %v5593 = vpop.f32.mrf.mxu0
  %v5594 = vadd.f32 %v5581, %v5593
  %v5595 = vpop.f32.mrf.mxu0
  %5596 = vdwg.mxu0
  %5597 = vmatpush.bf16.msra.mxu0 %v5525
  %5598 = vmatpush.bf16.msra.mxu0 %v5521
  %5599 = vmatpush.bf16.msra.mxu0 %v5517
  %5600 = vmatpush.bf16.msra.mxu0 %v5513
  %5601 = vmatpush.bf16.msra.mxu0 %v5509
  %5602 = vmatpush.bf16.msra.mxu0 %v5505
  %5603 = vmatpush.bf16.msra.mxu0 %v5501
  %5604 = vmatpush.bf16.msra.mxu0 %v5497
  %5605 = vmatmul.bf16.gmra.mxu0 %v5385
  %v5606 = vpop.f32.mrf.mxu0
  %v5607 = vadd.f32 0.0, %v5606
  %v5608 = vpop.f32.mrf.mxu0
  %5609 = vdwg.mxu0
  %5610 = vmatpush.bf16.msra.mxu0 0
  %5611 = vmatpush.bf16.msra.mxu0 0
  %5612 = vmatpush.bf16.msra.mxu0 0
  %5613 = vmatpush.bf16.msra.mxu0 0
  %5614 = vmatpush.bf16.msra.mxu0 0
  %5615 = vmatpush.bf16.msra.mxu0 0
  %5616 = vmatpush.bf16.msra.mxu0 0
  %5617 = vmatpush.bf16.msra.mxu0 %v5529
  %5618 = vmatmul.bf16.gmra.mxu0 %v5569
  %v5619 = vpop.f32.mrf.mxu0
  %v5620 = vadd.f32 %v5607, %v5619
  %v5621 = vpop.f32.mrf.mxu0
  %5622 = vdwg.mxu0
  %5623 = vmatpush.bf16.msra.mxu0 %v5526
  %5624 = vmatpush.bf16.msra.mxu0 %v5522
  %5625 = vmatpush.bf16.msra.mxu0 %v5518
  %5626 = vmatpush.bf16.msra.mxu0 %v5514
  %5627 = vmatpush.bf16.msra.mxu0 %v5510
  %5628 = vmatpush.bf16.msra.mxu0 %v5506
  %5629 = vmatpush.bf16.msra.mxu0 %v5502
  %5630 = vmatpush.bf16.msra.mxu0 %v5498
  %5631 = vmatmul.bf16.gmra.mxu0 %v5385
  %v5632 = vpop.f32.mrf.mxu0
  %v5633 = vadd.f32 0.0, %v5632
  %v5634 = vpop.f32.mrf.mxu0
  %5635 = vdwg.mxu0
  %5636 = vmatpush.bf16.msra.mxu0 0
  %5637 = vmatpush.bf16.msra.mxu0 0
  %5638 = vmatpush.bf16.msra.mxu0 0
  %5639 = vmatpush.bf16.msra.mxu0 0
  %5640 = vmatpush.bf16.msra.mxu0 0
  %5641 = vmatpush.bf16.msra.mxu0 0
  %5642 = vmatpush.bf16.msra.mxu0 0
  %5643 = vmatpush.bf16.msra.mxu0 %v5530
  %5644 = vmatmul.bf16.gmra.mxu0 %v5569
  %v5645 = vpop.f32.mrf.mxu0
  %v5646 = vadd.f32 %v5633, %v5645
  %v5647 = vpop.f32.mrf.mxu0
  %5648 = vdwg.mxu0
  %5649 = vmatpush.bf16.msra.mxu0 %v5527
  %5650 = vmatpush.bf16.msra.mxu0 %v5523
  %5651 = vmatpush.bf16.msra.mxu0 %v5519
  %5652 = vmatpush.bf16.msra.mxu0 %v5515
  %5653 = vmatpush.bf16.msra.mxu0 %v5511
  %5654 = vmatpush.bf16.msra.mxu0 %v5507
  %5655 = vmatpush.bf16.msra.mxu0 %v5503
  %5656 = vmatpush.bf16.msra.mxu0 %v5499
  %5657 = vmatmul.bf16.gmra.mxu0 %v5385
  %v5658 = vpop.f32.mrf.mxu0
  %v5659 = vadd.f32 0.0, %v5658
  %v5660 = vpop.f32.mrf.mxu0
  %5661 = vdwg.mxu0
  %5662 = vmatpush.bf16.msra.mxu0 0
  %5663 = vmatpush.bf16.msra.mxu0 0
  %5664 = vmatpush.bf16.msra.mxu0 0
  %5665 = vmatpush.bf16.msra.mxu0 0
  %5666 = vmatpush.bf16.msra.mxu0 0
  %5667 = vmatpush.bf16.msra.mxu0 0
  %5668 = vmatpush.bf16.msra.mxu0 0
  %5669 = vmatpush.bf16.msra.mxu0 %v5531
  %5670 = vmatmul.bf16.gmra.mxu0 %v5569
  %v5671 = vpop.f32.mrf.mxu0
  %v5672 = vadd.f32 %v5659, %v5671
  %v5673 = vpop.f32.mrf.mxu0
  %5674 = vdwg.mxu0
  %v5675 = vadd.f32 %v5344, %v5594
  %v5676 = vadd.f32 %v5345, %v5620
  %v5677 = vadd.f32 %v5346, %v5646
  %v5678 = vadd.f32 %v5347, %v5672
  %v5679 = vld [vmem:[%s6] sm:$0xf]
  %v5681 = vperm.slane %v5679, 0
  %v5682 = vperm.slane %v5679, 1
  %v5683 = vperm.slane %v5679, 2
  %v5684 = vperm.slane %v5679, 3
  %v5689 = vadd.f32 %v5675, %v5681
  %v5690 = vadd.f32 %v5676, %v5682
  %v5691 = vadd.f32 %v5677, %v5683
  %v5692 = vadd.f32 %v5678, %v5684
  %v5693 = vmax.f32 %v5689, 0.0
  %v5694 = vmax.f32 %v5690, 0.0
  %v5695 = vmax.f32 %v5691, 0.0
  %v5696 = vmax.f32 %v5692, 0.0
  %v5697 = vpack.c.bf16 %v5693, %v5693
  %v5698 = vpack.c.bf16 %v5694, %v5694
  %v5699 = vpack.c.bf16 %v5695, %v5695
  %v5700 = vpack.c.bf16 %v5696, %v5696
  %v5701 = vld [vmem:[%s7] sm:$0xf]
  %v5702 = vld [vmem:[%s7 + $0x4] sm:$0xf]
  %v5703 = vld [vmem:[%s7 + $0x8] sm:$0xf]
  %v5704 = vld [vmem:[%s7 + $0xc] sm:$0xf]
  %v5705 = vld [vmem:[%s7 + $0x10] sm:$0xf]
  %v5706 = vld [vmem:[%s7 + $0x14] sm:$0xf]
  %v5707 = vld [vmem:[%s7 + $0x18] sm:$0xf]
  %v5708 = vld [vmem:[%s7 + $0x1c] sm:$0xf]
  %v5709 = vld [vmem:[%s7 + $0x20] sm:$0xf]
  %v5710 = vld [vmem:[%s7 + $0x24] sm:$0xf]
  %v5711 = vld [vmem:[%s7 + $0x28] sm:$0xf]
  %v5712 = vld [vmem:[%s7 + $0x2c] sm:$0xf]
  %v5713 = vld [vmem:[%s7 + $0x30] sm:$0xf]
  %v5714 = vld [vmem:[%s7 + $0x34] sm:$0xf]
  %v5715 = vld [vmem:[%s7 + $0x38] sm:$0xf]
  %v5716 = vld [vmem:[%s7 + $0x3c] sm:$0xf]
  %v5717 = vld [vmem:[%s7 + $0x40] sm:$0xf]
  %v5718 = vld [vmem:[%s7 + $0x44] sm:$0xf]
  %v5719 = vld [vmem:[%s7 + $0x48] sm:$0xf]
  %v5720 = vld [vmem:[%s7 + $0x4c] sm:$0xf]
  %v5721 = vld [vmem:[%s7 + $0x50] sm:$0xf]
  %v5722 = vld [vmem:[%s7 + $0x54] sm:$0xf]
  %v5723 = vld [vmem:[%s7 + $0x58] sm:$0xf]
  %v5724 = vld [vmem:[%s7 + $0x5c] sm:$0xf]
  %v5725 = vld [vmem:[%s7 + $0x60] sm:$0xf]
  %v5726 = vld [vmem:[%s7 + $0x64] sm:$0xf]
  %v5727 = vld [vmem:[%s7 + $0x68] sm:$0xf]
  %v5728 = vld [vmem:[%s7 + $0x6c] sm:$0xf]
  %v5729 = vld [vmem:[%s7 + $0x70] sm:$0xf]
  %v5730 = vld [vmem:[%s7 + $0x74] sm:$0xf]
  %v5731 = vld [vmem:[%s7 + $0x78] sm:$0xf]
  %v5732 = vld [vmem:[%s7 + $0x7c] sm:$0xf]
  %v5733 = vld [vmem:[%s7 + $0x80] sm:$0xf]
  %v5734 = vld [vmem:[%s7 + $0x84] sm:$0xf]
  %v5735 = vld [vmem:[%s7 + $0x88] sm:$0xf]
  %v5736 = vld [vmem:[%s7 + $0x8c] sm:$0xf]
  %v5737 = vld [vmem:[%s7 + $0x90] sm:$0xf]
  %v5738 = vld [vmem:[%s7 + $0x94] sm:$0xf]
  %v5739 = vld [vmem:[%s7 + $0x98] sm:$0xf]
  %v5740 = vld [vmem:[%s7 + $0x9c] sm:$0xf]
  %v5741 = vld [vmem:[%s7 + $0xa0] sm:$0xf]
  %v5742 = vld [vmem:[%s7 + $0xa4] sm:$0xf]
  %v5743 = vld [vmem:[%s7 + $0xa8] sm:$0xf]
  %v5744 = vld [vmem:[%s7 + $0xac] sm:$0xf]
  %v5745 = vld [vmem:[%s7 + $0xb0] sm:$0xf]
  %v5746 = vld [vmem:[%s7 + $0xb4] sm:$0xf]
  %v5747 = vld [vmem:[%s7 + $0xb8] sm:$0xf]
  %v5748 = vld [vmem:[%s7 + $0xbc] sm:$0xf]
  %v5749 = vld [vmem:[%s7 + $0xc0] sm:$0xf]
  %v5750 = vld [vmem:[%s7 + $0xc4] sm:$0xf]
  %v5751 = vld [vmem:[%s7 + $0xc8] sm:$0xf]
  %v5752 = vld [vmem:[%s7 + $0xcc] sm:$0xf]
  %v5753 = vld [vmem:[%s7 + $0xd0] sm:$0xf]
  %v5754 = vld [vmem:[%s7 + $0xd4] sm:$0xf]
  %v5755 = vld [vmem:[%s8] sm:$0x1]
  %v5757 = vperm.slane %v5755, 0
  %v5813 = vunpack.c.l.b16 %v5701
  %v5814 = vunpack.c.l.b16 %v5702
  %v5815 = vunpack.c.l.b16 %v5703
  %v5816 = vunpack.c.l.b16 %v5704
  %v5817 = vunpack.c.l.b16 %v5705
  %v5818 = vunpack.c.l.b16 %v5706
  %v5819 = vunpack.c.l.b16 %v5707
  %v5820 = vunpack.c.l.b16 %v5708
  %v5821 = vunpack.c.l.b16 %v5709
  %v5822 = vunpack.c.l.b16 %v5710
  %v5823 = vunpack.c.l.b16 %v5711
  %v5824 = vunpack.c.l.b16 %v5712
  %v5825 = vunpack.c.l.b16 %v5713
  %v5826 = vunpack.c.l.b16 %v5714
  %v5827 = vunpack.c.l.b16 %v5715
  %v5828 = vunpack.c.l.b16 %v5716
  %v5829 = vunpack.c.l.b16 %v5717
  %v5830 = vunpack.c.l.b16 %v5718
  %v5831 = vunpack.c.l.b16 %v5719
  %v5832 = vunpack.c.l.b16 %v5720
  %v5833 = vunpack.c.l.b16 %v5721
  %v5834 = vunpack.c.l.b16 %v5722
  %v5835 = vunpack.c.l.b16 %v5723
  %v5836 = vunpack.c.l.b16 %v5724
  %v5837 = vunpack.c.l.b16 %v5725
  %v5838 = vunpack.c.l.b16 %v5726
  %v5839 = vunpack.c.l.b16 %v5727
  %v5840 = vunpack.c.l.b16 %v5728
  %v5841 = vunpack.c.l.b16 %v5729
  %v5842 = vunpack.c.l.b16 %v5730
  %v5843 = vunpack.c.l.b16 %v5731
  %v5844 = vunpack.c.l.b16 %v5732
  %v5845 = vunpack.c.l.b16 %v5733
  %v5846 = vunpack.c.l.b16 %v5734
  %v5847 = vunpack.c.l.b16 %v5735
  %v5848 = vunpack.c.l.b16 %v5736
  %v5849 = vunpack.c.l.b16 %v5737
  %v5850 = vunpack.c.l.b16 %v5738
  %v5851 = vunpack.c.l.b16 %v5739
  %v5852 = vunpack.c.l.b16 %v5740
  %v5853 = vunpack.c.l.b16 %v5741
  %v5854 = vunpack.c.l.b16 %v5742
  %v5855 = vunpack.c.l.b16 %v5743
  %v5856 = vunpack.c.l.b16 %v5744
  %v5857 = vunpack.c.l.b16 %v5745
  %v5858 = vunpack.c.l.b16 %v5746
  %v5859 = vunpack.c.l.b16 %v5747
  %v5860 = vunpack.c.l.b16 %v5748
  %v5861 = vunpack.c.l.b16 %v5749
  %v5862 = vunpack.c.l.b16 %v5750
  %v5863 = vunpack.c.l.b16 %v5751
  %v5864 = vunpack.c.l.b16 %v5752
  %v5865 = vunpack.c.l.b16 %v5753
  %v5866 = vunpack.c.l.b16 %v5754
  %v5867 = vpack.c.b16 %v5814, %v5813
  %v5868 = vpack.c.b16 %v5816, %v5815
  %v5869 = vpack.c.b16 %v5818, %v5817
  %v5870 = vpack.c.b16 %v5820, %v5819
  %v5871 = vpack.c.b16 %v5822, %v5821
  %v5872 = vpack.c.b16 %v5824, %v5823
  %v5873 = vpack.c.b16 %v5826, %v5825
  %v5874 = vpack.c.b16 %v5828, %v5827
  %v5875 = vpack.c.b16 %v5830, %v5829
  %v5876 = vpack.c.b16 %v5832, %v5831
  %v5877 = vpack.c.b16 %v5834, %v5833
  %v5878 = vpack.c.b16 %v5836, %v5835
  %v5879 = vpack.c.b16 %v5838, %v5837
  %v5880 = vpack.c.b16 %v5840, %v5839
  %v5881 = vpack.c.b16 %v5842, %v5841
  %v5882 = vpack.c.b16 %v5844, %v5843
  %v5883 = vpack.c.b16 %v5846, %v5845
  %v5884 = vpack.c.b16 %v5848, %v5847
  %v5885 = vpack.c.b16 %v5850, %v5849
  %v5886 = vpack.c.b16 %v5852, %v5851
  %v5887 = vpack.c.b16 %v5854, %v5853
  %v5888 = vpack.c.b16 %v5856, %v5855
  %v5889 = vpack.c.b16 %v5858, %v5857
  %v5890 = vpack.c.b16 %v5860, %v5859
  %v5891 = vpack.c.b16 %v5862, %v5861
  %v5892 = vpack.c.b16 %v5864, %v5863
  %v5893 = vpack.c.b16 %v5866, %v5865
  %vm5921 = vcmask 392192
  %v5923 = vsel %vm5921, %v5700, 0
  %5925 = vmatpush.bf16.msra.mxu0 %v5874
  %5926 = vmatpush.bf16.msra.mxu0 %v5873
  %5927 = vmatpush.bf16.msra.mxu0 %v5872
  %5928 = vmatpush.bf16.msra.mxu0 %v5871
  %5929 = vmatpush.bf16.msra.mxu0 %v5870
  %5930 = vmatpush.bf16.msra.mxu0 %v5869
  %5931 = vmatpush.bf16.msra.mxu0 %v5868
  %5932 = vmatpush.bf16.msra.mxu0 %v5867
  %5933 = vmatmul.bf16.gmra.mxu0 %v5697
  %v5934 = vpop.f32.mrf.mxu0
  %v5935 = vadd.f32 %v5757, %v5934
  %v5936 = vpop.f32.mrf.mxu0
  %5937 = vdwg.mxu0
  %5938 = vmatpush.bf16.msra.mxu0 %v5882
  %5939 = vmatpush.bf16.msra.mxu0 %v5881
  %5940 = vmatpush.bf16.msra.mxu0 %v5880
  %5941 = vmatpush.bf16.msra.mxu0 %v5879
  %5942 = vmatpush.bf16.msra.mxu0 %v5878
  %5943 = vmatpush.bf16.msra.mxu0 %v5877
  %5944 = vmatpush.bf16.msra.mxu0 %v5876
  %5945 = vmatpush.bf16.msra.mxu0 %v5875
  %5946 = vmatmul.bf16.gmra.mxu0 %v5698
  %v5947 = vpop.f32.mrf.mxu0
  %v5948 = vadd.f32 %v5935, %v5947
  %v5949 = vpop.f32.mrf.mxu0
  %5950 = vdwg.mxu0
  %5951 = vmatpush.bf16.msra.mxu0 %v5890
  %5952 = vmatpush.bf16.msra.mxu0 %v5889
  %5953 = vmatpush.bf16.msra.mxu0 %v5888
  %5954 = vmatpush.bf16.msra.mxu0 %v5887
  %5955 = vmatpush.bf16.msra.mxu0 %v5886
  %5956 = vmatpush.bf16.msra.mxu0 %v5885
  %5957 = vmatpush.bf16.msra.mxu0 %v5884
  %5958 = vmatpush.bf16.msra.mxu0 %v5883
  %5959 = vmatmul.bf16.gmra.mxu0 %v5699
  %v5960 = vpop.f32.mrf.mxu0
  %v5961 = vadd.f32 %v5948, %v5960
  %v5962 = vpop.f32.mrf.mxu0
  %5963 = vdwg.mxu0
  %5964 = vmatpush.bf16.msra.mxu0 0
  %5965 = vmatpush.bf16.msra.mxu0 0
  %5966 = vmatpush.bf16.msra.mxu0 0
  %5967 = vmatpush.bf16.msra.mxu0 0
  %5968 = vmatpush.bf16.msra.mxu0 0
  %5969 = vmatpush.bf16.msra.mxu0 %v5893
  %5970 = vmatpush.bf16.msra.mxu0 %v5892
  %5971 = vmatpush.bf16.msra.mxu0 %v5891
  %5972 = vmatmul.bf16.gmra.mxu0 %v5923
  %v5973 = vpop.f32.mrf.mxu0
  %v5974 = vadd.f32 %v5961, %v5973
  %v5975 = vpop.f32.mrf.mxu0
  %5976 = vdwg.mxu0
  %vm5977 = vcmask 123904
  %5978 = vst.msk [vmem:[%s9] sm:$0x3] %vm5977, %v5974
  // Predicated region
  $region38: #{_lambda_.1} parent=0 // pred_check
    _
  $region39: #{_lambda_.1} parent=0 // pred_check_branch
    %5980 = sbr.rel (0) target = $region41
  $region40: #{_lambda_.1} parent=0 // pred_region
    _
  $region41: #{_lambda_.1} parent=0 // pred_fallthru
    _
  // Predicated region
  $region42: #{_lambda_.1} parent=0 // pred_check
    _
  $region43: #{_lambda_.1} parent=0 // pred_check_branch
    %5982 = sbr.rel (0) target = $region45
  $region44: #{_lambda_.1} parent=0 // pred_region
    _
  $region45: #{_lambda_.1} parent=0 // pred_fallthru
    _

</llo_original>
